<compile_context>
chip_gen: v6e
topology: v6e:2x2x1
jax: 0.10.0
libtpu: 0.0.40
codegen_flags: <defaults>
</compile_context>

<pallas_src>
import math
import functools

import jax
import jax.numpy as jnp
from jax.experimental import pallas as pl
from jax.experimental.pallas import tpu as pltpu


_VMEM_LIMIT = 48 * 1024 * 1024   # > default scoped limit on v5e/v6e, < v7x physical
_MASK_FILL = -65500.0            # matches torch masked_fill value in the reference


# ----------------------------- in-kernel helpers ----------------------------

def _layer_norm(x, g, b):
    mu = jnp.mean(x, axis=-1, keepdims=True)
    var = jnp.mean(jnp.square(x - mu), axis=-1, keepdims=True)
    return (x - mu) * jax.lax.rsqrt(var + 1e-5) * g + b


def _mh_attention(q, k, v, keep, wo_ref, bo_ref, heads, dk):
    """q: (Tq,D) f32 (scale pre-baked), k/v: (Tk,D) f32, keep: (mq,Tk) bool.

    Head-batched attention; returns the (Tq,D) projected output (W_o applied,
    bias included) as fp32.
    """
    q16 = q.astype(jnp.bfloat16)
    k16 = k.astype(jnp.bfloat16)
    v16 = v.astype(jnp.bfloat16)
    # Leading-axis stack -> (H, T, dk); no minor-dim concatenation anywhere.
    qh = jnp.stack([q16[:, h * dk:(h + 1) * dk] for h in range(heads)], axis=0)
    kh = jnp.stack([k16[:, h * dk:(h + 1) * dk] for h in range(heads)], axis=0)
    vh = jnp.stack([v16[:, h * dk:(h + 1) * dk] for h in range(heads)], axis=0)

    s = jnp.einsum('hqd,hkd->hqk', qh, kh,
                   preferred_element_type=jnp.float32)          # (H, Tq, Tk)
    s = jnp.where(keep[None, :, :], s, _MASK_FILL)              # masked_fill semantics
    s = s - jnp.max(s, axis=-1, keepdims=True)
    p = jnp.exp(s)
    p = p * pl.reciprocal(jnp.sum(p, axis=-1, keepdims=True), approx=True)

    o = jnp.einsum('hqk,hkd->hqd', p.astype(jnp.bfloat16), vh,
                   preferred_element_type=jnp.float32)          # (H, Tq, dk)

    # Output projection accumulated per head -> lane-dense (Tq, D) result.
    y = bo_ref[...]                                             # (1, D) broadcasts
    for h in range(heads):
        y = y + jnp.dot(o[h].astype(jnp.bfloat16), wo_ref[h],
                        preferred_element_type=jnp.float32)
    return y


# ------------------------------- kernels ------------------------------------

def _self_attn_kernel(x_ref, m_ref, g_ref, beta_ref, wqkv_ref, bqkv_ref,
                      wo_ref, bo_ref, o_ref, *, heads):
    """out = x + W_o( MHA(LN(x)) ); single x input (read once, LN computed once)."""
    T, D = x_ref.shape
    dk = D // heads
    x = x_ref[...]                                              # fp32 residual
    n16 = _layer_norm(x, g_ref[...], beta_ref[...]).astype(jnp.bfloat16)
    # Fused QKV projection: one (T,D) x (D,3D) MXU pass, fp32 accumulation.
    qkv = jnp.dot(n16, wqkv_ref[...],
                  preferred_element_type=jnp.float32) + bqkv_ref[...]
    q = qkv[:, :D]            # 1/sqrt(dk) already folded into Wq / bq at init
    k = qkv[:, D:2 * D]
    v = qkv[:, 2 * D:]
    keep = m_ref[...] != 0.0                                     # (mq, T) bool, once
    y = _mh_attention(q, k, v, keep, wo_ref, bo_ref, heads, dk)
    o_ref[...] = x + y                                           # fused residual


def _cross_attn_kernel(x_ref, f_ref, m_ref, g_ref, beta_ref, wq_ref, bq_ref,
                       wkv_ref, bkv_ref, wo_ref, bo_ref, o_ref, *, heads):
    """out = x + W_o( MHA(q=LN(x)Wq, k/v=feature W_{k,v}) ). feature is NOT normed."""
    T, D = x_ref.shape
    dk = D // heads
    x = x_ref[...]
    n16 = _layer_norm(x, g_ref[...], beta_ref[...]).astype(jnp.bfloat16)
    q = jnp.dot(n16, wq_ref[...],
                preferred_element_type=jnp.float32) + bq_ref[...]
    f16 = f_ref[...].astype(jnp.bfloat16)
    # Fused K/V projection: one (S,D) x (D,2D) MXU pass.
    kv = jnp.dot(f16, wkv_ref[...],
                 preferred_element_type=jnp.float32) + bkv_ref[...]
    k = kv[:, :D]
    v = kv[:, D:]
    keep = m_ref[...] != 0.0
    y = _mh_attention(q, k, v, keep, wo_ref, bo_ref, heads, dk)
    o_ref[...] = x + y
    # TODO(synk): for long Tq/Tk add query-tile + kv-tile (flash-style) grid axes.


def _ffn_kernel(x_ref, g_ref, beta_ref, w1_ref, b1_ref, w2_ref, b2_ref,
                o_ref, n16_ref):
    """out = x + W2(relu(W1(LN(x)))) on a (tm,D) row tile, DFF tiled on grid axis 1."""
    @pl.when(pl.program_id(1) == 0)
    def _():
        x = x_ref[...]
        n = _layer_norm(x, g_ref[...], beta_ref[...])
        n16_ref[...] = n.astype(jnp.bfloat16)     # LN computed once per row tile
        o_ref[...] = x + b2_ref[...]              # init fp32 accumulator (resident)

    h = jnp.dot(n16_ref[...], w1_ref[...],
                preferred_element_type=jnp.float32) + b1_ref[...]
    h = jnp.maximum(h, 0.0)
    o_ref[...] = o_ref[...] + jnp.dot(h.astype(jnp.bfloat16), w2_ref[...],
                                      preferred_element_type=jnp.float32)


# ------------------------------- wrappers ------------------------------------

def self_attn_sublayer(x, mask, ln_p, attn_p, heads):
    """x: (B,T,D), mask: (B,1,T|1,T). Returns (B,T,D) fp32."""
    B, T, D = x.shape
    mq = mask.shape[2]
    kernel = functools.partial(_self_attn_kernel, heads=heads)
    return pl.pallas_call(
        kernel,
        out_shape=jax.ShapeDtypeStruct((B, T, D), jnp.float32),
        grid=(B,),
        in_specs=[
            pl.BlockSpec((None, T, D), lambda b: (b, 0, 0)),            # x
            pl.BlockSpec((None, None, mq, T), lambda b: (b, 0, 0, 0)),  # mask (bf16)
            pl.BlockSpec((1, D), lambda b: (0, 0)),                     # ln gamma
            pl.BlockSpec((1, D), lambda b: (0, 0)),                     # ln beta
            pl.BlockSpec((D, 3 * D), lambda b: (0, 0)),                 # wqkv (bf16)
            pl.BlockSpec((1, 3 * D), lambda b: (0, 0)),                 # bqkv
            pl.BlockSpec((heads, D // heads, D), lambda b: (0, 0, 0)),  # wo (bf16)
            pl.BlockSpec((1, D), lambda b: (0, 0)),                     # bo
        ],
        out_specs=pl.BlockSpec((None, T, D), lambda b: (b, 0, 0)),
        compiler_params=pltpu.CompilerParams(
            dimension_semantics=("parallel",),
            vmem_limit_bytes=_VMEM_LIMIT),
    )(x, mask.astype(jnp.bfloat16),
      ln_p["g"].reshape(1, D), ln_p["b"].reshape(1, D),
      attn_p["wqkv"], attn_p["bqkv"], attn_p["wo"], attn_p["bo"])


def cross_attn_sublayer(x, feature, mask, ln_p, attn_p, heads):
    """x: (B,T,D), feature: (B,S,D), mask: (B,1,T|1,S). Returns (B,T,D) fp32."""
    B, T, D = x.shape
    S = feature.shape[1]
    mq = mask.shape[2]
    kernel = functools.partial(_cross_attn_kernel, heads=heads)
    return pl.pallas_call(
        kernel,
        out_shape=jax.ShapeDtypeStruct((B, T, D), jnp.float32),
        grid=(B,),
        in_specs=[
            pl.BlockSpec((None, T, D), lambda b: (b, 0, 0)),            # x
            pl.BlockSpec((None, S, D), lambda b: (b, 0, 0)),            # feature
            pl.BlockSpec((None, None, mq, S), lambda b: (b, 0, 0, 0)),  # mask (bf16)
            pl.BlockSpec((1, D), lambda b: (0, 0)),                     # ln gamma
            pl.BlockSpec((1, D), lambda b: (0, 0)),                     # ln beta
            pl.BlockSpec((D, D), lambda b: (0, 0)),                     # wq (bf16)
            pl.BlockSpec((1, D), lambda b: (0, 0)),                     # bq
            pl.BlockSpec((D, 2 * D), lambda b: (0, 0)),                 # wkv (bf16)
            pl.BlockSpec((1, 2 * D), lambda b: (0, 0)),                 # bkv
            pl.BlockSpec((heads, D // heads, D), lambda b: (0, 0, 0)),  # wo (bf16)
            pl.BlockSpec((1, D), lambda b: (0, 0)),                     # bo
        ],
        out_specs=pl.BlockSpec((None, T, D), lambda b: (b, 0, 0)),
        compiler_params=pltpu.CompilerParams(
            dimension_semantics=("parallel",),
            vmem_limit_bytes=_VMEM_LIMIT),
    )(x, feature, mask.astype(jnp.bfloat16),
      ln_p["g"].reshape(1, D), ln_p["b"].reshape(1, D),
      attn_p["wq"], attn_p["bq"], attn_p["wkv"], attn_p["bkv"],
      attn_p["wo"], attn_p["bo"])


def _ffn_row_tile(M):
    """(tile, padded_M): prefer large tiles (pipeline efficiency), pad awkward M."""
    for tm in (512, 256, 128):
        if M % tm == 0:
            return tm, M
    if M >= 512:
        return 512, pl.cdiv(M, 512) * 512
    m8 = ((M + 7) // 8) * 8
    return m8, m8


def _ffn_ff_tile(DFF):
    """DFF chunk for the reduction grid axis (keeps weight residency bounded)."""
    if DFF <= 2048:
        return DFF
    for t in (2048, 1024, 512, 256, 128):
        if DFF % t == 0:
            return t
    return DFF


def ffn_sublayer(x, ln_p, ff_p):
    B, T, D = x.shape
    DFF = ff_p["w1"].shape[1]
    x2 = x.reshape(-1, D)
    M = x2.shape[0]
    tm, Mp = _ffn_row_tile(M)
    if Mp != M:
        x2 = jnp.pad(x2, ((0, Mp - M), (0, 0)))
    tkf = _ffn_ff_tile(DFF)

    y = pl.pallas_call(
        _ffn_kernel,
        out_shape=jax.ShapeDtypeStruct((Mp, D), jnp.float32),
        grid=(Mp // tm, DFF // tkf),
        in_specs=[
            pl.BlockSpec((tm, D), lambda i, k: (i, 0)),     # x rows
            pl.BlockSpec((1, D), lambda i, k: (0, 0)),      # ln gamma
            pl.BlockSpec((1, D), lambda i, k: (0, 0)),      # ln beta
            pl.BlockSpec((D, tkf), lambda i, k: (0, k)),    # w1 chunk (bf16)
            pl.BlockSpec((1, tkf), lambda i, k: (0, k)),    # b1 chunk
            pl.BlockSpec((tkf, D), lambda i, k: (k, 0)),    # w2 chunk (bf16)
            pl.BlockSpec((1, D), lambda i, k: (0, 0)),      # b2
        ],
        out_specs=pl.BlockSpec((tm, D), lambda i, k: (i, 0)),
        scratch_shapes=[pltpu.VMEM((tm, D), jnp.bfloat16)],  # LN(x) cached per tile
        compiler_params=pltpu.CompilerParams(
            dimension_semantics=("parallel", "arbitrary"),
            vmem_limit_bytes=_VMEM_LIMIT),
    )(x2, ln_p["g"].reshape(1, D), ln_p["b"].reshape(1, D),
      ff_p["w1"], ff_p["b1"], ff_p["w2"], ff_p["b2"])
    if Mp != M:
        y = y[:M]
    return y.reshape(B, T, D)


def decoder_layer(params, x, feature, src_mask, tgt_mask, headers):
    # sublayer[0]: x + self_attn(norm(x), norm(x), norm(x), tgt_mask)
    x = self_attn_sublayer(x, tgt_mask, params["ln0"], params["self_attn"], headers)
    # sublayer[1]: x + src_attn(norm(x), feature, feature, src_mask)
    x = cross_attn_sublayer(x, feature, src_mask, params["ln1"], params["src_attn"],
                            headers)
    # sublayer[2]: x + feed_forward(norm(x))
    x = ffn_sublayer(x, params["ln2"], params["ff"])
    return x


# ---------------------------- parameter init --------------------------------

def _init_linear(key, fan_in, fan_out):
    kw, kb = jax.random.split(key)
    bound = 1.0 / math.sqrt(fan_in)
    w = jax.random.uniform(kw, (fan_in, fan_out), jnp.float32, -bound, bound)
    b = jax.random.uniform(kb, (fan_out,), jnp.float32, -bound, bound)
    return w, b


def init_self_attn(key, d_model, heads):
    ks = jax.random.split(key, 4)
    wq, bq = _init_linear(ks[0], d_model, d_model)
    wk, bk = _init_linear(ks[1], d_model, d_model)
    wv, bv = _init_linear(ks[2], d_model, d_model)
    wo, bo = _init_linear(ks[3], d_model, d_model)
    dk = d_model // heads
    s = 1.0 / math.sqrt(dk)                       # scale baked into Q projection
    return {
        "wqkv": jnp.concatenate([wq * s, wk, wv], axis=1).astype(jnp.bfloat16),
        "bqkv": jnp.concatenate([bq * s, bk, bv]).reshape(1, 3 * d_model),
        "wo": wo.reshape(heads, dk, d_model).astype(jnp.bfloat16),
        "bo": bo.reshape(1, d_model),
    }


def init_src_attn(key, d_model, heads):
    ks = jax.random.split(key, 4)
    wq, bq = _init_linear(ks[0], d_model, d_model)
    wk, bk = _init_linear(ks[1], d_model, d_model)
    wv, bv = _init_linear(ks[2], d_model, d_model)
    wo, bo = _init_linear(ks[3], d_model, d_model)
    dk = d_model // heads
    s = 1.0 / math.sqrt(dk)
    return {
        "wq": (wq * s).astype(jnp.bfloat16),
        "bq": (bq * s).reshape(1, d_model),
        "wkv": jnp.concatenate([wk, wv], axis=1).astype(jnp.bfloat16),
        "bkv": jnp.concatenate([bk, bv]).reshape(1, 2 * d_model),
        "wo": wo.reshape(heads, dk, d_model).astype(jnp.bfloat16),
        "bo": bo.reshape(1, d_model),
    }


def init_decoder_layer(key, d_model, d_ff, heads):
    ks = jax.random.split(key, 4)
    w1, b1 = _init_linear(ks[2], d_model, d_ff)
    w2, b2 = _init_linear(ks[3], d_ff, d_model)
    ln = lambda: {"g": jnp.ones((d_model,), jnp.float32),
                  "b": jnp.zeros((d_model,), jnp.float32)}
    return {
        "self_attn": init_self_attn(ks[0], d_model, heads),
        "src_attn": init_src_attn(ks[1], d_model, heads),
        "ff": {"w1": w1.astype(jnp.bfloat16), "b1": b1.reshape(1, d_ff),
               "w2": w2.astype(jnp.bfloat16), "b2": b2.reshape(1, d_model)},
        "ln0": ln(),
        "ln1": ln(),
        "ln2": ln(),
    }


# --------------------------------- main --------------------------------------

if __name__ == "__main__":
    B, T, S, D, H, DFF = 2, 8, 12, 32, 4, 64

    key = jax.random.PRNGKey(0)
    kp, kx, kf = jax.random.split(key, 3)

    params = init_decoder_layer(kp, D, DFF, H)
    x = jax.random.normal(kx, (B, T, D), jnp.float32)
    feature = jax.random.normal(kf, (B, S, D), jnp.float32)

    # tgt_mask: causal (B, 1, T, T); src_mask: (B, 1, 1, S) with last 2 src
    # positions of batch 1 masked out. 1 = attend, 0 = mask.
    tgt_mask = jnp.broadcast_to(
        jnp.tril(jnp.ones((T, T), jnp.float32))[None, None], (B, 1, T, T)
    )
    src_mask = jnp.ones((B, 1, 1, S), jnp.float32)
    src_mask = src_mask.at[1, :, :, -2:].set(0.0)

    fwd = jax.jit(functools.partial(decoder_layer, headers=H))
    out = fwd(params, x, feature, src_mask, tgt_mask)
    out = jax.block_until_ready(out)
    assert out.shape == (B, T, D)
    assert bool(jnp.all(jnp.isfinite(out)))
    # TODO(synk): dropout (train-mode) is omitted; forward matches eval() semantics.
    print("KERNEL_OK")
</pallas_src>

<mosaic_0001>
module attributes {stable_mosaic.version = 11 : i64} {
  func.func @_self_attn_kernel(%arg0: i32, %arg1: memref<1x8x32xf32, #tpu.memory_space<vmem>>, %arg2: memref<1x1x8x8xbf16, #tpu.memory_space<vmem>>, %arg3: memref<1x32xf32, #tpu.memory_space<vmem>>, %arg4: memref<1x32xf32, #tpu.memory_space<vmem>>, %arg5: memref<32x96xbf16, #tpu.memory_space<vmem>>, %arg6: memref<1x96xf32, #tpu.memory_space<vmem>>, %arg7: memref<4x8x32xbf16, #tpu.memory_space<vmem>>, %arg8: memref<1x32xf32, #tpu.memory_space<vmem>>, %arg9: memref<1x8x32xf32, #tpu.memory_space<vmem>>) attributes {dimension_semantics = [#tpu.dimension_semantics<parallel>], iteration_bounds = array<i64: 2>, scalar_prefetch = 0 : i64, scratch_operands = 0 : i64, tpu.core_type = #tpu.core_type<tc>, window_params = [{transform_indices = @transform_0, window_bounds = array<i64: 1, 8, 32>}, {transform_indices = @transform_1, window_bounds = array<i64: 1, 1, 8, 8>}, {pipeline_mode = #tpu.pipeline_mode<synchronous>, transform_indices = @transform_2, window_bounds = array<i64: 1, 32>}, {pipeline_mode = #tpu.pipeline_mode<synchronous>, transform_indices = @transform_3, window_bounds = array<i64: 1, 32>}, {pipeline_mode = #tpu.pipeline_mode<synchronous>, transform_indices = @transform_4, window_bounds = array<i64: 32, 96>}, {pipeline_mode = #tpu.pipeline_mode<synchronous>, transform_indices = @transform_5, window_bounds = array<i64: 1, 96>}, {pipeline_mode = #tpu.pipeline_mode<synchronous>, transform_indices = @transform_6, window_bounds = array<i64: 4, 8, 32>}, {pipeline_mode = #tpu.pipeline_mode<synchronous>, transform_indices = @transform_7, window_bounds = array<i64: 1, 32>}, {transform_indices = @transform_8, window_bounds = array<i64: 1, 8, 32>}]} {
    %c0 = arith.constant 0 : index
    %c0_0 = arith.constant 0 : index
    %c0_1 = arith.constant 0 : index
    %0 = vector.load %arg1[%c0, %c0_0, %c0_1] : memref<1x8x32xf32, #tpu.memory_space<vmem>>, vector<1x8x32xf32>
    %1 = vector.shape_cast %0 : vector<1x8x32xf32> to vector<8x32xf32>
    %c0_2 = arith.constant 0 : index
    %c0_3 = arith.constant 0 : index
    %2 = vector.load %arg3[%c0_2, %c0_3] : memref<1x32xf32, #tpu.memory_space<vmem>>, vector<1x32xf32>
    %c0_4 = arith.constant 0 : index
    %c0_5 = arith.constant 0 : index
    %3 = vector.load %arg4[%c0_4, %c0_5] : memref<1x32xf32, #tpu.memory_space<vmem>>, vector<1x32xf32>
    %cst = arith.constant dense<0.000000e+00> : vector<8xf32>
    %4 = vector.multi_reduction <add>, %1, %cst [1] : vector<8x32xf32> to vector<8xf32>
    %5 = vector.shape_cast %4 : vector<8xf32> to vector<8x1xf32>
    %cst_6 = arith.constant 3.200000e+01 : f32
    %6 = vector.broadcast %cst_6 : f32 to vector<8x1xf32>
    %7 = arith.divf %5, %6 : vector<8x1xf32>
    %8 = vector.broadcast %7 : vector<8x1xf32> to vector<8x32xf32>
    %9 = arith.subf %1, %8 : vector<8x32xf32>
    %10 = arith.mulf %9, %9 : vector<8x32xf32>
    %cst_7 = arith.constant dense<0.000000e+00> : vector<8xf32>
    %11 = vector.multi_reduction <add>, %10, %cst_7 [1] : vector<8x32xf32> to vector<8xf32>
    %12 = vector.shape_cast %11 : vector<8xf32> to vector<8x1xf32>
    %cst_8 = arith.constant 3.200000e+01 : f32
    %13 = vector.broadcast %cst_8 : f32 to vector<8x1xf32>
    %14 = arith.divf %12, %13 : vector<8x1xf32>
    %15 = vector.broadcast %7 : vector<8x1xf32> to vector<8x32xf32>
    %16 = arith.subf %1, %15 : vector<8x32xf32>
    %cst_9 = arith.constant 9.99999974E-6 : f32
    %17 = vector.broadcast %cst_9 : f32 to vector<8x1xf32>
    %18 = arith.addf %14, %17 : vector<8x1xf32>
    %19 = math.rsqrt %18 : vector<8x1xf32>
    %20 = vector.broadcast %19 : vector<8x1xf32> to vector<8x32xf32>
    %21 = arith.mulf %16, %20 : vector<8x32xf32>
    %22 = vector.broadcast %2 : vector<1x32xf32> to vector<8x32xf32>
    %23 = arith.mulf %21, %22 : vector<8x32xf32>
    %24 = vector.broadcast %3 : vector<1x32xf32> to vector<8x32xf32>
    %25 = arith.addf %23, %24 : vector<8x32xf32>
    %26 = arith.truncf %25 : vector<8x32xf32> to vector<8x32xbf16>
    %c0_10 = arith.constant 0 : index
    %c0_11 = arith.constant 0 : index
    %27 = vector.load %arg5[%c0_10, %c0_11] : memref<32x96xbf16, #tpu.memory_space<vmem>>, vector<32x96xbf16>
    %cst_12 = arith.constant dense<0.000000e+00> : vector<8x96xf32>
    %28 = tpu.matmul %26, %27, %cst_12 {dimension_numbers = #tpu.dot_dimension_numbers<[1], [0], [0], [1], [0, 0, 1, 1], [], []>} : vector<8x32xbf16>, vector<32x96xbf16>, vector<8x96xf32> -> vector<8x96xf32>
    %c0_13 = arith.constant 0 : index
    %c0_14 = arith.constant 0 : index
    %29 = vector.load %arg6[%c0_13, %c0_14] : memref<1x96xf32, #tpu.memory_space<vmem>>, vector<1x96xf32>
    %30 = vector.broadcast %29 : vector<1x96xf32> to vector<8x96xf32>
    %31 = arith.addf %28, %30 : vector<8x96xf32>
    %32 = vector.extract_strided_slice %31 {offsets = [0, 0], sizes = [8, 32], strides = [1, 1]} : vector<8x96xf32> to vector<8x32xf32>
    %33 = vector.extract_strided_slice %31 {offsets = [0, 32], sizes = [8, 32], strides = [1, 1]} : vector<8x96xf32> to vector<8x32xf32>
    %34 = vector.extract_strided_slice %31 {offsets = [0, 64], sizes = [8, 32], strides = [1, 1]} : vector<8x96xf32> to vector<8x32xf32>
    %c0_15 = arith.constant 0 : index
    %c0_16 = arith.constant 0 : index
    %c0_17 = arith.constant 0 : index
    %c0_18 = arith.constant 0 : index
    %35 = vector.load %arg2[%c0_15, %c0_16, %c0_17, %c0_18] : memref<1x1x8x8xbf16, #tpu.memory_space<vmem>>, vector<1x1x8x8xbf16>
    %36 = vector.shape_cast %35 : vector<1x1x8x8xbf16> to vector<8x8xbf16>
    %cst_19 = arith.constant 0.000000e+00 : bf16
    %37 = vector.broadcast %cst_19 : bf16 to vector<8x8xbf16>
    %38 = arith.cmpf one, %36, %37 : vector<8x8xbf16>
    %39 = arith.truncf %32 : vector<8x32xf32> to vector<8x32xbf16>
    %40 = arith.truncf %33 : vector<8x32xf32> to vector<8x32xbf16>
    %41 = arith.truncf %34 : vector<8x32xf32> to vector<8x32xbf16>
    %42 = vector.extract_strided_slice %39 {offsets = [0, 0], sizes = [8, 8], strides = [1, 1]} : vector<8x32xbf16> to vector<8x8xbf16>
    %43 = vector.extract_strided_slice %39 {offsets = [0, 8], sizes = [8, 8], strides = [1, 1]} : vector<8x32xbf16> to vector<8x8xbf16>
    %44 = vector.extract_strided_slice %39 {offsets = [0, 16], sizes = [8, 8], strides = [1, 1]} : vector<8x32xbf16> to vector<8x8xbf16>
    %45 = vector.extract_strided_slice %39 {offsets = [0, 24], sizes = [8, 8], strides = [1, 1]} : vector<8x32xbf16> to vector<8x8xbf16>
    %46 = vector.shape_cast %42 : vector<8x8xbf16> to vector<1x8x8xbf16>
    %47 = vector.shape_cast %43 : vector<8x8xbf16> to vector<1x8x8xbf16>
    %48 = vector.shape_cast %44 : vector<8x8xbf16> to vector<1x8x8xbf16>
    %49 = vector.shape_cast %45 : vector<8x8xbf16> to vector<1x8x8xbf16>
    %50 = tpu.concatenate %46, %47, %48, %49 in 0 : vector<1x8x8xbf16>, vector<1x8x8xbf16>, vector<1x8x8xbf16>, vector<1x8x8xbf16> -> vector<4x8x8xbf16>
    %51 = vector.extract_strided_slice %40 {offsets = [0, 0], sizes = [8, 8], strides = [1, 1]} : vector<8x32xbf16> to vector<8x8xbf16>
    %52 = vector.extract_strided_slice %40 {offsets = [0, 8], sizes = [8, 8], strides = [1, 1]} : vector<8x32xbf16> to vector<8x8xbf16>
    %53 = vector.extract_strided_slice %40 {offsets = [0, 16], sizes = [8, 8], strides = [1, 1]} : vector<8x32xbf16> to vector<8x8xbf16>
    %54 = vector.extract_strided_slice %40 {offsets = [0, 24], sizes = [8, 8], strides = [1, 1]} : vector<8x32xbf16> to vector<8x8xbf16>
    %55 = vector.shape_cast %51 : vector<8x8xbf16> to vector<1x8x8xbf16>
    %56 = vector.shape_cast %52 : vector<8x8xbf16> to vector<1x8x8xbf16>
    %57 = vector.shape_cast %53 : vector<8x8xbf16> to vector<1x8x8xbf16>
    %58 = vector.shape_cast %54 : vector<8x8xbf16> to vector<1x8x8xbf16>
    %59 = tpu.concatenate %55, %56, %57, %58 in 0 : vector<1x8x8xbf16>, vector<1x8x8xbf16>, vector<1x8x8xbf16>, vector<1x8x8xbf16> -> vector<4x8x8xbf16>
    %60 = vector.extract_strided_slice %41 {offsets = [0, 0], sizes = [8, 8], strides = [1, 1]} : vector<8x32xbf16> to vector<8x8xbf16>
    %61 = vector.extract_strided_slice %41 {offsets = [0, 8], sizes = [8, 8], strides = [1, 1]} : vector<8x32xbf16> to vector<8x8xbf16>
    %62 = vector.extract_strided_slice %41 {offsets = [0, 16], sizes = [8, 8], strides = [1, 1]} : vector<8x32xbf16> to vector<8x8xbf16>
    %63 = vector.extract_strided_slice %41 {offsets = [0, 24], sizes = [8, 8], strides = [1, 1]} : vector<8x32xbf16> to vector<8x8xbf16>
    %64 = vector.shape_cast %60 : vector<8x8xbf16> to vector<1x8x8xbf16>
    %65 = vector.shape_cast %61 : vector<8x8xbf16> to vector<1x8x8xbf16>
    %66 = vector.shape_cast %62 : vector<8x8xbf16> to vector<1x8x8xbf16>
    %67 = vector.shape_cast %63 : vector<8x8xbf16> to vector<1x8x8xbf16>
    %68 = tpu.concatenate %64, %65, %66, %67 in 0 : vector<1x8x8xbf16>, vector<1x8x8xbf16>, vector<1x8x8xbf16>, vector<1x8x8xbf16> -> vector<4x8x8xbf16>
    "tpu.trace_start"() <{level = 10 : i32, message = "hqd,hkd->hqk"}> : () -> ()
    %cst_20 = arith.constant dense<0.000000e+00> : vector<4x8x8xf32>
    %69 = tpu.matmul %50, %59, %cst_20 {dimension_numbers = #tpu.dot_dimension_numbers<[2], [2], [1], [1], [0, 0, 0, 1, 1, 1], [0], [0]>} : vector<4x8x8xbf16>, vector<4x8x8xbf16>, vector<4x8x8xf32> -> vector<4x8x8xf32>
    "tpu.trace_stop"() : () -> ()
    %70 = vector.shape_cast %38 : vector<8x8xi1> to vector<1x8x8xi1>
    %cst_21 = arith.constant -6.550000e+04 : f32
    %71 = vector.shape_cast %70 : vector<1x8x8xi1> to vector<1x8x8xi1>
    %72 = vector.broadcast %71 : vector<1x8x8xi1> to vector<4x8x8xi1>
    %73 = vector.broadcast %cst_21 : f32 to vector<4x8x8xf32>
    %74 = arith.select %72, %69, %73 : vector<4x8x8xi1>, vector<4x8x8xf32>
    %cst_22 = arith.constant dense<0xFF800000> : vector<4x8xf32>
    %75 = vector.multi_reduction <maximumf>, %74, %cst_22 [2] : vector<4x8x8xf32> to vector<4x8xf32>
    %76 = vector.shape_cast %75 : vector<4x8xf32> to vector<4x8x1xf32>
    %77 = vector.broadcast %76 : vector<4x8x1xf32> to vector<4x8x8xf32>
    %78 = arith.subf %74, %77 : vector<4x8x8xf32>
    %79 = math.exp %78 : vector<4x8x8xf32>
    %cst_23 = arith.constant dense<0.000000e+00> : vector<4x8xf32>
    %80 = vector.multi_reduction <add>, %79, %cst_23 [2] : vector<4x8x8xf32> to vector<4x8xf32>
    %81 = vector.shape_cast %80 : vector<4x8xf32> to vector<4x8x1xf32>
    %82 = tpu.reciprocal %81 {approx = true} : vector<4x8x1xf32> -> vector<4x8x1xf32>
    %83 = vector.broadcast %82 : vector<4x8x1xf32> to vector<4x8x8xf32>
    %84 = arith.mulf %79, %83 : vector<4x8x8xf32>
    %85 = arith.truncf %84 : vector<4x8x8xf32> to vector<4x8x8xbf16>
    "tpu.trace_start"() <{level = 10 : i32, message = "hqk,hkd->hqd"}> : () -> ()
    %cst_24 = arith.constant dense<0.000000e+00> : vector<4x8x8xf32>
    %86 = tpu.matmul %85, %68, %cst_24 {dimension_numbers = #tpu.dot_dimension_numbers<[2], [1], [1], [2], [0, 0, 0, 1, 1, 2], [0], [0]>} : vector<4x8x8xbf16>, vector<4x8x8xbf16>, vector<4x8x8xf32> -> vector<4x8x8xf32>
    "tpu.trace_stop"() : () -> ()
    %c0_25 = arith.constant 0 : index
    %c0_26 = arith.constant 0 : index
    %87 = vector.load %arg8[%c0_25, %c0_26] : memref<1x32xf32, #tpu.memory_space<vmem>>, vector<1x32xf32>
    %88 = vector.extract_strided_slice %86 {offsets = [0, 0, 0], sizes = [1, 8, 8], strides = [1, 1, 1]} : vector<4x8x8xf32> to vector<1x8x8xf32>
    %89 = vector.shape_cast %88 : vector<1x8x8xf32> to vector<8x8xf32>
    %90 = arith.truncf %89 : vector<8x8xf32> to vector<8x8xbf16>
    %c0_27 = arith.constant 0 : index
    %c0_28 = arith.constant 0 : index
    %c0_29 = arith.constant 0 : index
    %91 = vector.load %arg7[%c0_27, %c0_28, %c0_29] : memref<4x8x32xbf16, #tpu.memory_space<vmem>>, vector<1x8x32xbf16>
    %92 = vector.shape_cast %91 : vector<1x8x32xbf16> to vector<8x32xbf16>
    %cst_30 = arith.constant dense<0.000000e+00> : vector<8x32xf32>
    %93 = tpu.matmul %90, %92, %cst_30 {dimension_numbers = #tpu.dot_dimension_numbers<[1], [0], [0], [1], [0, 0, 1, 1], [], []>} : vector<8x8xbf16>, vector<8x32xbf16>, vector<8x32xf32> -> vector<8x32xf32>
    %94 = vector.broadcast %87 : vector<1x32xf32> to vector<8x32xf32>
    %95 = arith.addf %94, %93 : vector<8x32xf32>
    %96 = vector.extract_strided_slice %86 {offsets = [1, 0, 0], sizes = [1, 8, 8], strides = [1, 1, 1]} : vector<4x8x8xf32> to vector<1x8x8xf32>
    %97 = vector.shape_cast %96 : vector<1x8x8xf32> to vector<8x8xf32>
    %98 = arith.truncf %97 : vector<8x8xf32> to vector<8x8xbf16>
    %c1 = arith.constant 1 : index
    %c0_31 = arith.constant 0 : index
    %c0_32 = arith.constant 0 : index
    %99 = vector.load %arg7[%c1, %c0_31, %c0_32] : memref<4x8x32xbf16, #tpu.memory_space<vmem>>, vector<1x8x32xbf16>
    %100 = vector.shape_cast %99 : vector<1x8x32xbf16> to vector<8x32xbf16>
    %cst_33 = arith.constant dense<0.000000e+00> : vector<8x32xf32>
    %101 = tpu.matmul %98, %100, %cst_33 {dimension_numbers = #tpu.dot_dimension_numbers<[1], [0], [0], [1], [0, 0, 1, 1], [], []>} : vector<8x8xbf16>, vector<8x32xbf16>, vector<8x32xf32> -> vector<8x32xf32>
    %102 = arith.addf %95, %101 : vector<8x32xf32>
    %103 = vector.extract_strided_slice %86 {offsets = [2, 0, 0], sizes = [1, 8, 8], strides = [1, 1, 1]} : vector<4x8x8xf32> to vector<1x8x8xf32>
    %104 = vector.shape_cast %103 : vector<1x8x8xf32> to vector<8x8xf32>
    %105 = arith.truncf %104 : vector<8x8xf32> to vector<8x8xbf16>
    %c2 = arith.constant 2 : index
    %c0_34 = arith.constant 0 : index
    %c0_35 = arith.constant 0 : index
    %106 = vector.load %arg7[%c2, %c0_34, %c0_35] : memref<4x8x32xbf16, #tpu.memory_space<vmem>>, vector<1x8x32xbf16>
    %107 = vector.shape_cast %106 : vector<1x8x32xbf16> to vector<8x32xbf16>
    %cst_36 = arith.constant dense<0.000000e+00> : vector<8x32xf32>
    %108 = tpu.matmul %105, %107, %cst_36 {dimension_numbers = #tpu.dot_dimension_numbers<[1], [0], [0], [1], [0, 0, 1, 1], [], []>} : vector<8x8xbf16>, vector<8x32xbf16>, vector<8x32xf32> -> vector<8x32xf32>
    %109 = arith.addf %102, %108 : vector<8x32xf32>
    %110 = vector.extract_strided_slice %86 {offsets = [3, 0, 0], sizes = [1, 8, 8], strides = [1, 1, 1]} : vector<4x8x8xf32> to vector<1x8x8xf32>
    %111 = vector.shape_cast %110 : vector<1x8x8xf32> to vector<8x8xf32>
    %112 = arith.truncf %111 : vector<8x8xf32> to vector<8x8xbf16>
    %c3 = arith.constant 3 : index
    %c0_37 = arith.constant 0 : index
    %c0_38 = arith.constant 0 : index
    %113 = vector.load %arg7[%c3, %c0_37, %c0_38] : memref<4x8x32xbf16, #tpu.memory_space<vmem>>, vector<1x8x32xbf16>
    %114 = vector.shape_cast %113 : vector<1x8x32xbf16> to vector<8x32xbf16>
    %cst_39 = arith.constant dense<0.000000e+00> : vector<8x32xf32>
    %115 = tpu.matmul %112, %114, %cst_39 {dimension_numbers = #tpu.dot_dimension_numbers<[1], [0], [0], [1], [0, 0, 1, 1], [], []>} : vector<8x8xbf16>, vector<8x32xbf16>, vector<8x32xf32> -> vector<8x32xf32>
    %116 = arith.addf %109, %115 : vector<8x32xf32>
    %117 = arith.addf %1, %116 : vector<8x32xf32>
    %c0_40 = arith.constant 0 : index
    %c0_41 = arith.constant 0 : index
    %c0_42 = arith.constant 0 : index
    %118 = vector.load %arg9[%c0_40, %c0_41, %c0_42] : memref<1x8x32xf32, #tpu.memory_space<vmem>>, vector<1x8x32xf32>
    %119 = vector.shape_cast %118 : vector<1x8x32xf32> to vector<8x32xf32>
    %120 = vector.shape_cast %117 : vector<8x32xf32> to vector<1x8x32xf32>
    tpu.vector_store %arg9[%c0_40, %c0_41, %c0_42], %120 {strides = array<i32>} : memref<1x8x32xf32, #tpu.memory_space<vmem>>, vector<1x8x32xf32>,
    return
  }
  func.func @transform_0(%arg0: i32) -> (i32, i32, i32) {
    %c0_i32 = arith.constant 0 : i32
    %c0_i32_0 = arith.constant 0 : i32
    %c0_i32_1 = arith.constant 0 : i32
    return %arg0, %c0_i32, %c0_i32_0 : i32, i32, i32
  }
  func.func @transform_1(%arg0: i32) -> (i32, i32, i32, i32) {
    %c0_i32 = arith.constant 0 : i32
    %c0_i32_0 = arith.constant 0 : i32
    %c0_i32_1 = arith.constant 0 : i32
    %c0_i32_2 = arith.constant 0 : i32
    return %arg0, %c0_i32, %c0_i32_0, %c0_i32_1 : i32, i32, i32, i32
  }
  func.func @transform_2(%arg0: i32) -> (i32, i32) {
    %c0_i32 = arith.constant 0 : i32
    %c0_i32_0 = arith.constant 0 : i32
    %c0_i32_1 = arith.constant 0 : i32
    return %c0_i32, %c0_i32_0 : i32, i32
  }
  func.func @transform_3(%arg0: i32) -> (i32, i32) {
    %c0_i32 = arith.constant 0 : i32
    %c0_i32_0 = arith.constant 0 : i32
    %c0_i32_1 = arith.constant 0 : i32
    return %c0_i32, %c0_i32_0 : i32, i32
  }
  func.func @transform_4(%arg0: i32) -> (i32, i32) {
    %c0_i32 = arith.constant 0 : i32
    %c0_i32_0 = arith.constant 0 : i32
    %c0_i32_1 = arith.constant 0 : i32
    return %c0_i32, %c0_i32_0 : i32, i32
  }
  func.func @transform_5(%arg0: i32) -> (i32, i32) {
    %c0_i32 = arith.constant 0 : i32
    %c0_i32_0 = arith.constant 0 : i32
    %c0_i32_1 = arith.constant 0 : i32
    return %c0_i32, %c0_i32_0 : i32, i32
  }
  func.func @transform_6(%arg0: i32) -> (i32, i32, i32) {
    %c0_i32 = arith.constant 0 : i32
    %c0_i32_0 = arith.constant 0 : i32
    %c0_i32_1 = arith.constant 0 : i32
    %c0_i32_2 = arith.constant 0 : i32
    return %c0_i32, %c0_i32_0, %c0_i32_1 : i32, i32, i32
  }
  func.func @transform_7(%arg0: i32) -> (i32, i32) {
    %c0_i32 = arith.constant 0 : i32
    %c0_i32_0 = arith.constant 0 : i32
    %c0_i32_1 = arith.constant 0 : i32
    return %c0_i32, %c0_i32_0 : i32, i32
  }
  func.func @transform_8(%arg0: i32) -> (i32, i32, i32) {
    %c0_i32 = arith.constant 0 : i32
    %c0_i32_0 = arith.constant 0 : i32
    %c0_i32_1 = arith.constant 0 : i32
    return %arg0, %c0_i32, %c0_i32_0 : i32, i32, i32
  }
}

module attributes {stable_mosaic.version = 11 : i64} {
  func.func @_cross_attn_kernel(%arg0: i32, %arg1: memref<1x8x32xf32, #tpu.memory_space<vmem>>, %arg2: memref<1x12x32xf32, #tpu.memory_space<vmem>>, %arg3: memref<1x1x1x12xbf16, #tpu.memory_space<vmem>>, %arg4: memref<1x32xf32, #tpu.memory_space<vmem>>, %arg5: memref<1x32xf32, #tpu.memory_space<vmem>>, %arg6: memref<32x32xbf16, #tpu.memory_space<vmem>>, %arg7: memref<1x32xf32, #tpu.memory_space<vmem>>, %arg8: memref<32x64xbf16, #tpu.memory_space<vmem>>, %arg9: memref<1x64xf32, #tpu.memory_space<vmem>>, %arg10: memref<4x8x32xbf16, #tpu.memory_space<vmem>>, %arg11: memref<1x32xf32, #tpu.memory_space<vmem>>, %arg12: memref<1x8x32xf32, #tpu.memory_space<vmem>>) attributes {dimension_semantics = [#tpu.dimension_semantics<parallel>], iteration_bounds = array<i64: 2>, scalar_prefetch = 0 : i64, scratch_operands = 0 : i64, tpu.core_type = #tpu.core_type<tc>, window_params = [{transform_indices = @transform_0, window_bounds = array<i64: 1, 8, 32>}, {transform_indices = @transform_1, window_bounds = array<i64: 1, 12, 32>}, {transform_indices = @transform_2, window_bounds = array<i64: 1, 1, 1, 12>}, {pipeline_mode = #tpu.pipeline_mode<synchronous>, transform_indices = @transform_3, window_bounds = array<i64: 1, 32>}, {pipeline_mode = #tpu.pipeline_mode<synchronous>, transform_indices = @transform_4, window_bounds = array<i64: 1, 32>}, {pipeline_mode = #tpu.pipeline_mode<synchronous>, transform_indices = @transform_5, window_bounds = array<i64: 32, 32>}, {pipeline_mode = #tpu.pipeline_mode<synchronous>, transform_indices = @transform_6, window_bounds = array<i64: 1, 32>}, {pipeline_mode = #tpu.pipeline_mode<synchronous>, transform_indices = @transform_7, window_bounds = array<i64: 32, 64>}, {pipeline_mode = #tpu.pipeline_mode<synchronous>, transform_indices = @transform_8, window_bounds = array<i64: 1, 64>}, {pipeline_mode = #tpu.pipeline_mode<synchronous>, transform_indices = @transform_9, window_bounds = array<i64: 4, 8, 32>}, {pipeline_mode = #tpu.pipeline_mode<synchronous>, transform_indices = @transform_10, window_bounds = array<i64: 1, 32>}, {transform_indices = @transform_11, window_bounds = array<i64: 1, 8, 32>}]} {
    %c0 = arith.constant 0 : index
    %c0_0 = arith.constant 0 : index
    %c0_1 = arith.constant 0 : index
    %0 = vector.load %arg1[%c0, %c0_0, %c0_1] : memref<1x8x32xf32, #tpu.memory_space<vmem>>, vector<1x8x32xf32>
    %1 = vector.shape_cast %0 : vector<1x8x32xf32> to vector<8x32xf32>
    %c0_2 = arith.constant 0 : index
    %c0_3 = arith.constant 0 : index
    %2 = vector.load %arg4[%c0_2, %c0_3] : memref<1x32xf32, #tpu.memory_space<vmem>>, vector<1x32xf32>
    %c0_4 = arith.constant 0 : index
    %c0_5 = arith.constant 0 : index
    %3 = vector.load %arg5[%c0_4, %c0_5] : memref<1x32xf32, #tpu.memory_space<vmem>>, vector<1x32xf32>
    %cst = arith.constant dense<0.000000e+00> : vector<8xf32>
    %4 = vector.multi_reduction <add>, %1, %cst [1] : vector<8x32xf32> to vector<8xf32>
    %5 = vector.shape_cast %4 : vector<8xf32> to vector<8x1xf32>
    %cst_6 = arith.constant 3.200000e+01 : f32
    %6 = vector.broadcast %cst_6 : f32 to vector<8x1xf32>
    %7 = arith.divf %5, %6 : vector<8x1xf32>
    %8 = vector.broadcast %7 : vector<8x1xf32> to vector<8x32xf32>
    %9 = arith.subf %1, %8 : vector<8x32xf32>
    %10 = arith.mulf %9, %9 : vector<8x32xf32>
    %cst_7 = arith.constant dense<0.000000e+00> : vector<8xf32>
    %11 = vector.multi_reduction <add>, %10, %cst_7 [1] : vector<8x32xf32> to vector<8xf32>
    %12 = vector.shape_cast %11 : vector<8xf32> to vector<8x1xf32>
    %cst_8 = arith.constant 3.200000e+01 : f32
    %13 = vector.broadcast %cst_8 : f32 to vector<8x1xf32>
    %14 = arith.divf %12, %13 : vector<8x1xf32>
    %15 = vector.broadcast %7 : vector<8x1xf32> to vector<8x32xf32>
    %16 = arith.subf %1, %15 : vector<8x32xf32>
    %cst_9 = arith.constant 9.99999974E-6 : f32
    %17 = vector.broadcast %cst_9 : f32 to vector<8x1xf32>
    %18 = arith.addf %14, %17 : vector<8x1xf32>
    %19 = math.rsqrt %18 : vector<8x1xf32>
    %20 = vector.broadcast %19 : vector<8x1xf32> to vector<8x32xf32>
    %21 = arith.mulf %16, %20 : vector<8x32xf32>
    %22 = vector.broadcast %2 : vector<1x32xf32> to vector<8x32xf32>
    %23 = arith.mulf %21, %22 : vector<8x32xf32>
    %24 = vector.broadcast %3 : vector<1x32xf32> to vector<8x32xf32>
    %25 = arith.addf %23, %24 : vector<8x32xf32>
    %26 = arith.truncf %25 : vector<8x32xf32> to vector<8x32xbf16>
    %c0_10 = arith.constant 0 : index
    %c0_11 = arith.constant 0 : index
    %27 = vector.load %arg6[%c0_10, %c0_11] : memref<32x32xbf16, #tpu.memory_space<vmem>>, vector<32x32xbf16>
    %cst_12 = arith.constant dense<0.000000e+00> : vector<8x32xf32>
    %28 = tpu.matmul %26, %27, %cst_12 {dimension_numbers = #tpu.dot_dimension_numbers<[1], [0], [0], [1], [0, 0, 1, 1], [], []>} : vector<8x32xbf16>, vector<32x32xbf16>, vector<8x32xf32> -> vector<8x32xf32>
    %c0_13 = arith.constant 0 : index
    %c0_14 = arith.constant 0 : index
    %29 = vector.load %arg7[%c0_13, %c0_14] : memref<1x32xf32, #tpu.memory_space<vmem>>, vector<1x32xf32>
    %30 = vector.broadcast %29 : vector<1x32xf32> to vector<8x32xf32>
    %31 = arith.addf %28, %30 : vector<8x32xf32>
    %c0_15 = arith.constant 0 : index
    %c0_16 = arith.constant 0 : index
    %c0_17 = arith.constant 0 : index
    %32 = vector.load %arg2[%c0_15, %c0_16, %c0_17] : memref<1x12x32xf32, #tpu.memory_space<vmem>>, vector<1x12x32xf32>
    %33 = vector.shape_cast %32 : vector<1x12x32xf32> to vector<12x32xf32>
    %34 = arith.truncf %33 : vector<12x32xf32> to vector<12x32xbf16>
    %c0_18 = arith.constant 0 : index
    %c0_19 = arith.constant 0 : index
    %35 = vector.load %arg8[%c0_18, %c0_19] : memref<32x64xbf16, #tpu.memory_space<vmem>>, vector<32x64xbf16>
    %cst_20 = arith.constant dense<0.000000e+00> : vector<12x64xf32>
    %36 = tpu.matmul %34, %35, %cst_20 {dimension_numbers = #tpu.dot_dimension_numbers<[1], [0], [0], [1], [0, 0, 1, 1], [], []>} : vector<12x32xbf16>, vector<32x64xbf16>, vector<12x64xf32> -> vector<12x64xf32>
    %c0_21 = arith.constant 0 : index
    %c0_22 = arith.constant 0 : index
    %37 = vector.load %arg9[%c0_21, %c0_22] : memref<1x64xf32, #tpu.memory_space<vmem>>, vector<1x64xf32>
    %38 = vector.broadcast %37 : vector<1x64xf32> to vector<12x64xf32>
    %39 = arith.addf %36, %38 : vector<12x64xf32>
    %40 = vector.extract_strided_slice %39 {offsets = [0, 0], sizes = [12, 32], strides = [1, 1]} : vector<12x64xf32> to vector<12x32xf32>
    %41 = vector.extract_strided_slice %39 {offsets = [0, 32], sizes = [12, 32], strides = [1, 1]} : vector<12x64xf32> to vector<12x32xf32>
    %c0_23 = arith.constant 0 : index
    %c0_24 = arith.constant 0 : index
    %c0_25 = arith.constant 0 : index
    %c0_26 = arith.constant 0 : index
    %42 = vector.load %arg3[%c0_23, %c0_24, %c0_25, %c0_26] : memref<1x1x1x12xbf16, #tpu.memory_space<vmem>>, vector<1x1x1x12xbf16>
    %43 = vector.shape_cast %42 : vector<1x1x1x12xbf16> to vector<1x12xbf16>
    %cst_27 = arith.constant 0.000000e+00 : bf16
    %44 = vector.broadcast %cst_27 : bf16 to vector<1x12xbf16>
    %45 = arith.cmpf one, %43, %44 : vector<1x12xbf16>
    %46 = arith.truncf %31 : vector<8x32xf32> to vector<8x32xbf16>
    %47 = arith.truncf %40 : vector<12x32xf32> to vector<12x32xbf16>
    %48 = arith.truncf %41 : vector<12x32xf32> to vector<12x32xbf16>
    %49 = vector.extract_strided_slice %46 {offsets = [0, 0], sizes = [8, 8], strides = [1, 1]} : vector<8x32xbf16> to vector<8x8xbf16>
    %50 = vector.extract_strided_slice %46 {offsets = [0, 8], sizes = [8, 8], strides = [1, 1]} : vector<8x32xbf16> to vector<8x8xbf16>
    %51 = vector.extract_strided_slice %46 {offsets = [0, 16], sizes = [8, 8], strides = [1, 1]} : vector<8x32xbf16> to vector<8x8xbf16>
    %52 = vector.extract_strided_slice %46 {offsets = [0, 24], sizes = [8, 8], strides = [1, 1]} : vector<8x32xbf16> to vector<8x8xbf16>
    %53 = vector.shape_cast %49 : vector<8x8xbf16> to vector<1x8x8xbf16>
    %54 = vector.shape_cast %50 : vector<8x8xbf16> to vector<1x8x8xbf16>
    %55 = vector.shape_cast %51 : vector<8x8xbf16> to vector<1x8x8xbf16>
    %56 = vector.shape_cast %52 : vector<8x8xbf16> to vector<1x8x8xbf16>
    %57 = tpu.concatenate %53, %54, %55, %56 in 0 : vector<1x8x8xbf16>, vector<1x8x8xbf16>, vector<1x8x8xbf16>, vector<1x8x8xbf16> -> vector<4x8x8xbf16>
    %58 = vector.extract_strided_slice %47 {offsets = [0, 0], sizes = [12, 8], strides = [1, 1]} : vector<12x32xbf16> to vector<12x8xbf16>
    %59 = vector.extract_strided_slice %47 {offsets = [0, 8], sizes = [12, 8], strides = [1, 1]} : vector<12x32xbf16> to vector<12x8xbf16>
    %60 = vector.extract_strided_slice %47 {offsets = [0, 16], sizes = [12, 8], strides = [1, 1]} : vector<12x32xbf16> to vector<12x8xbf16>
    %61 = vector.extract_strided_slice %47 {offsets = [0, 24], sizes = [12, 8], strides = [1, 1]} : vector<12x32xbf16> to vector<12x8xbf16>
    %62 = vector.shape_cast %58 : vector<12x8xbf16> to vector<1x12x8xbf16>
    %63 = vector.shape_cast %59 : vector<12x8xbf16> to vector<1x12x8xbf16>
    %64 = vector.shape_cast %60 : vector<12x8xbf16> to vector<1x12x8xbf16>
    %65 = vector.shape_cast %61 : vector<12x8xbf16> to vector<1x12x8xbf16>
    %66 = tpu.concatenate %62, %63, %64, %65 in 0 : vector<1x12x8xbf16>, vector<1x12x8xbf16>, vector<1x12x8xbf16>, vector<1x12x8xbf16> -> vector<4x12x8xbf16>
    %67 = vector.extract_strided_slice %48 {offsets = [0, 0], sizes = [12, 8], strides = [1, 1]} : vector<12x32xbf16> to vector<12x8xbf16>
    %68 = vector.extract_strided_slice %48 {offsets = [0, 8], sizes = [12, 8], strides = [1, 1]} : vector<12x32xbf16> to vector<12x8xbf16>
    %69 = vector.extract_strided_slice %48 {offsets = [0, 16], sizes = [12, 8], strides = [1, 1]} : vector<12x32xbf16> to vector<12x8xbf16>
    %70 = vector.extract_strided_slice %48 {offsets = [0, 24], sizes = [12, 8], strides = [1, 1]} : vector<12x32xbf16> to vector<12x8xbf16>
    %71 = vector.shape_cast %67 : vector<12x8xbf16> to vector<1x12x8xbf16>
    %72 = vector.shape_cast %68 : vector<12x8xbf16> to vector<1x12x8xbf16>
    %73 = vector.shape_cast %69 : vector<12x8xbf16> to vector<1x12x8xbf16>
    %74 = vector.shape_cast %70 : vector<12x8xbf16> to vector<1x12x8xbf16>
    %75 = tpu.concatenate %71, %72, %73, %74 in 0 : vector<1x12x8xbf16>, vector<1x12x8xbf16>, vector<1x12x8xbf16>, vector<1x12x8xbf16> -> vector<4x12x8xbf16>
    "tpu.trace_start"() <{level = 10 : i32, message = "hqd,hkd->hqk"}> : () -> ()
    %cst_28 = arith.constant dense<0.000000e+00> : vector<4x8x12xf32>
    %76 = tpu.matmul %57, %66, %cst_28 {dimension_numbers = #tpu.dot_dimension_numbers<[2], [2], [1], [1], [0, 0, 0, 1, 1, 1], [0], [0]>} : vector<4x8x8xbf16>, vector<4x12x8xbf16>, vector<4x8x12xf32> -> vector<4x8x12xf32>
    "tpu.trace_stop"() : () -> ()
    %77 = vector.shape_cast %45 : vector<1x12xi1> to vector<1x1x12xi1>
    %cst_29 = arith.constant -6.550000e+04 : f32
    %78 = vector.shape_cast %77 : vector<1x1x12xi1> to vector<1x1x12xi1>
    %79 = vector.broadcast %78 : vector<1x1x12xi1> to vector<4x8x12xi1>
    %80 = vector.broadcast %cst_29 : f32 to vector<4x8x12xf32>
    %81 = arith.select %79, %76, %80 : vector<4x8x12xi1>, vector<4x8x12xf32>
    %cst_30 = arith.constant dense<0xFF800000> : vector<4x8xf32>
    %82 = vector.multi_reduction <maximumf>, %81, %cst_30 [2] : vector<4x8x12xf32> to vector<4x8xf32>
    %83 = vector.shape_cast %82 : vector<4x8xf32> to vector<4x8x1xf32>
    %84 = vector.broadcast %83 : vector<4x8x1xf32> to vector<4x8x12xf32>
    %85 = arith.subf %81, %84 : vector<4x8x12xf32>
    %86 = math.exp %85 : vector<4x8x12xf32>
    %cst_31 = arith.constant dense<0.000000e+00> : vector<4x8xf32>
    %87 = vector.multi_reduction <add>, %86, %cst_31 [2] : vector<4x8x12xf32> to vector<4x8xf32>
    %88 = vector.shape_cast %87 : vector<4x8xf32> to vector<4x8x1xf32>
    %89 = tpu.reciprocal %88 {approx = true} : vector<4x8x1xf32> -> vector<4x8x1xf32>
    %90 = vector.broadcast %89 : vector<4x8x1xf32> to vector<4x8x12xf32>
    %91 = arith.mulf %86, %90 : vector<4x8x12xf32>
    %92 = arith.truncf %91 : vector<4x8x12xf32> to vector<4x8x12xbf16>
    "tpu.trace_start"() <{level = 10 : i32, message = "hqk,hkd->hqd"}> : () -> ()
    %cst_32 = arith.constant dense<0.000000e+00> : vector<4x8x8xf32>
    %93 = tpu.matmul %92, %75, %cst_32 {dimension_numbers = #tpu.dot_dimension_numbers<[2], [1], [1], [2], [0, 0, 0, 1, 1, 2], [0], [0]>} : vector<4x8x12xbf16>, vector<4x12x8xbf16>, vector<4x8x8xf32> -> vector<4x8x8xf32>
    "tpu.trace_stop"() : () -> ()
    %c0_33 = arith.constant 0 : index
    %c0_34 = arith.constant 0 : index
    %94 = vector.load %arg11[%c0_33, %c0_34] : memref<1x32xf32, #tpu.memory_space<vmem>>, vector<1x32xf32>
    %95 = vector.extract_strided_slice %93 {offsets = [0, 0, 0], sizes = [1, 8, 8], strides = [1, 1, 1]} : vector<4x8x8xf32> to vector<1x8x8xf32>
    %96 = vector.shape_cast %95 : vector<1x8x8xf32> to vector<8x8xf32>
    %97 = arith.truncf %96 : vector<8x8xf32> to vector<8x8xbf16>
    %c0_35 = arith.constant 0 : index
    %c0_36 = arith.constant 0 : index
    %c0_37 = arith.constant 0 : index
    %98 = vector.load %arg10[%c0_35, %c0_36, %c0_37] : memref<4x8x32xbf16, #tpu.memory_space<vmem>>, vector<1x8x32xbf16>
    %99 = vector.shape_cast %98 : vector<1x8x32xbf16> to vector<8x32xbf16>
    %cst_38 = arith.constant dense<0.000000e+00> : vector<8x32xf32>
    %100 = tpu.matmul %97, %99, %cst_38 {dimension_numbers = #tpu.dot_dimension_numbers<[1], [0], [0], [1], [0, 0, 1, 1], [], []>} : vector<8x8xbf16>, vector<8x32xbf16>, vector<8x32xf32> -> vector<8x32xf32>
    %101 = vector.broadcast %94 : vector<1x32xf32> to vector<8x32xf32>
    %102 = arith.addf %101, %100 : vector<8x32xf32>
    %103 = vector.extract_strided_slice %93 {offsets = [1, 0, 0], sizes = [1, 8, 8], strides = [1, 1, 1]} : vector<4x8x8xf32> to vector<1x8x8xf32>
    %104 = vector.shape_cast %103 : vector<1x8x8xf32> to vector<8x8xf32>
    %105 = arith.truncf %104 : vector<8x8xf32> to vector<8x8xbf16>
    %c1 = arith.constant 1 : index
    %c0_39 = arith.constant 0 : index
    %c0_40 = arith.constant 0 : index
    %106 = vector.load %arg10[%c1, %c0_39, %c0_40] : memref<4x8x32xbf16, #tpu.memory_space<vmem>>, vector<1x8x32xbf16>
    %107 = vector.shape_cast %106 : vector<1x8x32xbf16> to vector<8x32xbf16>
    %cst_41 = arith.constant dense<0.000000e+00> : vector<8x32xf32>
    %108 = tpu.matmul %105, %107, %cst_41 {dimension_numbers = #tpu.dot_dimension_numbers<[1], [0], [0], [1], [0, 0, 1, 1], [], []>} : vector<8x8xbf16>, vector<8x32xbf16>, vector<8x32xf32> -> vector<8x32xf32>
    %109 = arith.addf %102, %108 : vector<8x32xf32>
    %110 = vector.extract_strided_slice %93 {offsets = [2, 0, 0], sizes = [1, 8, 8], strides = [1, 1, 1]} : vector<4x8x8xf32> to vector<1x8x8xf32>
    %111 = vector.shape_cast %110 : vector<1x8x8xf32> to vector<8x8xf32>
    %112 = arith.truncf %111 : vector<8x8xf32> to vector<8x8xbf16>
    %c2 = arith.constant 2 : index
    %c0_42 = arith.constant 0 : index
    %c0_43 = arith.constant 0 : index
    %113 = vector.load %arg10[%c2, %c0_42, %c0_43] : memref<4x8x32xbf16, #tpu.memory_space<vmem>>, vector<1x8x32xbf16>
    %114 = vector.shape_cast %113 : vector<1x8x32xbf16> to vector<8x32xbf16>
    %cst_44 = arith.constant dense<0.000000e+00> : vector<8x32xf32>
    %115 = tpu.matmul %112, %114, %cst_44 {dimension_numbers = #tpu.dot_dimension_numbers<[1], [0], [0], [1], [0, 0, 1, 1], [], []>} : vector<8x8xbf16>, vector<8x32xbf16>, vector<8x32xf32> -> vector<8x32xf32>
    %116 = arith.addf %109, %115 : vector<8x32xf32>
    %117 = vector.extract_strided_slice %93 {offsets = [3, 0, 0], sizes = [1, 8, 8], strides = [1, 1, 1]} : vector<4x8x8xf32> to vector<1x8x8xf32>
    %118 = vector.shape_cast %117 : vector<1x8x8xf32> to vector<8x8xf32>
    %119 = arith.truncf %118 : vector<8x8xf32> to vector<8x8xbf16>
    %c3 = arith.constant 3 : index
    %c0_45 = arith.constant 0 : index
    %c0_46 = arith.constant 0 : index
    %120 = vector.load %arg10[%c3, %c0_45, %c0_46] : memref<4x8x32xbf16, #tpu.memory_space<vmem>>, vector<1x8x32xbf16>
    %121 = vector.shape_cast %120 : vector<1x8x32xbf16> to vector<8x32xbf16>
    %cst_47 = arith.constant dense<0.000000e+00> : vector<8x32xf32>
    %122 = tpu.matmul %119, %121, %cst_47 {dimension_numbers = #tpu.dot_dimension_numbers<[1], [0], [0], [1], [0, 0, 1, 1], [], []>} : vector<8x8xbf16>, vector<8x32xbf16>, vector<8x32xf32> -> vector<8x32xf32>
    %123 = arith.addf %116, %122 : vector<8x32xf32>
    %124 = arith.addf %1, %123 : vector<8x32xf32>
    %c0_48 = arith.constant 0 : index
    %c0_49 = arith.constant 0 : index
    %c0_50 = arith.constant 0 : index
    %125 = vector.load %arg12[%c0_48, %c0_49, %c0_50] : memref<1x8x32xf32, #tpu.memory_space<vmem>>, vector<1x8x32xf32>
    %126 = vector.shape_cast %125 : vector<1x8x32xf32> to vector<8x32xf32>
    %127 = vector.shape_cast %124 : vector<8x32xf32> to vector<1x8x32xf32>
    tpu.vector_store %arg12[%c0_48, %c0_49, %c0_50], %127 {strides = array<i32>} : memref<1x8x32xf32, #tpu.memory_space<vmem>>, vector<1x8x32xf32>,
    return
  }
  func.func @transform_0(%arg0: i32) -> (i32, i32, i32) {
    %c0_i32 = arith.constant 0 : i32
    %c0_i32_0 = arith.constant 0 : i32
    %c0_i32_1 = arith.constant 0 : i32
    return %arg0, %c0_i32, %c0_i32_0 : i32, i32, i32
  }
  func.func @transform_1(%arg0: i32) -> (i32, i32, i32) {
    %c0_i32 = arith.constant 0 : i32
    %c0_i32_0 = arith.constant 0 : i32
    %c0_i32_1 = arith.constant 0 : i32
    return %arg0, %c0_i32, %c0_i32_0 : i32, i32, i32
  }
  func.func @transform_2(%arg0: i32) -> (i32, i32, i32, i32) {
    %c0_i32 = arith.constant 0 : i32
    %c0_i32_0 = arith.constant 0 : i32
    %c0_i32_1 = arith.constant 0 : i32
    %c0_i32_2 = arith.constant 0 : i32
    return %arg0, %c0_i32, %c0_i32_0, %c0_i32_1 : i32, i32, i32, i32
  }
  func.func @transform_3(%arg0: i32) -> (i32, i32) {
    %c0_i32 = arith.constant 0 : i32
    %c0_i32_0 = arith.constant 0 : i32
    %c0_i32_1 = arith.constant 0 : i32
    return %c0_i32, %c0_i32_0 : i32, i32
  }
  func.func @transform_4(%arg0: i32) -> (i32, i32) {
    %c0_i32 = arith.constant 0 : i32
    %c0_i32_0 = arith.constant 0 : i32
    %c0_i32_1 = arith.constant 0 : i32
    return %c0_i32, %c0_i32_0 : i32, i32
  }
  func.func @transform_5(%arg0: i32) -> (i32, i32) {
    %c0_i32 = arith.constant 0 : i32
    %c0_i32_0 = arith.constant 0 : i32
    %c0_i32_1 = arith.constant 0 : i32
    return %c0_i32, %c0_i32_0 : i32, i32
  }
  func.func @transform_6(%arg0: i32) -> (i32, i32) {
    %c0_i32 = arith.constant 0 : i32
    %c0_i32_0 = arith.constant 0 : i32
    %c0_i32_1 = arith.constant 0 : i32
    return %c0_i32, %c0_i32_0 : i32, i32
  }
  func.func @transform_7(%arg0: i32) -> (i32, i32) {
    %c0_i32 = arith.constant 0 : i32
    %c0_i32_0 = arith.constant 0 : i32
    %c0_i32_1 = arith.constant 0 : i32
    return %c0_i32, %c0_i32_0 : i32, i32
  }
  func.func @transform_8(%arg0: i32) -> (i32, i32) {
    %c0_i32 = arith.constant 0 : i32
    %c0_i32_0 = arith.constant 0 : i32
    %c0_i32_1 = arith.constant 0 : i32
    return %c0_i32, %c0_i32_0 : i32, i32
  }
  func.func @transform_9(%arg0: i32) -> (i32, i32, i32) {
    %c0_i32 = arith.constant 0 : i32
    %c0_i32_0 = arith.constant 0 : i32
    %c0_i32_1 = arith.constant 0 : i32
    %c0_i32_2 = arith.constant 0 : i32
    return %c0_i32, %c0_i32_0, %c0_i32_1 : i32, i32, i32
  }
  func.func @transform_10(%arg0: i32) -> (i32, i32) {
    %c0_i32 = arith.constant 0 : i32
    %c0_i32_0 = arith.constant 0 : i32
    %c0_i32_1 = arith.constant 0 : i32
    return %c0_i32, %c0_i32_0 : i32, i32
  }
  func.func @transform_11(%arg0: i32) -> (i32, i32, i32) {
    %c0_i32 = arith.constant 0 : i32
    %c0_i32_0 = arith.constant 0 : i32
    %c0_i32_1 = arith.constant 0 : i32
    return %arg0, %c0_i32, %c0_i32_0 : i32, i32, i32
  }
}

module attributes {stable_mosaic.version = 11 : i64} {
  func.func @_ffn_kernel(%arg0: i32, %arg1: i32, %arg2: memref<16x32xf32, #tpu.memory_space<vmem>>, %arg3: memref<1x32xf32, #tpu.memory_space<vmem>>, %arg4: memref<1x32xf32, #tpu.memory_space<vmem>>, %arg5: memref<32x64xbf16, #tpu.memory_space<vmem>>, %arg6: memref<1x64xf32, #tpu.memory_space<vmem>>, %arg7: memref<64x32xbf16, #tpu.memory_space<vmem>>, %arg8: memref<1x32xf32, #tpu.memory_space<vmem>>, %arg9: memref<16x32xf32, #tpu.memory_space<vmem>>, %arg10: memref<16x32xbf16, #tpu.memory_space<vmem>>) attributes {dimension_semantics = [#tpu.dimension_semantics<parallel>, #tpu.dimension_semantics<arbitrary>], iteration_bounds = array<i64: 1, 1>, scalar_prefetch = 0 : i64, scratch_operands = 1 : i64, tpu.core_type = #tpu.core_type<tc>, window_params = [{transform_indices = @transform_0, window_bounds = array<i64: 16, 32>}, {pipeline_mode = #tpu.pipeline_mode<synchronous>, transform_indices = @transform_1, window_bounds = array<i64: 1, 32>}, {pipeline_mode = #tpu.pipeline_mode<synchronous>, transform_indices = @transform_2, window_bounds = array<i64: 1, 32>}, {transform_indices = @transform_3, window_bounds = array<i64: 32, 64>}, {transform_indices = @transform_4, window_bounds = array<i64: 1, 64>}, {transform_indices = @transform_5, window_bounds = array<i64: 64, 32>}, {pipeline_mode = #tpu.pipeline_mode<synchronous>, transform_indices = @transform_6, window_bounds = array<i64: 1, 32>}, {transform_indices = @transform_7, window_bounds = array<i64: 16, 32>}]} {
    %c0_i32 = arith.constant 0 : i32
    %0 = arith.cmpi eq, %arg1, %c0_i32 : i32
    %1 = arith.extui %0 : i1 to i32
    %c0_i32_0 = arith.constant 0 : i32
    %2 = arith.cmpi ne, %1, %c0_i32_0 : i32
    scf.if %2 {
      %c0_14 = arith.constant 0 : index
      %c0_15 = arith.constant 0 : index
      %17 = vector.load %arg2[%c0_14, %c0_15] : memref<16x32xf32, #tpu.memory_space<vmem>>, vector<16x32xf32>
      %c0_16 = arith.constant 0 : index
      %c0_17 = arith.constant 0 : index
      %18 = vector.load %arg3[%c0_16, %c0_17] : memref<1x32xf32, #tpu.memory_space<vmem>>, vector<1x32xf32>
      %c0_18 = arith.constant 0 : index
      %c0_19 = arith.constant 0 : index
      %19 = vector.load %arg4[%c0_18, %c0_19] : memref<1x32xf32, #tpu.memory_space<vmem>>, vector<1x32xf32>
      %cst_20 = arith.constant dense<0.000000e+00> : vector<16xf32>
      %20 = vector.multi_reduction <add>, %17, %cst_20 [1] : vector<16x32xf32> to vector<16xf32>
      %21 = vector.shape_cast %20 : vector<16xf32> to vector<16x1xf32>
      %cst_21 = arith.constant 3.200000e+01 : f32
      %22 = vector.broadcast %cst_21 : f32 to vector<16x1xf32>
      %23 = arith.divf %21, %22 : vector<16x1xf32>
      %24 = vector.broadcast %23 : vector<16x1xf32> to vector<16x32xf32>
      %25 = arith.subf %17, %24 : vector<16x32xf32>
      %26 = arith.mulf %25, %25 : vector<16x32xf32>
      %cst_22 = arith.constant dense<0.000000e+00> : vector<16xf32>
      %27 = vector.multi_reduction <add>, %26, %cst_22 [1] : vector<16x32xf32> to vector<16xf32>
      %28 = vector.shape_cast %27 : vector<16xf32> to vector<16x1xf32>
      %cst_23 = arith.constant 3.200000e+01 : f32
      %29 = vector.broadcast %cst_23 : f32 to vector<16x1xf32>
      %30 = arith.divf %28, %29 : vector<16x1xf32>
      %31 = vector.broadcast %23 : vector<16x1xf32> to vector<16x32xf32>
      %32 = arith.subf %17, %31 : vector<16x32xf32>
      %cst_24 = arith.constant 9.99999974E-6 : f32
      %33 = vector.broadcast %cst_24 : f32 to vector<16x1xf32>
      %34 = arith.addf %30, %33 : vector<16x1xf32>
      %35 = math.rsqrt %34 : vector<16x1xf32>
      %36 = vector.broadcast %35 : vector<16x1xf32> to vector<16x32xf32>
      %37 = arith.mulf %32, %36 : vector<16x32xf32>
      %38 = vector.broadcast %18 : vector<1x32xf32> to vector<16x32xf32>
      %39 = arith.mulf %37, %38 : vector<16x32xf32>
      %40 = vector.broadcast %19 : vector<1x32xf32> to vector<16x32xf32>
      %41 = arith.addf %39, %40 : vector<16x32xf32>
      %42 = arith.truncf %41 : vector<16x32xf32> to vector<16x32xbf16>
      %c0_25 = arith.constant 0 : index
      %c0_26 = arith.constant 0 : index
      %43 = vector.load %arg10[%c0_25, %c0_26] : memref<16x32xbf16, #tpu.memory_space<vmem>>, vector<16x32xbf16>
      tpu.vector_store %arg10[%c0_25, %c0_26], %42 {strides = array<i32>} : memref<16x32xbf16, #tpu.memory_space<vmem>>, vector<16x32xbf16>,
      %c0_27 = arith.constant 0 : index
      %c0_28 = arith.constant 0 : index
      %44 = vector.load %arg8[%c0_27, %c0_28] : memref<1x32xf32, #tpu.memory_space<vmem>>, vector<1x32xf32>
      %45 = vector.broadcast %44 : vector<1x32xf32> to vector<16x32xf32>
      %46 = arith.addf %17, %45 : vector<16x32xf32>
      %c0_29 = arith.constant 0 : index
      %c0_30 = arith.constant 0 : index
      %47 = vector.load %arg9[%c0_29, %c0_30] : memref<16x32xf32, #tpu.memory_space<vmem>>, vector<16x32xf32>
      tpu.vector_store %arg9[%c0_29, %c0_30], %46 {strides = array<i32>} : memref<16x32xf32, #tpu.memory_space<vmem>>, vector<16x32xf32>,
    } else {
    }
    %c0 = arith.constant 0 : index
    %c0_1 = arith.constant 0 : index
    %3 = vector.load %arg10[%c0, %c0_1] : memref<16x32xbf16, #tpu.memory_space<vmem>>, vector<16x32xbf16>
    %c0_2 = arith.constant 0 : index
    %c0_3 = arith.constant 0 : index
    %4 = vector.load %arg5[%c0_2, %c0_3] : memref<32x64xbf16, #tpu.memory_space<vmem>>, vector<32x64xbf16>
    %cst = arith.constant dense<0.000000e+00> : vector<16x64xf32>
    %5 = tpu.matmul %3, %4, %cst {dimension_numbers = #tpu.dot_dimension_numbers<[1], [0], [0], [1], [0, 0, 1, 1], [], []>} : vector<16x32xbf16>, vector<32x64xbf16>, vector<16x64xf32> -> vector<16x64xf32>
    %c0_4 = arith.constant 0 : index
    %c0_5 = arith.constant 0 : index
    %6 = vector.load %arg6[%c0_4, %c0_5] : memref<1x64xf32, #tpu.memory_space<vmem>>, vector<1x64xf32>
    %7 = vector.broadcast %6 : vector<1x64xf32> to vector<16x64xf32>
    %8 = arith.addf %5, %7 : vector<16x64xf32>
    %cst_6 = arith.constant 0.000000e+00 : f32
    %9 = vector.broadcast %cst_6 : f32 to vector<16x64xf32>
    %10 = arith.maximumf %8, %9 : vector<16x64xf32>
    %c0_7 = arith.constant 0 : index
    %c0_8 = arith.constant 0 : index
    %11 = vector.load %arg9[%c0_7, %c0_8] : memref<16x32xf32, #tpu.memory_space<vmem>>, vector<16x32xf32>
    %12 = arith.truncf %10 : vector<16x64xf32> to vector<16x64xbf16>
    %c0_9 = arith.constant 0 : index
    %c0_10 = arith.constant 0 : index
    %13 = vector.load %arg7[%c0_9, %c0_10] : memref<64x32xbf16, #tpu.memory_space<vmem>>, vector<64x32xbf16>
    %cst_11 = arith.constant dense<0.000000e+00> : vector<16x32xf32>
    %14 = tpu.matmul %12, %13, %cst_11 {dimension_numbers = #tpu.dot_dimension_numbers<[1], [0], [0], [1], [0, 0, 1, 1], [], []>} : vector<16x64xbf16>, vector<64x32xbf16>, vector<16x32xf32> -> vector<16x32xf32>
    %15 = arith.addf %11, %14 : vector<16x32xf32>
    %c0_12 = arith.constant 0 : index
    %c0_13 = arith.constant 0 : index
    %16 = vector.load %arg9[%c0_12, %c0_13] : memref<16x32xf32, #tpu.memory_space<vmem>>, vector<16x32xf32>
    tpu.vector_store %arg9[%c0_12, %c0_13], %15 {strides = array<i32>} : memref<16x32xf32, #tpu.memory_space<vmem>>, vector<16x32xf32>,
    return
  }
  func.func @transform_0(%arg0: i32, %arg1: i32) -> (i32, i32) {
    %c0_i32 = arith.constant 0 : i32
    %c0_i32_0 = arith.constant 0 : i32
    return %arg0, %c0_i32 : i32, i32
  }
  func.func @transform_1(%arg0: i32, %arg1: i32) -> (i32, i32) {
    %c0_i32 = arith.constant 0 : i32
    %c0_i32_0 = arith.constant 0 : i32
    %c0_i32_1 = arith.constant 0 : i32
    return %c0_i32, %c0_i32_0 : i32, i32
  }
  func.func @transform_2(%arg0: i32, %arg1: i32) -> (i32, i32) {
    %c0_i32 = arith.constant 0 : i32
    %c0_i32_0 = arith.constant 0 : i32
    %c0_i32_1 = arith.constant 0 : i32
    return %c0_i32, %c0_i32_0 : i32, i32
  }
  func.func @transform_3(%arg0: i32, %arg1: i32) -> (i32, i32) {
    %c0_i32 = arith.constant 0 : i32
    %c0_i32_0 = arith.constant 0 : i32
    return %c0_i32, %arg1 : i32, i32
  }
  func.func @transform_4(%arg0: i32, %arg1: i32) -> (i32, i32) {
    %c0_i32 = arith.constant 0 : i32
    %c0_i32_0 = arith.constant 0 : i32
    return %c0_i32, %arg1 : i32, i32
  }
  func.func @transform_5(%arg0: i32, %arg1: i32) -> (i32, i32) {
    %c0_i32 = arith.constant 0 : i32
    %c0_i32_0 = arith.constant 0 : i32
    return %arg1, %c0_i32 : i32, i32
  }
  func.func @transform_6(%arg0: i32, %arg1: i32) -> (i32, i32) {
    %c0_i32 = arith.constant 0 : i32
    %c0_i32_0 = arith.constant 0 : i32
    %c0_i32_1 = arith.constant 0 : i32
    return %c0_i32, %c0_i32_0 : i32, i32
  }
  func.func @transform_7(%arg0: i32, %arg1: i32) -> (i32, i32) {
    %c0_i32 = arith.constant 0 : i32
    %c0_i32_0 = arith.constant 0 : i32
    return %arg0, %c0_i32 : i32, i32
  }
}

</mosaic_0001>

<llo_original>
// kernel: decoder_layer.3
$region0: #{decoder_layer.3}
  #allocation0 [shape = 'u32[]', space=smem, size = 0x4, offset = 0x4, fixed_abs, tag = 'smem constant byte address 0x4 - core index']
  #allocation1 [shape = 'u32[144,128]{1,0:T(1,128)}', space=vmem, size = 0x12000, scoped, tag = 'internal scratch']
  %s0 = inlined_call_operand.vmem [shape: f32[2,8,32], index: 0, kind: input, shape index: {}]
  %s1 = inlined_call_operand.vmem [shape: bf16[2,1,8,8], index: 1, kind: input, shape index: {}]
  %s2 = inlined_call_operand.vmem [shape: f32[1,32], index: 2, kind: input, shape index: {}]
  %s3 = inlined_call_operand.vmem [shape: f32[1,32], index: 3, kind: input, shape index: {}]
  %s4 = inlined_call_operand.vmem [shape: bf16[32,96], index: 4, kind: input, shape index: {}]
  %s5 = inlined_call_operand.vmem [shape: f32[1,96], index: 5, kind: input, shape index: {}]
  %s6 = inlined_call_operand.vmem [shape: bf16[4,8,32], index: 6, kind: input, shape index: {}]
  %s7 = inlined_call_operand.vmem [shape: f32[1,32], index: 7, kind: input, shape index: {}]
  %s8 = inlined_call_operand.vmem [shape: f32[2,8,32], index: 8, kind: output, shape index: {}]
  %s9 = sld [smem:[#allocation0]]
  $region65: #{decoder_layer.3} parent=0
    _
  %s11 = ssub.s32 1, %s9
  %s12 = scalar_select 0, %s11, %s9
  loop: start=0, step=1, limit=4
  $region2: #{decoder_layer.3} parent=0 // loop_pre_header
    _
  $region3: #{decoder_layer.3} parent=0 // loop_header
    %s14 = sphi 0, %s18
    %p15 = scmp.ge.s32.totalorder %s14, 4
    %s24 = sphi 0, %s26
    %s27 = sphi 0, %s24
    %s28 = sphi 0, %s27
    %s44 = sphi 0, %s28
    %s50 = sphi 0, %s52
    %s53 = sphi 0, %s50
    %s54 = sphi 0, %s53
    %s70 = sphi 0, %s54
    %s74 = sphi 0, %s74
    %s76 = sphi 0, %s74
    %s77 = sphi 0, %s76
    %s91 = sphi 0, %s77
    %s95 = sphi 0, %s95
    %s97 = sphi 0, %s95
    %s98 = sphi 0, %s97
    %s112 = sphi 0, %s98
    %s116 = sphi 0, %s116
    %s118 = sphi 0, %s116
    %s119 = sphi 0, %s118
    %s133 = sphi 0, %s119
    %s137 = sphi 0, %s137
    %s139 = sphi 0, %s137
    %s140 = sphi 0, %s139
    %s154 = sphi 0, %s140
    %s158 = sphi 0, %s158
    %s160 = sphi 0, %s158
    %s161 = sphi 0, %s160
    %s175 = sphi 0, %s161
    %s179 = sphi 0, %s179
    %s181 = sphi 0, %s179
    %s182 = sphi 0, %s181
    %s196 = sphi 0, %s182
    %s202 = sphi 0, %s204
    %s205 = sphi 0, %s202
    %s206 = sphi 0, %s205
    %s222 = sphi 0, %s206
  $region4: #{decoder_layer.3} parent=0 // loop_header_branch
    %17 = sbr.rel (%p15) target = $region8
  $region5: #{decoder_layer.3} parent=0 // loop_body
    %s19 = ssub.s32 %s14, 1
    %s20 = ssub.s32 %s14, 2
    %s21 = sadd.s32 %s14, 1
    %s22 = ssub.s32 %s14, %s21
    %p23 = scmp.eq.s32.totalorder %s22, 0
    %s25 = sadd.s32 %s24, 1
    %s26 = scalar_select %p23, %s24, %s25
    %p29 = pneg %p23
    %p30 = scmp.eq.s32.totalorder %s14, 1
    %p31 = por %p29, %p30
    %p32 = scmp.ne.s32.totalorder %s24, %s27
    %p33 = scmp.eq.s32.totalorder %s14, 0
    %p34 = por %p32, %p33
    %p35 = scmp.ne.s32.totalorder %s24, %s27
    %p36 = scmp.eq.s32.totalorder %s19, 1
    %p37 = por %p35, %p36
    %p38 = scmp.ne.s32.totalorder %s27, %s28
    %p39 = scmp.eq.s32.totalorder %s19, 0
    %p40 = por %p38, %p39
    %p41 = scmp.ne.s32.totalorder %s27, %s28
    %p42 = scmp.eq.s32.totalorder %s20, 1
    %p43 = por %p41, %p42
    %p45 = scmp.ne.s32.totalorder %s28, %s44
    %p46 = scmp.eq.s32.totalorder %s20, 0
    %p47 = por %p45, %p46
    %s48 = ssub.s32 %s14, %s21
    %p49 = scmp.eq.s32.totalorder %s48, 0
    %s51 = sadd.s32 %s50, 1
    %s52 = scalar_select %p49, %s50, %s51
    %p55 = pneg %p49
    %p56 = scmp.eq.s32.totalorder %s14, 1
    %p57 = por %p55, %p56
    %p58 = scmp.ne.s32.totalorder %s50, %s53
    %p59 = scmp.eq.s32.totalorder %s14, 0
    %p60 = por %p58, %p59
    %p61 = scmp.ne.s32.totalorder %s50, %s53
    %p62 = scmp.eq.s32.totalorder %s19, 1
    %p63 = por %p61, %p62
    %p64 = scmp.ne.s32.totalorder %s53, %s54
    %p65 = scmp.eq.s32.totalorder %s19, 0
    %p66 = por %p64, %p65
    %p67 = scmp.ne.s32.totalorder %s53, %s54
    %p68 = scmp.eq.s32.totalorder %s20, 1
    %p69 = por %p67, %p68
    %p71 = scmp.ne.s32.totalorder %s54, %s70
    %p72 = scmp.eq.s32.totalorder %s20, 0
    %p73 = por %p71, %p72
    %s75 = sadd.s32 %s74, 1
    %p78 = scmp.eq.s32.totalorder %s14, 1
    %p79 = scmp.ne.s32.totalorder %s74, %s76
    %p80 = scmp.eq.s32.totalorder %s14, 0
    %p81 = por %p79, %p80
    %p82 = scmp.ne.s32.totalorder %s74, %s76
    %p83 = scmp.eq.s32.totalorder %s19, 1
    %p84 = por %p82, %p83
    %p85 = scmp.ne.s32.totalorder %s76, %s77
    %p86 = scmp.eq.s32.totalorder %s19, 0
    %p87 = por %p85, %p86
    %p88 = scmp.ne.s32.totalorder %s76, %s77
    %p89 = scmp.eq.s32.totalorder %s20, 1
    %p90 = por %p88, %p89
    %p92 = scmp.ne.s32.totalorder %s77, %s91
    %p93 = scmp.eq.s32.totalorder %s20, 0
    %p94 = por %p92, %p93
    %s96 = sadd.s32 %s95, 1
    %p99 = scmp.eq.s32.totalorder %s14, 1
    %p100 = scmp.ne.s32.totalorder %s95, %s97
    %p101 = scmp.eq.s32.totalorder %s14, 0
    %p102 = por %p100, %p101
    %p103 = scmp.ne.s32.totalorder %s95, %s97
    %p104 = scmp.eq.s32.totalorder %s19, 1
    %p105 = por %p103, %p104
    %p106 = scmp.ne.s32.totalorder %s97, %s98
    %p107 = scmp.eq.s32.totalorder %s19, 0
    %p108 = por %p106, %p107
    %p109 = scmp.ne.s32.totalorder %s97, %s98
    %p110 = scmp.eq.s32.totalorder %s20, 1
    %p111 = por %p109, %p110
    %p113 = scmp.ne.s32.totalorder %s98, %s112
    %p114 = scmp.eq.s32.totalorder %s20, 0
    %p115 = por %p113, %p114
    %s117 = sadd.s32 %s116, 1
    %p120 = scmp.eq.s32.totalorder %s14, 1
    %p121 = scmp.ne.s32.totalorder %s116, %s118
    %p122 = scmp.eq.s32.totalorder %s14, 0
    %p123 = por %p121, %p122
    %p124 = scmp.ne.s32.totalorder %s116, %s118
    %p125 = scmp.eq.s32.totalorder %s19, 1
    %p126 = por %p124, %p125
    %p127 = scmp.ne.s32.totalorder %s118, %s119
    %p128 = scmp.eq.s32.totalorder %s19, 0
    %p129 = por %p127, %p128
    %p130 = scmp.ne.s32.totalorder %s118, %s119
    %p131 = scmp.eq.s32.totalorder %s20, 1
    %p132 = por %p130, %p131
    %p134 = scmp.ne.s32.totalorder %s119, %s133
    %p135 = scmp.eq.s32.totalorder %s20, 0
    %p136 = por %p134, %p135
    %s138 = sadd.s32 %s137, 1
    %p141 = scmp.eq.s32.totalorder %s14, 1
    %p142 = scmp.ne.s32.totalorder %s137, %s139
    %p143 = scmp.eq.s32.totalorder %s14, 0
    %p144 = por %p142, %p143
    %p145 = scmp.ne.s32.totalorder %s137, %s139
    %p146 = scmp.eq.s32.totalorder %s19, 1
    %p147 = por %p145, %p146
    %p148 = scmp.ne.s32.totalorder %s139, %s140
    %p149 = scmp.eq.s32.totalorder %s19, 0
    %p150 = por %p148, %p149
    %p151 = scmp.ne.s32.totalorder %s139, %s140
    %p152 = scmp.eq.s32.totalorder %s20, 1
    %p153 = por %p151, %p152
    %p155 = scmp.ne.s32.totalorder %s140, %s154
    %p156 = scmp.eq.s32.totalorder %s20, 0
    %p157 = por %p155, %p156
    %s159 = sadd.s32 %s158, 1
    %p162 = scmp.eq.s32.totalorder %s14, 1
    %p163 = scmp.ne.s32.totalorder %s158, %s160
    %p164 = scmp.eq.s32.totalorder %s14, 0
    %p165 = por %p163, %p164
    %p166 = scmp.ne.s32.totalorder %s158, %s160
    %p167 = scmp.eq.s32.totalorder %s19, 1
    %p168 = por %p166, %p167
    %p169 = scmp.ne.s32.totalorder %s160, %s161
    %p170 = scmp.eq.s32.totalorder %s19, 0
    %p171 = por %p169, %p170
    %p172 = scmp.ne.s32.totalorder %s160, %s161
    %p173 = scmp.eq.s32.totalorder %s20, 1
    %p174 = por %p172, %p173
    %p176 = scmp.ne.s32.totalorder %s161, %s175
    %p177 = scmp.eq.s32.totalorder %s20, 0
    %p178 = por %p176, %p177
    %s180 = sadd.s32 %s179, 1
    %p183 = scmp.eq.s32.totalorder %s14, 1
    %p184 = scmp.ne.s32.totalorder %s179, %s181
    %p185 = scmp.eq.s32.totalorder %s14, 0
    %p186 = por %p184, %p185
    %p187 = scmp.ne.s32.totalorder %s179, %s181
    %p188 = scmp.eq.s32.totalorder %s19, 1
    %p189 = por %p187, %p188
    %p190 = scmp.ne.s32.totalorder %s181, %s182
    %p191 = scmp.eq.s32.totalorder %s19, 0
    %p192 = por %p190, %p191
    %p193 = scmp.ne.s32.totalorder %s181, %s182
    %p194 = scmp.eq.s32.totalorder %s20, 1
    %p195 = por %p193, %p194
    %p197 = scmp.ne.s32.totalorder %s182, %s196
    %p198 = scmp.eq.s32.totalorder %s20, 0
    %p199 = por %p197, %p198
    %s200 = ssub.s32 %s14, %s21
    %p201 = scmp.eq.s32.totalorder %s200, 0
    %s203 = sadd.s32 %s202, 1
    %s204 = scalar_select %p201, %s202, %s203
    %p207 = pneg %p201
    %p208 = scmp.eq.s32.totalorder %s14, 1
    %p209 = por %p207, %p208
    %p210 = scmp.ne.s32.totalorder %s202, %s205
    %p211 = scmp.eq.s32.totalorder %s14, 0
    %p212 = por %p210, %p211
    %p213 = scmp.ne.s32.totalorder %s202, %s205
    %p214 = scmp.eq.s32.totalorder %s19, 1
    %p215 = por %p213, %p214
    %p216 = scmp.ne.s32.totalorder %s205, %s206
    %p217 = scmp.eq.s32.totalorder %s19, 0
    %p218 = por %p216, %p217
    %p219 = scmp.ne.s32.totalorder %s205, %s206
    %p220 = scmp.eq.s32.totalorder %s20, 1
    %p221 = por %p219, %p220
    %p223 = scmp.ne.s32.totalorder %s206, %s222
    %p224 = scmp.eq.s32.totalorder %s20, 0
    %p225 = por %p223, %p224
    %p226 = scmp.le.s32.totalorder 1, %s14
    %p227 = scmp.lt.s32.totalorder %s14, 3
    %p228 = pnand %p226, %p227
    %p229 = pneg %p228
    // Predicated region
    $region9: #{decoder_layer.3} parent=5 // pred_check
      _
    $region10: #{decoder_layer.3} parent=5 // pred_check_branch
      %231 = sbr.rel (%p228) target = $region12
    $region11: #{decoder_layer.3} parent=5 // pred_region
      %s232 = ssub.s32 %s14, 1
      // Predicated region
      $region13: #{decoder_layer.3} parent=11 // pred_check
        %p233 = pneg %p87
      $region14: #{decoder_layer.3} parent=11 // pred_check_branch
        %235 = sbr.rel (%p233) target = $region16
      $region15: #{decoder_layer.3} parent=11 // pred_region
        _
      $region16: #{decoder_layer.3} parent=11 // pred_fallthru
        _
      // Predicated region
      $region17: #{decoder_layer.3} parent=11 // pred_check
        %p236 = pneg %p108
      $region18: #{decoder_layer.3} parent=11 // pred_check_branch
        %238 = sbr.rel (%p236) target = $region20
      $region19: #{decoder_layer.3} parent=11 // pred_region
        _
      $region20: #{decoder_layer.3} parent=11 // pred_fallthru
        _
      // Predicated region
      $region21: #{decoder_layer.3} parent=11 // pred_check
        %p239 = pneg %p129
      $region22: #{decoder_layer.3} parent=11 // pred_check_branch
        %241 = sbr.rel (%p239) target = $region24
      $region23: #{decoder_layer.3} parent=11 // pred_region
        _
      $region24: #{decoder_layer.3} parent=11 // pred_fallthru
        _
      // Predicated region
      $region25: #{decoder_layer.3} parent=11 // pred_check
        %p242 = pneg %p150
      $region26: #{decoder_layer.3} parent=11 // pred_check_branch
        %244 = sbr.rel (%p242) target = $region28
      $region27: #{decoder_layer.3} parent=11 // pred_region
        _
      $region28: #{decoder_layer.3} parent=11 // pred_fallthru
        _
      // Predicated region
      $region29: #{decoder_layer.3} parent=11 // pred_check
        %p245 = pneg %p171
      $region30: #{decoder_layer.3} parent=11 // pred_check_branch
        %247 = sbr.rel (%p245) target = $region32
      $region31: #{decoder_layer.3} parent=11 // pred_region
        _
      $region32: #{decoder_layer.3} parent=11 // pred_fallthru
        _
      // Predicated region
      $region33: #{decoder_layer.3} parent=11 // pred_check
        %p248 = pneg %p192
      $region34: #{decoder_layer.3} parent=11 // pred_check_branch
        %250 = sbr.rel (%p248) target = $region36
      $region35: #{decoder_layer.3} parent=11 // pred_region
        _
      $region36: #{decoder_layer.3} parent=11 // pred_fallthru
        _
    $region12: #{decoder_layer.3} parent=5 // pred_fallthru
      _
    %p251 = scmp.lt.s32.totalorder %s14, 2
    // Predicated region
    $region37: #{decoder_layer.3} parent=5 // pred_check
      %p252 = pneg %p251
    $region38: #{decoder_layer.3} parent=5 // pred_check_branch
      %254 = sbr.rel (%p252) target = $region40
    $region39: #{decoder_layer.3} parent=5 // pred_region
      // Predicated region
      $region41: #{decoder_layer.3} parent=39 // pred_check
        %p255 = pneg %p34
      $region42: #{decoder_layer.3} parent=39 // pred_check_branch
        %257 = sbr.rel (%p255) target = $region44
      $region43: #{decoder_layer.3} parent=39 // pred_region
        %p258 = scmp.lt.s32.totalorder %s14, 1
        %s259 = scalar_select %p258, %s14, 1
        %s260 = smul.addr %s259, 8
        %s261 = scalar_lea.vmem %s0, %s260
      $region44: #{decoder_layer.3} parent=39 // pred_fallthru
        _
      // Predicated region
      $region45: #{decoder_layer.3} parent=39 // pred_check
        %p262 = pneg %p60
      $region46: #{decoder_layer.3} parent=39 // pred_check_branch
        %264 = sbr.rel (%p262) target = $region48
      $region47: #{decoder_layer.3} parent=39 // pred_region
        %p265 = scmp.lt.s32.totalorder %s14, 1
        %s266 = scalar_select %p265, %s14, 1
        %s267 = smul.addr %s266, 4
        %s268 = scalar_lea.vmem %s1, %s267
      $region48: #{decoder_layer.3} parent=39 // pred_fallthru
        _
    $region40: #{decoder_layer.3} parent=5 // pred_fallthru
      _
    %p269 = scmp.le.s32.totalorder 1, %s14
    %p270 = scmp.lt.s32.totalorder %s14, 3
    %p271 = pnand %p269, %p270
    %p272 = pneg %p271
    // Predicated region
    $region49: #{decoder_layer.3} parent=5 // pred_check
      _
    $region50: #{decoder_layer.3} parent=5 // pred_check_branch
      %274 = sbr.rel (%p271) target = $region52
    $region51: #{decoder_layer.3} parent=5 // pred_region
      %s275 = ssub.s32 %s14, 1
      %p276 = scmp.lt.s32.totalorder %s19, 1
      %s277 = scalar_select %p276, %s19, 1
      %s278 = smul.addr %s277, 8
      %s279 = scalar_lea.vmem %s0, %s278
      %p280 = pneg %p40
      %p281 = pneg %p37
      %p282 = scmp.lt.s32.totalorder %s19, 1
      %s283 = scalar_select %p282, %s19, 1
      %s284 = smul.addr %s283, 4
      %s285 = scalar_lea.vmem %s1, %s284
      %p286 = pneg %p66
      %p287 = pneg %p63
      %p288 = pneg %p87
      %p289 = pneg %p84
      %p290 = pneg %p108
      %p291 = pneg %p105
      %p292 = pneg %p129
      %p293 = pneg %p126
      %p294 = pneg %p150
      %p295 = pneg %p147
      %p296 = pneg %p171
      %p297 = pneg %p168
      %p298 = pneg %p192
      %p299 = pneg %p189
      %p300 = pneg %p218
      %p301 = pneg %p215
      %p302 = scmp.lt.s32.totalorder %s19, 1
      %s303 = scalar_select %p302, %s19, 1
      %s304 = smul.addr %s303, 8
      %s305 = scalar_lea.vmem %s8, %s304
      %p306 = scmp.lt.s32.totalorder %s19, 1
      %s307 = scalar_select %p306, %s19, 1
      %s308 = smul.addr %s307, 8
      %s309 = scalar_lea.vmem %s0, %s308
      %p310 = scmp.lt.s32.totalorder %s19, 1
      %s311 = scalar_select %p310, %s19, 1
      %s312 = smul.addr %s311, 4
      %s313 = scalar_lea.vmem %s1, %s312
      %p314 = scmp.lt.s32.totalorder %s19, 1
      %s315 = scalar_select %p314, %s19, 1
      %s316 = smul.addr %s315, 8
      %s317 = scalar_lea.vmem %s8, %s316
      %v321 = vld [vmem:[%s309] sm:$0xff]
      %v322 = vld [vmem:[%s2] sm:$0x1]
      %v323 = vld [vmem:[%s3] sm:$0x1]
      %vm324 = vcmask 261120
      %v325 = vsel %vm324, %v321, 0.0
      %326 = vadd.xlane.f32.xlu0 %v325
      %v327 = vpop.xlane.xlu0 %326
      %v328 = vrcp.pop 32.0
      %v329 = vmul.f32 %v327, %v328
      %v330 = vsub.f32 %v321, %v329
      %v331 = vmul.f32 %v330, %v330
      %v332 = vsel %vm324, %v331, 0.0
      %333 = vadd.xlane.f32.xlu0 %v332
      %v334 = vpop.xlane.xlu0 %333
      %v335 = vmul.f32 %v334, %v328
      %v336 = vadd.f32 %v335, 1e-05
      %v337 = vrsqrt.pop %v336
      %v338 = vmul.f32 %v330, %v337
      %v340 = vlaneseq
      %v341 = vshrl.u32 %v340, 7
      %v342 = vsub.s32 0, %v341
      %v343 = vrot.slane %v322, %v342
      %v345 = vmul.f32 %v338, %v343
      %v347 = vlaneseq
      %v348 = vshrl.u32 %v347, 7
      %v349 = vsub.s32 0, %v348
      %v350 = vrot.slane %v323, %v349
      %v352 = vadd.f32 %v345, %v350
      %v353 = vpack.c.bf16 %v352, %v352
      %v354 = vld [vmem:[%s4] sm:$0xf]
      %v355 = vld [vmem:[%s4 + $0x4] sm:$0xf]
      %v356 = vld [vmem:[%s4 + $0x8] sm:$0xf]
      %v357 = vld [vmem:[%s4 + $0xc] sm:$0xf]
      %v358 = vld [vmem:[%s5] sm:$0x1]
      %v360 = vlaneseq
      %v361 = vshrl.u32 %v360, 7
      %v362 = vsub.s32 0, %v361
      %v363 = vrot.slane %v358, %v362
      %v369 = vunpack.c.l.b16 %v354
      %v370 = vunpack.c.l.b16 %v355
      %v371 = vunpack.c.l.b16 %v356
      %v372 = vunpack.c.l.b16 %v357
      %v373 = vpack.c.b16 %v370, %v369
      %v374 = vpack.c.b16 %v372, %v371
      %v378 = vsel %vm324, %v353, 0
      %380 = vmatprep.subr.bf16.mxu0 0
      %381 = vmatpush1.bf16.msra.mxu0 0
      %382 = vmatprep.subr.bf16.mxu0 0
      %383 = vmatpush1.bf16.msra.mxu0 0
      %384 = vmatprep.subr.bf16.mxu0 0
      %385 = vmatpush1.bf16.msra.mxu0 0
      %386 = vmatprep.subr.bf16.mxu0 0
      %387 = vmatpush1.bf16.msra.mxu0 0
      %388 = vmatprep.subr.bf16.mxu0 0
      %389 = vmatpush1.bf16.msra.mxu0 0
      %390 = vmatprep.subr.bf16.mxu0 0
      %391 = vmatpush1.bf16.msra.mxu0 0
      %392 = vmatprep.subr.bf16.mxu0 0
      %393 = vmatpush1.bf16.msra.mxu0 %v374
      %394 = vmatprep.subr.bf16.mxu0 0
      %395 = vmatpush1.bf16.msra.mxu0 %v373
      %396 = vmatprep.subr.bf16.mxu0 0
      %397 = vmatpush2.bf16.msra.mxu0 0
      %398 = vmatprep.subr.bf16.mxu0 0
      %399 = vmatpush2.bf16.msra.mxu0 0
      %400 = vmatprep.subr.bf16.mxu0 0
      %401 = vmatpush2.bf16.msra.mxu0 0
      %402 = vmatprep.subr.bf16.mxu0 0
      %403 = vmatpush2.bf16.msra.mxu0 0
      %404 = vmatprep.subr.bf16.mxu0 0
      %405 = vmatpush2.bf16.msra.mxu0 0
      %406 = vmatprep.subr.bf16.mxu0 0
      %407 = vmatpush2.bf16.msra.mxu0 0
      %408 = vmatprep.subr.bf16.mxu0 0
      %409 = vmatpush2.bf16.msra.mxu0 0
      %410 = vmatprep.subr.bf16.mxu0 0
      %411 = vmatpush2.bf16.msra.mxu0 0
      %412 = vmatprep.mubr.bf16.mxu0 0
      %413 = vmatmul.mubr.bf16.gmra.mxu0 %v378
      %v414 = vpop.f32.mrf.mxu0
      %v415 = vadd.f32 %v363, %v414
      %v416 = vpop.f32.mrf.mxu0
      %v417 = vpop.f32.mrf.mxu0
      %v418 = vpop.f32.mrf.mxu0
      %419 = vdwg.mxu0
      %v420 = vld [vmem:[%s313] sm:$0xf]
      %vm421 = vcmp.ne.bf16.partialorder %v420, 0
      %v422 = vpack.c.bf16 %v415, %v415
      %424 = vrot.lane.b32.xlu0 %v422, 120
      %v425 = vpop.permute.xlu0 %424
      %426 = vrot.lane.b32.xlu0 %v422, 112
      %v427 = vpop.permute.xlu0 %426
      %428 = vrot.lane.b32.xlu0 %v422, 104
      %v429 = vpop.permute.xlu0 %428
      %430 = vrot.lane.b32.xlu0 %v422, 96
      %v431 = vpop.permute.xlu0 %430
      %vm432 = vcmask 64512
      %v434 = vsel %vm432, %v422, 0
      %v437 = vsel %vm432, %v431, 0
      %439 = vmatprep.subr.bf16.mxu0 0
      %440 = vmatpush1.bf16.xpose.msra.mxu0 0
      %441 = vmatprep.subr.bf16.mxu0 0
      %442 = vmatpush1.bf16.xpose.msra.mxu0 0
      %443 = vmatprep.subr.bf16.mxu0 0
      %444 = vmatpush1.bf16.xpose.msra.mxu0 0
      %445 = vmatprep.subr.bf16.mxu0 0
      %446 = vmatpush1.bf16.xpose.msra.mxu0 0
      %447 = vmatprep.subr.bf16.mxu0 0
      %448 = vmatpush1.bf16.xpose.msra.mxu0 0
      %449 = vmatprep.subr.bf16.mxu0 0
      %450 = vmatpush1.bf16.xpose.msra.mxu0 0
      %451 = vmatprep.subr.bf16.mxu0 0
      %452 = vmatpush1.bf16.xpose.msra.mxu0 0
      %453 = vmatprep.subr.bf16.mxu0 0
      %454 = vmatpush1.bf16.xpose.msra.mxu0 %v437
      %455 = vmatprep.subr.bf16.mxu0 0
      %456 = vmatpush2.bf16.xpose.msra.mxu0 0
      %457 = vmatprep.subr.bf16.mxu0 0
      %458 = vmatpush2.bf16.xpose.msra.mxu0 0
      %459 = vmatprep.subr.bf16.mxu0 0
      %460 = vmatpush2.bf16.xpose.msra.mxu0 0
      %461 = vmatprep.subr.bf16.mxu0 0
      %462 = vmatpush2.bf16.xpose.msra.mxu0 0
      %463 = vmatprep.subr.bf16.mxu0 0
      %464 = vmatpush2.bf16.xpose.msra.mxu0 0
      %465 = vmatprep.subr.bf16.mxu0 0
      %466 = vmatpush2.bf16.xpose.msra.mxu0 0
      %467 = vmatprep.subr.bf16.mxu0 0
      %468 = vmatpush2.bf16.xpose.msra.mxu0 0
      %469 = vmatprep.subr.bf16.mxu0 0
      %470 = vmatpush2.bf16.xpose.msra.mxu0 0
      %471 = vmatprep.mubr.bf16.mxu0 0
      %472 = vmatmul.mubr.bf16.gmra.mxu0 %v434
      %v473 = vpop.f32.mrf.mxu0
      %v474 = vadd.f32 0.0, %v473
      %v475 = vpop.f32.mrf.mxu0
      %v476 = vpop.f32.mrf.mxu0
      %v477 = vpop.f32.mrf.mxu0
      %478 = vdwg.mxu0
      %479 = vrot.lane.b32.xlu0 %v425, 96
      %v480 = vpop.permute.xlu0 %479
      %v482 = vsel %vm432, %v425, 0
      %v485 = vsel %vm432, %v480, 0
      %487 = vmatprep.subr.bf16.mxu0 0
      %488 = vmatpush1.bf16.xpose.msra.mxu0 0
      %489 = vmatprep.subr.bf16.mxu0 0
      %490 = vmatpush1.bf16.xpose.msra.mxu0 0
      %491 = vmatprep.subr.bf16.mxu0 0
      %492 = vmatpush1.bf16.xpose.msra.mxu0 0
      %493 = vmatprep.subr.bf16.mxu0 0
      %494 = vmatpush1.bf16.xpose.msra.mxu0 0
      %495 = vmatprep.subr.bf16.mxu0 0
      %496 = vmatpush1.bf16.xpose.msra.mxu0 0
      %497 = vmatprep.subr.bf16.mxu0 0
      %498 = vmatpush1.bf16.xpose.msra.mxu0 0
      %499 = vmatprep.subr.bf16.mxu0 0
      %500 = vmatpush1.bf16.xpose.msra.mxu0 0
      %501 = vmatprep.subr.bf16.mxu0 0
      %502 = vmatpush1.bf16.xpose.msra.mxu0 %v485
      %503 = vmatprep.subr.bf16.mxu0 0
      %504 = vmatpush2.bf16.xpose.msra.mxu0 0
      %505 = vmatprep.subr.bf16.mxu0 0
      %506 = vmatpush2.bf16.xpose.msra.mxu0 0
      %507 = vmatprep.subr.bf16.mxu0 0
      %508 = vmatpush2.bf16.xpose.msra.mxu0 0
      %509 = vmatprep.subr.bf16.mxu0 0
      %510 = vmatpush2.bf16.xpose.msra.mxu0 0
      %511 = vmatprep.subr.bf16.mxu0 0
      %512 = vmatpush2.bf16.xpose.msra.mxu0 0
      %513 = vmatprep.subr.bf16.mxu0 0
      %514 = vmatpush2.bf16.xpose.msra.mxu0 0
      %515 = vmatprep.subr.bf16.mxu0 0
      %516 = vmatpush2.bf16.xpose.msra.mxu0 0
      %517 = vmatprep.subr.bf16.mxu0 0
      %518 = vmatpush2.bf16.xpose.msra.mxu0 0
      %519 = vmatprep.mubr.bf16.mxu0 0
      %520 = vmatmul.mubr.bf16.gmra.mxu0 %v482
      %v521 = vpop.f32.mrf.mxu0
      %v522 = vadd.f32 0.0, %v521
      %v523 = vpop.f32.mrf.mxu0
      %v524 = vpop.f32.mrf.mxu0
      %v525 = vpop.f32.mrf.mxu0
      %526 = vdwg.mxu0
      %527 = vrot.lane.b32.xlu0 %v427, 96
      %v528 = vpop.permute.xlu0 %527
      %v530 = vsel %vm432, %v427, 0
      %v533 = vsel %vm432, %v528, 0
      %535 = vmatprep.subr.bf16.mxu0 0
      %536 = vmatpush1.bf16.xpose.msra.mxu0 0
      %537 = vmatprep.subr.bf16.mxu0 0
      %538 = vmatpush1.bf16.xpose.msra.mxu0 0
      %539 = vmatprep.subr.bf16.mxu0 0
      %540 = vmatpush1.bf16.xpose.msra.mxu0 0
      %541 = vmatprep.subr.bf16.mxu0 0
      %542 = vmatpush1.bf16.xpose.msra.mxu0 0
      %543 = vmatprep.subr.bf16.mxu0 0
      %544 = vmatpush1.bf16.xpose.msra.mxu0 0
      %545 = vmatprep.subr.bf16.mxu0 0
      %546 = vmatpush1.bf16.xpose.msra.mxu0 0
      %547 = vmatprep.subr.bf16.mxu0 0
      %548 = vmatpush1.bf16.xpose.msra.mxu0 0
      %549 = vmatprep.subr.bf16.mxu0 0
      %550 = vmatpush1.bf16.xpose.msra.mxu0 %v533
      %551 = vmatprep.subr.bf16.mxu0 0
      %552 = vmatpush2.bf16.xpose.msra.mxu0 0
      %553 = vmatprep.subr.bf16.mxu0 0
      %554 = vmatpush2.bf16.xpose.msra.mxu0 0
      %555 = vmatprep.subr.bf16.mxu0 0
      %556 = vmatpush2.bf16.xpose.msra.mxu0 0
      %557 = vmatprep.subr.bf16.mxu0 0
      %558 = vmatpush2.bf16.xpose.msra.mxu0 0
      %559 = vmatprep.subr.bf16.mxu0 0
      %560 = vmatpush2.bf16.xpose.msra.mxu0 0
      %561 = vmatprep.subr.bf16.mxu0 0
      %562 = vmatpush2.bf16.xpose.msra.mxu0 0
      %563 = vmatprep.subr.bf16.mxu0 0
      %564 = vmatpush2.bf16.xpose.msra.mxu0 0
      %565 = vmatprep.subr.bf16.mxu0 0
      %566 = vmatpush2.bf16.xpose.msra.mxu0 0
      %567 = vmatprep.mubr.bf16.mxu0 0
      %568 = vmatmul.mubr.bf16.gmra.mxu0 %v530
      %v569 = vpop.f32.mrf.mxu0
      %v570 = vadd.f32 0.0, %v569
      %v571 = vpop.f32.mrf.mxu0
      %v572 = vpop.f32.mrf.mxu0
      %v573 = vpop.f32.mrf.mxu0
      %574 = vdwg.mxu0
      %575 = vrot.lane.b32.xlu0 %v429, 96
      %v576 = vpop.permute.xlu0 %575
      %v578 = vsel %vm432, %v429, 0
      %v581 = vsel %vm432, %v576, 0
      %583 = vmatprep.subr.bf16.mxu0 0
      %584 = vmatpush1.bf16.xpose.msra.mxu0 0
      %585 = vmatprep.subr.bf16.mxu0 0
      %586 = vmatpush1.bf16.xpose.msra.mxu0 0
      %587 = vmatprep.subr.bf16.mxu0 0
      %588 = vmatpush1.bf16.xpose.msra.mxu0 0
      %589 = vmatprep.subr.bf16.mxu0 0
      %590 = vmatpush1.bf16.xpose.msra.mxu0 0
      %591 = vmatprep.subr.bf16.mxu0 0
      %592 = vmatpush1.bf16.xpose.msra.mxu0 0
      %593 = vmatprep.subr.bf16.mxu0 0
      %594 = vmatpush1.bf16.xpose.msra.mxu0 0
      %595 = vmatprep.subr.bf16.mxu0 0
      %596 = vmatpush1.bf16.xpose.msra.mxu0 0
      %597 = vmatprep.subr.bf16.mxu0 0
      %598 = vmatpush1.bf16.xpose.msra.mxu0 %v581
      %599 = vmatprep.subr.bf16.mxu0 0
      %600 = vmatpush2.bf16.xpose.msra.mxu0 0
      %601 = vmatprep.subr.bf16.mxu0 0
      %602 = vmatpush2.bf16.xpose.msra.mxu0 0
      %603 = vmatprep.subr.bf16.mxu0 0
      %604 = vmatpush2.bf16.xpose.msra.mxu0 0
      %605 = vmatprep.subr.bf16.mxu0 0
      %606 = vmatpush2.bf16.xpose.msra.mxu0 0
      %607 = vmatprep.subr.bf16.mxu0 0
      %608 = vmatpush2.bf16.xpose.msra.mxu0 0
      %609 = vmatprep.subr.bf16.mxu0 0
      %610 = vmatpush2.bf16.xpose.msra.mxu0 0
      %611 = vmatprep.subr.bf16.mxu0 0
      %612 = vmatpush2.bf16.xpose.msra.mxu0 0
      %613 = vmatprep.subr.bf16.mxu0 0
      %614 = vmatpush2.bf16.xpose.msra.mxu0 0
      %615 = vmatprep.mubr.bf16.mxu0 0
      %616 = vmatmul.mubr.bf16.gmra.mxu0 %v578
      %v617 = vpop.f32.mrf.mxu0
      %v618 = vadd.f32 0.0, %v617
      %v619 = vpop.f32.mrf.mxu0
      %v620 = vpop.f32.mrf.mxu0
      %v621 = vpop.f32.mrf.mxu0
      %622 = vdwg.mxu0
      %v623 = vsel %vm421, 65537, 0
      %v624 = vunpack.c.l.b16 %v623
      %vm625 = vcmp.ne.s32.totalorder %v624, 0
      %v626 = vsel %vm625, 1, 0
      %vm627 = vcmp.eq.s32.totalorder %v626, 1
      %v628 = vsel %vm627, %v474, -65500.0
      %v629 = vsel %vm627, %v522, -65500.0
      %v630 = vsel %vm627, %v570, -65500.0
      %v631 = vsel %vm627, %v618, -65500.0
      %v632 = vsel %vm432, %v628, -inf
      %633 = vmax.xlane.f32.xlu0 %v632
      %v634 = vpop.xlane.xlu0 %633
      %v635 = vsel %vm432, %v629, -inf
      %636 = vmax.xlane.f32.xlu0 %v635
      %v637 = vpop.xlane.xlu0 %636
      %v638 = vsel %vm432, %v630, -inf
      %639 = vmax.xlane.f32.xlu0 %v638
      %v640 = vpop.xlane.xlu0 %639
      %v641 = vsel %vm432, %v631, -inf
      %642 = vmax.xlane.f32.xlu0 %v641
      %v643 = vpop.xlane.xlu0 %642
      %v644 = vsub.f32 %v628, %v634
      %v645 = vsub.f32 %v629, %v637
      %v646 = vsub.f32 %v630, %v640
      %v647 = vsub.f32 %v631, %v643
      %v648 = vmul.f32 %v644, 1.442695
      %v649 = vpow.pop %v648
      %v650 = vmul.f32 %v645, 1.442695
      %v651 = vpow.pop %v650
      %v652 = vmul.f32 %v646, 1.442695
      %v653 = vpow.pop %v652
      %v654 = vmul.f32 %v647, 1.442695
      %v655 = vpow.pop %v654
      %v656 = vsel %vm432, %v649, 0.0
      %657 = vadd.xlane.f32.xlu0 %v656
      %v658 = vpop.xlane.xlu0 %657
      %v659 = vsel %vm432, %v651, 0.0
      %660 = vadd.xlane.f32.xlu0 %v659
      %v661 = vpop.xlane.xlu0 %660
      %v662 = vsel %vm432, %v653, 0.0
      %663 = vadd.xlane.f32.xlu0 %v662
      %v664 = vpop.xlane.xlu0 %663
      %v665 = vsel %vm432, %v655, 0.0
      %666 = vadd.xlane.f32.xlu0 %v665
      %v667 = vpop.xlane.xlu0 %666
      %v668 = vrcp.pop %v658
      %v669 = vrcp.pop %v661
      %v670 = vrcp.pop %v664
      %v671 = vrcp.pop %v667
      %v672 = vmul.f32 %v649, %v668
      %v673 = vmul.f32 %v651, %v669
      %v674 = vmul.f32 %v653, %v670
      %v675 = vmul.f32 %v655, %v671
      %v676 = vpack.c.bf16 %v672, %v672
      %v677 = vpack.c.bf16 %v673, %v673
      %v678 = vpack.c.bf16 %v674, %v674
      %v679 = vpack.c.bf16 %v675, %v675
      %680 = vrot.lane.b32.xlu0 %v422, 64
      %v681 = vpop.permute.xlu0 %680
      %v683 = vsel %vm432, %v676, 0
      %vm685 = vcmask 1043456
      %v687 = vsel %vm685, %v681, 0
      %689 = vmatprep.subr.bf16.mxu0 0
      %690 = vmatpush1.bf16.msra.mxu0 0
      %691 = vmatprep.subr.bf16.mxu0 0
      %692 = vmatpush1.bf16.msra.mxu0 0
      %693 = vmatprep.subr.bf16.mxu0 0
      %694 = vmatpush1.bf16.msra.mxu0 0
      %695 = vmatprep.subr.bf16.mxu0 0
      %696 = vmatpush1.bf16.msra.mxu0 0
      %697 = vmatprep.subr.bf16.mxu0 0
      %698 = vmatpush1.bf16.msra.mxu0 0
      %699 = vmatprep.subr.bf16.mxu0 0
      %700 = vmatpush1.bf16.msra.mxu0 0
      %701 = vmatprep.subr.bf16.mxu0 0
      %702 = vmatpush1.bf16.msra.mxu0 0
      %703 = vmatprep.subr.bf16.mxu0 0
      %704 = vmatpush1.bf16.msra.mxu0 %v687
      %705 = vmatprep.subr.bf16.mxu0 0
      %706 = vmatpush2.bf16.msra.mxu0 0
      %707 = vmatprep.subr.bf16.mxu0 0
      %708 = vmatpush2.bf16.msra.mxu0 0
      %709 = vmatprep.subr.bf16.mxu0 0
      %710 = vmatpush2.bf16.msra.mxu0 0
      %711 = vmatprep.subr.bf16.mxu0 0
      %712 = vmatpush2.bf16.msra.mxu0 0
      %713 = vmatprep.subr.bf16.mxu0 0
      %714 = vmatpush2.bf16.msra.mxu0 0
      %715 = vmatprep.subr.bf16.mxu0 0
      %716 = vmatpush2.bf16.msra.mxu0 0
      %717 = vmatprep.subr.bf16.mxu0 0
      %718 = vmatpush2.bf16.msra.mxu0 0
      %719 = vmatprep.subr.bf16.mxu0 0
      %720 = vmatpush2.bf16.msra.mxu0 0
      %721 = vmatprep.mubr.bf16.mxu0 0
      %722 = vmatmul.mubr.bf16.gmra.mxu0 %v683
      %v723 = vpop.f32.mrf.mxu0
      %v724 = vadd.f32 0.0, %v723
      %v725 = vpop.f32.mrf.mxu0
      %v726 = vpop.f32.mrf.mxu0
      %v727 = vpop.f32.mrf.mxu0
      %728 = vdwg.mxu0
      %729 = vrot.lane.b32.xlu0 %v425, 64
      %v730 = vpop.permute.xlu0 %729
      %v732 = vsel %vm432, %v677, 0
      %v735 = vsel %vm685, %v730, 0
      %737 = vmatprep.subr.bf16.mxu0 0
      %738 = vmatpush1.bf16.msra.mxu0 0
      %739 = vmatprep.subr.bf16.mxu0 0
      %740 = vmatpush1.bf16.msra.mxu0 0
      %741 = vmatprep.subr.bf16.mxu0 0
      %742 = vmatpush1.bf16.msra.mxu0 0
      %743 = vmatprep.subr.bf16.mxu0 0
      %744 = vmatpush1.bf16.msra.mxu0 0
      %745 = vmatprep.subr.bf16.mxu0 0
      %746 = vmatpush1.bf16.msra.mxu0 0
      %747 = vmatprep.subr.bf16.mxu0 0
      %748 = vmatpush1.bf16.msra.mxu0 0
      %749 = vmatprep.subr.bf16.mxu0 0
      %750 = vmatpush1.bf16.msra.mxu0 0
      %751 = vmatprep.subr.bf16.mxu0 0
      %752 = vmatpush1.bf16.msra.mxu0 %v735
      %753 = vmatprep.subr.bf16.mxu0 0
      %754 = vmatpush2.bf16.msra.mxu0 0
      %755 = vmatprep.subr.bf16.mxu0 0
      %756 = vmatpush2.bf16.msra.mxu0 0
      %757 = vmatprep.subr.bf16.mxu0 0
      %758 = vmatpush2.bf16.msra.mxu0 0
      %759 = vmatprep.subr.bf16.mxu0 0
      %760 = vmatpush2.bf16.msra.mxu0 0
      %761 = vmatprep.subr.bf16.mxu0 0
      %762 = vmatpush2.bf16.msra.mxu0 0
      %763 = vmatprep.subr.bf16.mxu0 0
      %764 = vmatpush2.bf16.msra.mxu0 0
      %765 = vmatprep.subr.bf16.mxu0 0
      %766 = vmatpush2.bf16.msra.mxu0 0
      %767 = vmatprep.subr.bf16.mxu0 0
      %768 = vmatpush2.bf16.msra.mxu0 0
      %769 = vmatprep.mubr.bf16.mxu0 0
      %770 = vmatmul.mubr.bf16.gmra.mxu0 %v732
      %v771 = vpop.f32.mrf.mxu0
      %v772 = vadd.f32 0.0, %v771
      %v773 = vpop.f32.mrf.mxu0
      %v774 = vpop.f32.mrf.mxu0
      %v775 = vpop.f32.mrf.mxu0
      %776 = vdwg.mxu0
      %777 = vrot.lane.b32.xlu0 %v427, 64
      %v778 = vpop.permute.xlu0 %777
      %v780 = vsel %vm432, %v678, 0
      %v783 = vsel %vm685, %v778, 0
      %785 = vmatprep.subr.bf16.mxu0 0
      %786 = vmatpush1.bf16.msra.mxu0 0
      %787 = vmatprep.subr.bf16.mxu0 0
      %788 = vmatpush1.bf16.msra.mxu0 0
      %789 = vmatprep.subr.bf16.mxu0 0
      %790 = vmatpush1.bf16.msra.mxu0 0
      %791 = vmatprep.subr.bf16.mxu0 0
      %792 = vmatpush1.bf16.msra.mxu0 0
      %793 = vmatprep.subr.bf16.mxu0 0
      %794 = vmatpush1.bf16.msra.mxu0 0
      %795 = vmatprep.subr.bf16.mxu0 0
      %796 = vmatpush1.bf16.msra.mxu0 0
      %797 = vmatprep.subr.bf16.mxu0 0
      %798 = vmatpush1.bf16.msra.mxu0 0
      %799 = vmatprep.subr.bf16.mxu0 0
      %800 = vmatpush1.bf16.msra.mxu0 %v783
      %801 = vmatprep.subr.bf16.mxu0 0
      %802 = vmatpush2.bf16.msra.mxu0 0
      %803 = vmatprep.subr.bf16.mxu0 0
      %804 = vmatpush2.bf16.msra.mxu0 0
      %805 = vmatprep.subr.bf16.mxu0 0
      %806 = vmatpush2.bf16.msra.mxu0 0
      %807 = vmatprep.subr.bf16.mxu0 0
      %808 = vmatpush2.bf16.msra.mxu0 0
      %809 = vmatprep.subr.bf16.mxu0 0
      %810 = vmatpush2.bf16.msra.mxu0 0
      %811 = vmatprep.subr.bf16.mxu0 0
      %812 = vmatpush2.bf16.msra.mxu0 0
      %813 = vmatprep.subr.bf16.mxu0 0
      %814 = vmatpush2.bf16.msra.mxu0 0
      %815 = vmatprep.subr.bf16.mxu0 0
      %816 = vmatpush2.bf16.msra.mxu0 0
      %817 = vmatprep.mubr.bf16.mxu0 0
      %818 = vmatmul.mubr.bf16.gmra.mxu0 %v780
      %v819 = vpop.f32.mrf.mxu0
      %v820 = vadd.f32 0.0, %v819
      %v821 = vpop.f32.mrf.mxu0
      %v822 = vpop.f32.mrf.mxu0
      %v823 = vpop.f32.mrf.mxu0
      %824 = vdwg.mxu0
      %825 = vrot.lane.b32.xlu0 %v429, 64
      %v826 = vpop.permute.xlu0 %825
      %v828 = vsel %vm432, %v679, 0
      %v831 = vsel %vm685, %v826, 0
      %833 = vmatprep.subr.bf16.mxu0 0
      %834 = vmatpush1.bf16.msra.mxu0 0
      %835 = vmatprep.subr.bf16.mxu0 0
      %836 = vmatpush1.bf16.msra.mxu0 0
      %837 = vmatprep.subr.bf16.mxu0 0
      %838 = vmatpush1.bf16.msra.mxu0 0
      %839 = vmatprep.subr.bf16.mxu0 0
      %840 = vmatpush1.bf16.msra.mxu0 0
      %841 = vmatprep.subr.bf16.mxu0 0
      %842 = vmatpush1.bf16.msra.mxu0 0
      %843 = vmatprep.subr.bf16.mxu0 0
      %844 = vmatpush1.bf16.msra.mxu0 0
      %845 = vmatprep.subr.bf16.mxu0 0
      %846 = vmatpush1.bf16.msra.mxu0 0
      %847 = vmatprep.subr.bf16.mxu0 0
      %848 = vmatpush1.bf16.msra.mxu0 %v831
      %849 = vmatprep.subr.bf16.mxu0 0
      %850 = vmatpush2.bf16.msra.mxu0 0
      %851 = vmatprep.subr.bf16.mxu0 0
      %852 = vmatpush2.bf16.msra.mxu0 0
      %853 = vmatprep.subr.bf16.mxu0 0
      %854 = vmatpush2.bf16.msra.mxu0 0
      %855 = vmatprep.subr.bf16.mxu0 0
      %856 = vmatpush2.bf16.msra.mxu0 0
      %857 = vmatprep.subr.bf16.mxu0 0
      %858 = vmatpush2.bf16.msra.mxu0 0
      %859 = vmatprep.subr.bf16.mxu0 0
      %860 = vmatpush2.bf16.msra.mxu0 0
      %861 = vmatprep.subr.bf16.mxu0 0
      %862 = vmatpush2.bf16.msra.mxu0 0
      %863 = vmatprep.subr.bf16.mxu0 0
      %864 = vmatpush2.bf16.msra.mxu0 0
      %865 = vmatprep.mubr.bf16.mxu0 0
      %866 = vmatmul.mubr.bf16.gmra.mxu0 %v828
      %v867 = vpop.f32.mrf.mxu0
      %v868 = vadd.f32 0.0, %v867
      %v869 = vpop.f32.mrf.mxu0
      %v870 = vpop.f32.mrf.mxu0
      %v871 = vpop.f32.mrf.mxu0
      %872 = vdwg.mxu0
      %v873 = vld [vmem:[%s7] sm:$0x1]
      %v874 = vpack.c.bf16 %v724, %v724
      %v875 = vld [vmem:[%s6] sm:$0xf]
      %v877 = vsel %vm432, %v874, 0
      %v880 = vsel %vm685, %v875, 0
      %882 = vmatprep.subr.bf16.mxu0 0
      %883 = vmatpush1.bf16.msra.mxu0 0
      %884 = vmatprep.subr.bf16.mxu0 0
      %885 = vmatpush1.bf16.msra.mxu0 0
      %886 = vmatprep.subr.bf16.mxu0 0
      %887 = vmatpush1.bf16.msra.mxu0 0
      %888 = vmatprep.subr.bf16.mxu0 0
      %889 = vmatpush1.bf16.msra.mxu0 0
      %890 = vmatprep.subr.bf16.mxu0 0
      %891 = vmatpush1.bf16.msra.mxu0 0
      %892 = vmatprep.subr.bf16.mxu0 0
      %893 = vmatpush1.bf16.msra.mxu0 0
      %894 = vmatprep.subr.bf16.mxu0 0
      %895 = vmatpush1.bf16.msra.mxu0 0
      %896 = vmatprep.subr.bf16.mxu0 0
      %897 = vmatpush1.bf16.msra.mxu0 %v880
      %898 = vmatprep.subr.bf16.mxu0 0
      %899 = vmatpush2.bf16.msra.mxu0 0
      %900 = vmatprep.subr.bf16.mxu0 0
      %901 = vmatpush2.bf16.msra.mxu0 0
      %902 = vmatprep.subr.bf16.mxu0 0
      %903 = vmatpush2.bf16.msra.mxu0 0
      %904 = vmatprep.subr.bf16.mxu0 0
      %905 = vmatpush2.bf16.msra.mxu0 0
      %906 = vmatprep.subr.bf16.mxu0 0
      %907 = vmatpush2.bf16.msra.mxu0 0
      %908 = vmatprep.subr.bf16.mxu0 0
      %909 = vmatpush2.bf16.msra.mxu0 0
      %910 = vmatprep.subr.bf16.mxu0 0
      %911 = vmatpush2.bf16.msra.mxu0 0
      %912 = vmatprep.subr.bf16.mxu0 0
      %913 = vmatpush2.bf16.msra.mxu0 0
      %914 = vmatprep.mubr.bf16.mxu0 0
      %915 = vmatmul.mubr.bf16.gmra.mxu0 %v877
      %v916 = vpop.f32.mrf.mxu0
      %v917 = vadd.f32 0.0, %v916
      %v918 = vpop.f32.mrf.mxu0
      %v919 = vpop.f32.mrf.mxu0
      %v920 = vpop.f32.mrf.mxu0
      %921 = vdwg.mxu0
      %v923 = vlaneseq
      %v924 = vshrl.u32 %v923, 7
      %v925 = vsub.s32 0, %v924
      %v926 = vrot.slane %v873, %v925
      %v928 = vadd.f32 %v926, %v917
      %v929 = vpack.c.bf16 %v772, %v772
      %s930 = scalar_lea.vmem %s6, 4
      %v931 = vld [vmem:[%s930] sm:$0xf]
      %v933 = vsel %vm432, %v929, 0
      %v936 = vsel %vm685, %v931, 0
      %938 = vmatprep.subr.bf16.mxu0 0
      %939 = vmatpush1.bf16.msra.mxu0 0
      %940 = vmatprep.subr.bf16.mxu0 0
      %941 = vmatpush1.bf16.msra.mxu0 0
      %942 = vmatprep.subr.bf16.mxu0 0
      %943 = vmatpush1.bf16.msra.mxu0 0
      %944 = vmatprep.subr.bf16.mxu0 0
      %945 = vmatpush1.bf16.msra.mxu0 0
      %946 = vmatprep.subr.bf16.mxu0 0
      %947 = vmatpush1.bf16.msra.mxu0 0
      %948 = vmatprep.subr.bf16.mxu0 0
      %949 = vmatpush1.bf16.msra.mxu0 0
      %950 = vmatprep.subr.bf16.mxu0 0
      %951 = vmatpush1.bf16.msra.mxu0 0
      %952 = vmatprep.subr.bf16.mxu0 0
      %953 = vmatpush1.bf16.msra.mxu0 %v936
      %954 = vmatprep.subr.bf16.mxu0 0
      %955 = vmatpush2.bf16.msra.mxu0 0
      %956 = vmatprep.subr.bf16.mxu0 0
      %957 = vmatpush2.bf16.msra.mxu0 0
      %958 = vmatprep.subr.bf16.mxu0 0
      %959 = vmatpush2.bf16.msra.mxu0 0
      %960 = vmatprep.subr.bf16.mxu0 0
      %961 = vmatpush2.bf16.msra.mxu0 0
      %962 = vmatprep.subr.bf16.mxu0 0
      %963 = vmatpush2.bf16.msra.mxu0 0
      %964 = vmatprep.subr.bf16.mxu0 0
      %965 = vmatpush2.bf16.msra.mxu0 0
      %966 = vmatprep.subr.bf16.mxu0 0
      %967 = vmatpush2.bf16.msra.mxu0 0
      %968 = vmatprep.subr.bf16.mxu0 0
      %969 = vmatpush2.bf16.msra.mxu0 0
      %970 = vmatprep.mubr.bf16.mxu0 0
      %971 = vmatmul.mubr.bf16.gmra.mxu0 %v933
      %v972 = vpop.f32.mrf.mxu0
      %v973 = vadd.f32 0.0, %v972
      %v974 = vpop.f32.mrf.mxu0
      %v975 = vpop.f32.mrf.mxu0
      %v976 = vpop.f32.mrf.mxu0
      %977 = vdwg.mxu0
      %v978 = vadd.f32 %v928, %v973
      %v979 = vpack.c.bf16 %v820, %v820
      %s980 = scalar_lea.vmem %s6, 8
      %v981 = vld [vmem:[%s980] sm:$0xf]
      %v983 = vsel %vm432, %v979, 0
      %v986 = vsel %vm685, %v981, 0
      %988 = vmatprep.subr.bf16.mxu0 0
      %989 = vmatpush1.bf16.msra.mxu0 0
      %990 = vmatprep.subr.bf16.mxu0 0
      %991 = vmatpush1.bf16.msra.mxu0 0
      %992 = vmatprep.subr.bf16.mxu0 0
      %993 = vmatpush1.bf16.msra.mxu0 0
      %994 = vmatprep.subr.bf16.mxu0 0
      %995 = vmatpush1.bf16.msra.mxu0 0
      %996 = vmatprep.subr.bf16.mxu0 0
      %997 = vmatpush1.bf16.msra.mxu0 0
      %998 = vmatprep.subr.bf16.mxu0 0
      %999 = vmatpush1.bf16.msra.mxu0 0
      %1000 = vmatprep.subr.bf16.mxu0 0
      %1001 = vmatpush1.bf16.msra.mxu0 0
      %1002 = vmatprep.subr.bf16.mxu0 0
      %1003 = vmatpush1.bf16.msra.mxu0 %v986
      %1004 = vmatprep.subr.bf16.mxu0 0
      %1005 = vmatpush2.bf16.msra.mxu0 0
      %1006 = vmatprep.subr.bf16.mxu0 0
      %1007 = vmatpush2.bf16.msra.mxu0 0
      %1008 = vmatprep.subr.bf16.mxu0 0
      %1009 = vmatpush2.bf16.msra.mxu0 0
      %1010 = vmatprep.subr.bf16.mxu0 0
      %1011 = vmatpush2.bf16.msra.mxu0 0
      %1012 = vmatprep.subr.bf16.mxu0 0
      %1013 = vmatpush2.bf16.msra.mxu0 0
      %1014 = vmatprep.subr.bf16.mxu0 0
      %1015 = vmatpush2.bf16.msra.mxu0 0
      %1016 = vmatprep.subr.bf16.mxu0 0
      %1017 = vmatpush2.bf16.msra.mxu0 0
      %1018 = vmatprep.subr.bf16.mxu0 0
      %1019 = vmatpush2.bf16.msra.mxu0 0
      %1020 = vmatprep.mubr.bf16.mxu0 0
      %1021 = vmatmul.mubr.bf16.gmra.mxu0 %v983
      %v1022 = vpop.f32.mrf.mxu0
      %v1023 = vadd.f32 0.0, %v1022
      %v1024 = vpop.f32.mrf.mxu0
      %v1025 = vpop.f32.mrf.mxu0
      %v1026 = vpop.f32.mrf.mxu0
      %1027 = vdwg.mxu0
      %v1028 = vadd.f32 %v978, %v1023
      %v1029 = vpack.c.bf16 %v868, %v868
      %s1030 = scalar_lea.vmem %s6, 12
      %v1031 = vld [vmem:[%s1030] sm:$0xf]
      %v1033 = vsel %vm432, %v1029, 0
      %v1036 = vsel %vm685, %v1031, 0
      %1038 = vmatprep.subr.bf16.mxu0 0
      %1039 = vmatpush1.bf16.msra.mxu0 0
      %1040 = vmatprep.subr.bf16.mxu0 0
      %1041 = vmatpush1.bf16.msra.mxu0 0
      %1042 = vmatprep.subr.bf16.mxu0 0
      %1043 = vmatpush1.bf16.msra.mxu0 0
      %1044 = vmatprep.subr.bf16.mxu0 0
      %1045 = vmatpush1.bf16.msra.mxu0 0
      %1046 = vmatprep.subr.bf16.mxu0 0
      %1047 = vmatpush1.bf16.msra.mxu0 0
      %1048 = vmatprep.subr.bf16.mxu0 0
      %1049 = vmatpush1.bf16.msra.mxu0 0
      %1050 = vmatprep.subr.bf16.mxu0 0
      %1051 = vmatpush1.bf16.msra.mxu0 0
      %1052 = vmatprep.subr.bf16.mxu0 0
      %1053 = vmatpush1.bf16.msra.mxu0 %v1036
      %1054 = vmatprep.subr.bf16.mxu0 0
      %1055 = vmatpush2.bf16.msra.mxu0 0
      %1056 = vmatprep.subr.bf16.mxu0 0
      %1057 = vmatpush2.bf16.msra.mxu0 0
      %1058 = vmatprep.subr.bf16.mxu0 0
      %1059 = vmatpush2.bf16.msra.mxu0 0
      %1060 = vmatprep.subr.bf16.mxu0 0
      %1061 = vmatpush2.bf16.msra.mxu0 0
      %1062 = vmatprep.subr.bf16.mxu0 0
      %1063 = vmatpush2.bf16.msra.mxu0 0
      %1064 = vmatprep.subr.bf16.mxu0 0
      %1065 = vmatpush2.bf16.msra.mxu0 0
      %1066 = vmatprep.subr.bf16.mxu0 0
      %1067 = vmatpush2.bf16.msra.mxu0 0
      %1068 = vmatprep.subr.bf16.mxu0 0
      %1069 = vmatpush2.bf16.msra.mxu0 0
      %1070 = vmatprep.mubr.bf16.mxu0 0
      %1071 = vmatmul.mubr.bf16.gmra.mxu0 %v1033
      %v1072 = vpop.f32.mrf.mxu0
      %v1073 = vadd.f32 0.0, %v1072
      %v1074 = vpop.f32.mrf.mxu0
      %v1075 = vpop.f32.mrf.mxu0
      %v1076 = vpop.f32.mrf.mxu0
      %1077 = vdwg.mxu0
      %v1078 = vadd.f32 %v1028, %v1073
      %v1079 = vadd.f32 %v321, %v1078
      %1080 = vst.msk [vmem:[%s317] sm:$0xff] %vm324, %v1079
      %p1081 = scmp.lt.s32.totalorder %s19, 1
      %s1082 = scalar_select %p1081, %s19, 1
      %s1083 = smul.addr %s1082, 8
      %s1084 = scalar_lea.vmem %s8, %s1083
      // Predicated region
      $region53: #{decoder_layer.3} parent=51 // pred_check
        %p1085 = pneg %p215
      $region54: #{decoder_layer.3} parent=51 // pred_check_branch
        %1087 = sbr.rel (%p1085) target = $region56
      $region55: #{decoder_layer.3} parent=51 // pred_region
        _
      $region56: #{decoder_layer.3} parent=51 // pred_fallthru
        _
    $region52: #{decoder_layer.3} parent=5 // pred_fallthru
      _
    %p1088 = scmp.le.s32.totalorder 2, %s14
    // Predicated region
    $region57: #{decoder_layer.3} parent=5 // pred_check
      %p1089 = pneg %p1088
    $region58: #{decoder_layer.3} parent=5 // pred_check_branch
      %1091 = sbr.rel (%p1089) target = $region60
    $region59: #{decoder_layer.3} parent=5 // pred_region
      %s1092 = ssub.s32 %s14, 2
      // Predicated region
      $region61: #{decoder_layer.3} parent=59 // pred_check
        %p1093 = pneg %p221
      $region62: #{decoder_layer.3} parent=59 // pred_check_branch
        %1095 = sbr.rel (%p1093) target = $region64
      $region63: #{decoder_layer.3} parent=59 // pred_region
        %p1096 = scmp.lt.s32.totalorder %s20, 1
        %s1097 = scalar_select %p1096, %s20, 1
        %s1098 = smul.addr %s1097, 8
        %s1099 = scalar_lea.vmem %s8, %s1098
      $region64: #{decoder_layer.3} parent=59 // pred_fallthru
        _
    $region60: #{decoder_layer.3} parent=5 // pred_fallthru
      _
  $region6: #{decoder_layer.3} parent=0 // loop_footer
    %s18 = sadd.s32 1, %s14
  $region7: #{decoder_layer.3} parent=0 // loop_footer_branch
    %13 = sbr.rel target = $region3
  $region8: #{decoder_layer.3} parent=0 // loop_exit
    _

// kernel: decoder_layer.5
$region0: #{decoder_layer.5}
  #allocation0 [shape = 'u32[]', space=smem, size = 0x4, offset = 0x4, fixed_abs, tag = 'smem constant byte address 0x4 - core index']
  #allocation1 [shape = 'u32[144,128]{1,0:T(1,128)}', space=vmem, size = 0x12000, scoped, tag = 'internal scratch']
  #allocation2 [shape = 'bf16[16,32]{1,0:T(8,128)(2,1)}', space=vmem, size = 0x1000, scoped, tag = 'scratch operand']
  %s0 = inlined_call_operand.vmem [shape: f32[16,32], index: 0, kind: input, shape index: {}]
  %s1 = inlined_call_operand.vmem [shape: f32[1,32], index: 1, kind: input, shape index: {}]
  %s2 = inlined_call_operand.vmem [shape: f32[1,32], index: 2, kind: input, shape index: {}]
  %s3 = inlined_call_operand.vmem [shape: bf16[32,64], index: 3, kind: input, shape index: {}]
  %s4 = inlined_call_operand.vmem [shape: f32[1,64], index: 4, kind: input, shape index: {}]
  %s5 = inlined_call_operand.vmem [shape: bf16[64,32], index: 5, kind: input, shape index: {}]
  %s6 = inlined_call_operand.vmem [shape: f32[1,32], index: 6, kind: input, shape index: {}]
  %s7 = inlined_call_operand.hbm [shape: f32[16,32], index: 7, kind: output, shape index: {}]
  %s8 = sld [smem:[#allocation0]]
  $region42: #{decoder_layer.5} parent=0
    _
  %s10 = ssub.s32 1, %s8
  %s11 = scalar_select 0, %s10, %s8
  $region1: #{decoder_layer.5} parent=0
    #allocation3 [shape = 'u8[8192]{0}', space=vmem, size = 0x2000, scoped, tag = 'output window, operand 0, single buffered']
    #allocation4 [shape = 's32[1]{0}', space=sflag, size = 0x4, scoped, tag = 'scoped memory for decoder_layer.5']
    %12 = vsyncpa [#allocation4], 0
    // Predicated region
    $region2: #{decoder_layer.5} parent=1 // pred_check
      _
    $region3: #{decoder_layer.5} parent=1 // pred_check_branch
      %14 = sbr.rel (0) target = $region5
    $region4: #{decoder_layer.5} parent=1 // pred_region
      _
    $region5: #{decoder_layer.5} parent=1 // pred_fallthru
      _
    // Predicated region
    $region6: #{decoder_layer.5} parent=1 // pred_check
      _
    $region7: #{decoder_layer.5} parent=1 // pred_check_branch
      %16 = sbr.rel (0) target = $region9
    $region8: #{decoder_layer.5} parent=1 // pred_region
      _
    $region9: #{decoder_layer.5} parent=1 // pred_fallthru
      _
    // Predicated region
    $region10: #{decoder_layer.5} parent=1 // pred_check
      _
    $region11: #{decoder_layer.5} parent=1 // pred_check_branch
      %18 = sbr.rel (0) target = $region13
    $region12: #{decoder_layer.5} parent=1 // pred_region
      _
    $region13: #{decoder_layer.5} parent=1 // pred_fallthru
      _
    // Predicated region
    $region14: #{decoder_layer.5} parent=1 // pred_check
      _
    $region15: #{decoder_layer.5} parent=1 // pred_check_branch
      %20 = sbr.rel (0) target = $region17
    $region16: #{decoder_layer.5} parent=1 // pred_region
      _
    $region17: #{decoder_layer.5} parent=1 // pred_fallthru
      _
    // Predicated region
    $region18: #{decoder_layer.5} parent=1 // pred_check
      _
    $region19: #{decoder_layer.5} parent=1 // pred_check_branch
      %22 = sbr.rel (0) target = $region21
    $region20: #{decoder_layer.5} parent=1 // pred_region
      _
    $region21: #{decoder_layer.5} parent=1 // pred_fallthru
      _
    // Predicated region
    $region22: #{decoder_layer.5} parent=1 // pred_check
      _
    $region23: #{decoder_layer.5} parent=1 // pred_check_branch
      %24 = sbr.rel (0) target = $region25
    $region24: #{decoder_layer.5} parent=1 // pred_region
      _
    $region25: #{decoder_layer.5} parent=1 // pred_fallthru
      _
    // Predicated region
    $region26: #{decoder_layer.5} parent=1 // pred_check
      _
    $region27: #{decoder_layer.5} parent=1 // pred_check_branch
      %26 = sbr.rel (0) target = $region29
    $region28: #{decoder_layer.5} parent=1 // pred_region
      _
    $region29: #{decoder_layer.5} parent=1 // pred_fallthru
      _
    %p28 = scmp.eq.s32.totalorder 0, 0
    // Predicated region
    $region30: #{decoder_layer.5} parent=1 // pred_check
      %p29 = pneg %p28
    $region31: #{decoder_layer.5} parent=1 // pred_check_branch
      %31 = sbr.rel (%p29) target = $region33
    $region32: #{decoder_layer.5} parent=1 // pred_region
      %v32 = vld [vmem:[%s0] sm:$0xff]
      %v33 = vld [vmem:[%s0 + $0x8] sm:$0xff]
      %v34 = vld [vmem:[%s1] sm:$0x1]
      %v35 = vld [vmem:[%s2] sm:$0x1]
      %vm36 = vcmask 261120
      %v37 = vsel %vm36, %v32, 0.0
      %38 = vadd.xlane.f32.xlu0 %v37
      %v39 = vpop.xlane.xlu0 %38
      %v40 = vsel %vm36, %v33, 0.0
      %41 = vadd.xlane.f32.xlu0 %v40
      %v42 = vpop.xlane.xlu0 %41
      %v43 = vrcp.pop 32.0
      %v44 = vmul.f32 %v39, %v43
      %v45 = vmul.f32 %v42, %v43
      %v46 = vsub.f32 %v32, %v44
      %v47 = vsub.f32 %v33, %v45
      %v48 = vmul.f32 %v46, %v46
      %v49 = vmul.f32 %v47, %v47
      %v50 = vsel %vm36, %v48, 0.0
      %51 = vadd.xlane.f32.xlu0 %v50
      %v52 = vpop.xlane.xlu0 %51
      %v53 = vsel %vm36, %v49, 0.0
      %54 = vadd.xlane.f32.xlu0 %v53
      %v55 = vpop.xlane.xlu0 %54
      %v56 = vmul.f32 %v52, %v43
      %v57 = vmul.f32 %v55, %v43
      %v58 = vadd.f32 %v56, 1e-05
      %v59 = vadd.f32 %v57, 1e-05
      %v60 = vrsqrt.pop %v58
      %v61 = vrsqrt.pop %v59
      %v62 = vmul.f32 %v46, %v60
      %v63 = vmul.f32 %v47, %v61
      %v65 = vlaneseq
      %v66 = vshrl.u32 %v65, 7
      %v67 = vsub.s32 0, %v66
      %v68 = vrot.slane %v34, %v67
      %v70 = vmul.f32 %v62, %v68
      %v71 = vmul.f32 %v63, %v68
      %v73 = vlaneseq
      %v74 = vshrl.u32 %v73, 7
      %v75 = vsub.s32 0, %v74
      %v76 = vrot.slane %v35, %v75
      %v78 = vadd.f32 %v70, %v76
      %v79 = vadd.f32 %v71, %v76
      %v80 = vpack.c.bf16 %v79, %v78
      %v82 = vunpack.c.l.b16 %v80
      %v83 = vunpack.c.h.b16 %v80
      %v84 = vpack.c.b16 %v82, %v82
      %v85 = vpack.c.b16 %v83, %v83
      %vm88 = vcmask 257024
      %89 = vst.msk [vmem:[#allocation2] sm:$0xf] %vm88, %v84
      %90 = vst.msk [vmem:[#allocation2 + $0x4] sm:$0xf] %vm88, %v85
      %v91 = vld [vmem:[%s6] sm:$0x1]
      %v93 = vlaneseq
      %v94 = vshrl.u32 %v93, 7
      %v95 = vsub.s32 0, %v94
      %v96 = vrot.slane %v91, %v95
      %v98 = vadd.f32 %v32, %v96
      %v99 = vadd.f32 %v33, %v96
      %100 = vst.msk [vmem:[#allocation3] sm:$0xff] %vm36, %v98
      %101 = vst.msk [vmem:[#allocation3 + $0x8] sm:$0xff] %vm36, %v99
    $region33: #{decoder_layer.5} parent=1 // pred_fallthru
      _
    %v102 = vld [vmem:[#allocation2] sm:$0xf]
    %v103 = vld [vmem:[#allocation2 + $0x4] sm:$0xf]
    %v104 = vld [vmem:[%s3] sm:$0xf]
    %v105 = vld [vmem:[%s3 + $0x4] sm:$0xf]
    %v106 = vld [vmem:[%s3 + $0x8] sm:$0xf]
    %v107 = vld [vmem:[%s3 + $0xc] sm:$0xf]
    %v108 = vld [vmem:[%s4] sm:$0x1]
    %v110 = vlaneseq
    %v111 = vshrl.u32 %v110, 7
    %v112 = vsub.s32 0, %v111
    %v113 = vrot.slane %v108, %v112
    %v117 = vunpack.c.l.b16 %v102
    %v118 = vunpack.c.l.b16 %v103
    %v119 = vpack.c.b16 %v118, %v117
    %v124 = vunpack.c.l.b16 %v104
    %v125 = vunpack.c.l.b16 %v105
    %v126 = vunpack.c.l.b16 %v106
    %v127 = vunpack.c.l.b16 %v107
    %v128 = vpack.c.b16 %v125, %v124
    %v129 = vpack.c.b16 %v127, %v126
    %vm132 = vcmask 261120
    %v134 = vsel %vm132, %v119, 0
    %136 = vmatprep.subr.bf16.mxu0 0
    %137 = vmatpush1.bf16.msra.mxu0 0
    %138 = vmatprep.subr.bf16.mxu0 0
    %139 = vmatpush1.bf16.msra.mxu0 0
    %140 = vmatprep.subr.bf16.mxu0 0
    %141 = vmatpush1.bf16.msra.mxu0 0
    %142 = vmatprep.subr.bf16.mxu0 0
    %143 = vmatpush1.bf16.msra.mxu0 0
    %144 = vmatprep.subr.bf16.mxu0 0
    %145 = vmatpush1.bf16.msra.mxu0 0
    %146 = vmatprep.subr.bf16.mxu0 0
    %147 = vmatpush1.bf16.msra.mxu0 0
    %148 = vmatprep.subr.bf16.mxu0 0
    %149 = vmatpush1.bf16.msra.mxu0 %v129
    %150 = vmatprep.subr.bf16.mxu0 0
    %151 = vmatpush1.bf16.msra.mxu0 %v128
    %152 = vmatprep.subr.bf16.mxu0 0
    %153 = vmatpush2.bf16.msra.mxu0 0
    %154 = vmatprep.subr.bf16.mxu0 0
    %155 = vmatpush2.bf16.msra.mxu0 0
    %156 = vmatprep.subr.bf16.mxu0 0
    %157 = vmatpush2.bf16.msra.mxu0 0
    %158 = vmatprep.subr.bf16.mxu0 0
    %159 = vmatpush2.bf16.msra.mxu0 0
    %160 = vmatprep.subr.bf16.mxu0 0
    %161 = vmatpush2.bf16.msra.mxu0 0
    %162 = vmatprep.subr.bf16.mxu0 0
    %163 = vmatpush2.bf16.msra.mxu0 0
    %164 = vmatprep.subr.bf16.mxu0 0
    %165 = vmatpush2.bf16.msra.mxu0 0
    %166 = vmatprep.subr.bf16.mxu0 0
    %167 = vmatpush2.bf16.msra.mxu0 0
    %168 = vmatprep.mubr.bf16.mxu0 0
    %169 = vmatmul.mubr.bf16.gmra.mxu0 %v134
    %v170 = vpop.f32.mrf.mxu0
    %v171 = vadd.f32 %v113, %v170
    %v172 = vpop.f32.mrf.mxu0
    %v173 = vpop.f32.mrf.mxu0
    %v174 = vadd.f32 %v113, %v173
    %v175 = vpop.f32.mrf.mxu0
    %176 = vdwg.mxu0
    %v177 = vmax.f32 %v171, 0.0
    %v178 = vmax.f32 %v174, 0.0
    %v179 = vld [vmem:[#allocation3] sm:$0xff]
    %v180 = vld [vmem:[#allocation3 + $0x8] sm:$0xff]
    %v181 = vpack.c.bf16 %v178, %v177
    %v182 = vld [vmem:[%s5] sm:$0xf]
    %v183 = vld [vmem:[%s5 + $0x4] sm:$0xf]
    %v184 = vld [vmem:[%s5 + $0x8] sm:$0xf]
    %v185 = vld [vmem:[%s5 + $0xc] sm:$0xf]
    %v186 = vld [vmem:[%s5 + $0x10] sm:$0xf]
    %v187 = vld [vmem:[%s5 + $0x14] sm:$0xf]
    %v188 = vld [vmem:[%s5 + $0x18] sm:$0xf]
    %v189 = vld [vmem:[%s5 + $0x1c] sm:$0xf]
    %v198 = vunpack.c.l.b16 %v182
    %v199 = vunpack.c.l.b16 %v183
    %v200 = vunpack.c.l.b16 %v184
    %v201 = vunpack.c.l.b16 %v185
    %v202 = vunpack.c.l.b16 %v186
    %v203 = vunpack.c.l.b16 %v187
    %v204 = vunpack.c.l.b16 %v188
    %v205 = vunpack.c.l.b16 %v189
    %v206 = vpack.c.b16 %v199, %v198
    %v207 = vpack.c.b16 %v201, %v200
    %v208 = vpack.c.b16 %v203, %v202
    %v209 = vpack.c.b16 %v205, %v204
    %vm214 = vcmask 523264
    %v216 = vsel %vm214, %v181, 0
    %218 = vmatprep.subr.bf16.mxu0 0
    %219 = vmatpush1.bf16.msra.mxu0 0
    %220 = vmatprep.subr.bf16.mxu0 0
    %221 = vmatpush1.bf16.msra.mxu0 0
    %222 = vmatprep.subr.bf16.mxu0 0
    %223 = vmatpush1.bf16.msra.mxu0 0
    %224 = vmatprep.subr.bf16.mxu0 0
    %225 = vmatpush1.bf16.msra.mxu0 0
    %226 = vmatprep.subr.bf16.mxu0 0
    %227 = vmatpush1.bf16.msra.mxu0 %v209
    %228 = vmatprep.subr.bf16.mxu0 0
    %229 = vmatpush1.bf16.msra.mxu0 %v208
    %230 = vmatprep.subr.bf16.mxu0 0
    %231 = vmatpush1.bf16.msra.mxu0 %v207
    %232 = vmatprep.subr.bf16.mxu0 0
    %233 = vmatpush1.bf16.msra.mxu0 %v206
    %234 = vmatprep.subr.bf16.mxu0 0
    %235 = vmatpush2.bf16.msra.mxu0 0
    %236 = vmatprep.subr.bf16.mxu0 0
    %237 = vmatpush2.bf16.msra.mxu0 0
    %238 = vmatprep.subr.bf16.mxu0 0
    %239 = vmatpush2.bf16.msra.mxu0 0
    %240 = vmatprep.subr.bf16.mxu0 0
    %241 = vmatpush2.bf16.msra.mxu0 0
    %242 = vmatprep.subr.bf16.mxu0 0
    %243 = vmatpush2.bf16.msra.mxu0 0
    %244 = vmatprep.subr.bf16.mxu0 0
    %245 = vmatpush2.bf16.msra.mxu0 0
    %246 = vmatprep.subr.bf16.mxu0 0
    %247 = vmatpush2.bf16.msra.mxu0 0
    %248 = vmatprep.subr.bf16.mxu0 0
    %249 = vmatpush2.bf16.msra.mxu0 0
    %250 = vmatprep.mubr.bf16.mxu0 0
    %251 = vmatmul.mubr.bf16.gmra.mxu0 %v216
    %v252 = vpop.f32.mrf.mxu0
    %v253 = vadd.f32 0.0, %v252
    %v254 = vpop.f32.mrf.mxu0
    %v255 = vpop.f32.mrf.mxu0
    %v256 = vadd.f32 0.0, %v255
    %v257 = vpop.f32.mrf.mxu0
    %258 = vdwg.mxu0
    %v259 = vadd.f32 %v179, %v253
    %v260 = vadd.f32 %v180, %v256
    %261 = vst.msk [vmem:[#allocation3] sm:$0xff] %vm132, %v259
    %262 = vst.msk [vmem:[#allocation3 + $0x8] sm:$0xff] %vm132, %v260
    // Predicated region
    $region34: #{decoder_layer.5} parent=1 // pred_check
      _
    $region35: #{decoder_layer.5} parent=1 // pred_check_branch
      %264 = sbr.rel (0) target = $region37
    $region36: #{decoder_layer.5} parent=1 // pred_region
      %s266 = ssub.s32 256, 256
      %267 = vsyncadd [#allocation4], %s266
      %s268 = sshll.u32 [#allocation3], 4
      %s269 = int_to_ptr.vmem [resolvable:$true] %s268
      %274 = dma.vmem_to_hbm [thread:$0]  %s269, 256, %s7, [#allocation4], 128, 128, 8
    $region37: #{decoder_layer.5} parent=1 // pred_fallthru
      _
    // Predicated region
    $region38: #{decoder_layer.5} parent=1 // pred_check
      _
    $region39: #{decoder_layer.5} parent=1 // pred_check_branch
      %276 = sbr.rel (0) target = $region41
    $region40: #{decoder_layer.5} parent=1 // pred_region
      %277 = dma.done [#allocation4], 256
    $region41: #{decoder_layer.5} parent=1 // pred_fallthru
      _
    %278 = vsyncpa [#allocation4], 1

// kernel: decoder_layer.4
$region0: #{decoder_layer.4}
  #allocation0 [shape = 'u32[]', space=smem, size = 0x4, offset = 0x4, fixed_abs, tag = 'smem constant byte address 0x4 - core index']
  #allocation1 [shape = 'u32[144,128]{1,0:T(1,128)}', space=vmem, size = 0x12000, scoped, tag = 'internal scratch']
  %s0 = inlined_call_operand.vmem [shape: f32[2,8,32], index: 0, kind: input, shape index: {}]
  %s1 = inlined_call_operand.vmem [shape: f32[2,12,32], index: 1, kind: input, shape index: {}]
  %s2 = inlined_call_operand.vmem [shape: bf16[2,1,1,12], index: 2, kind: input, shape index: {}]
  %s3 = inlined_call_operand.vmem [shape: f32[1,32], index: 3, kind: input, shape index: {}]
  %s4 = inlined_call_operand.vmem [shape: f32[1,32], index: 4, kind: input, shape index: {}]
  %s5 = inlined_call_operand.vmem [shape: bf16[32,32], index: 5, kind: input, shape index: {}]
  %s6 = inlined_call_operand.vmem [shape: f32[1,32], index: 6, kind: input, shape index: {}]
  %s7 = inlined_call_operand.vmem [shape: bf16[32,64], index: 7, kind: input, shape index: {}]
  %s8 = inlined_call_operand.vmem [shape: f32[1,64], index: 8, kind: input, shape index: {}]
  %s9 = inlined_call_operand.vmem [shape: bf16[4,8,32], index: 9, kind: input, shape index: {}]
  %s10 = inlined_call_operand.vmem [shape: f32[1,32], index: 10, kind: input, shape index: {}]
  %s11 = inlined_call_operand.vmem [shape: f32[2,8,32], index: 11, kind: output, shape index: {}]
  %s12 = sld [smem:[#allocation0]]
  $region77: #{decoder_layer.4} parent=0
    _
  %s14 = ssub.s32 1, %s12
  %s15 = scalar_select 0, %s14, %s12
  loop: start=0, step=1, limit=4
  $region2: #{decoder_layer.4} parent=0 // loop_pre_header
    _
  $region3: #{decoder_layer.4} parent=0 // loop_header
    %s17 = sphi 0, %s21
    %p18 = scmp.ge.s32.totalorder %s17, 4
    %s27 = sphi 0, %s29
    %s30 = sphi 0, %s27
    %s31 = sphi 0, %s30
    %s47 = sphi 0, %s31
    %s53 = sphi 0, %s55
    %s56 = sphi 0, %s53
    %s57 = sphi 0, %s56
    %s73 = sphi 0, %s57
    %s79 = sphi 0, %s81
    %s82 = sphi 0, %s79
    %s83 = sphi 0, %s82
    %s99 = sphi 0, %s83
    %s103 = sphi 0, %s103
    %s105 = sphi 0, %s103
    %s106 = sphi 0, %s105
    %s120 = sphi 0, %s106
    %s124 = sphi 0, %s124
    %s126 = sphi 0, %s124
    %s127 = sphi 0, %s126
    %s141 = sphi 0, %s127
    %s145 = sphi 0, %s145
    %s147 = sphi 0, %s145
    %s148 = sphi 0, %s147
    %s162 = sphi 0, %s148
    %s166 = sphi 0, %s166
    %s168 = sphi 0, %s166
    %s169 = sphi 0, %s168
    %s183 = sphi 0, %s169
    %s187 = sphi 0, %s187
    %s189 = sphi 0, %s187
    %s190 = sphi 0, %s189
    %s204 = sphi 0, %s190
    %s208 = sphi 0, %s208
    %s210 = sphi 0, %s208
    %s211 = sphi 0, %s210
    %s225 = sphi 0, %s211
    %s229 = sphi 0, %s229
    %s231 = sphi 0, %s229
    %s232 = sphi 0, %s231
    %s246 = sphi 0, %s232
    %s250 = sphi 0, %s250
    %s252 = sphi 0, %s250
    %s253 = sphi 0, %s252
    %s267 = sphi 0, %s253
    %s273 = sphi 0, %s275
    %s276 = sphi 0, %s273
    %s277 = sphi 0, %s276
    %s293 = sphi 0, %s277
  $region4: #{decoder_layer.4} parent=0 // loop_header_branch
    %20 = sbr.rel (%p18) target = $region8
  $region5: #{decoder_layer.4} parent=0 // loop_body
    %s22 = ssub.s32 %s17, 1
    %s23 = ssub.s32 %s17, 2
    %s24 = sadd.s32 %s17, 1
    %s25 = ssub.s32 %s17, %s24
    %p26 = scmp.eq.s32.totalorder %s25, 0
    %s28 = sadd.s32 %s27, 1
    %s29 = scalar_select %p26, %s27, %s28
    %p32 = pneg %p26
    %p33 = scmp.eq.s32.totalorder %s17, 1
    %p34 = por %p32, %p33
    %p35 = scmp.ne.s32.totalorder %s27, %s30
    %p36 = scmp.eq.s32.totalorder %s17, 0
    %p37 = por %p35, %p36
    %p38 = scmp.ne.s32.totalorder %s27, %s30
    %p39 = scmp.eq.s32.totalorder %s22, 1
    %p40 = por %p38, %p39
    %p41 = scmp.ne.s32.totalorder %s30, %s31
    %p42 = scmp.eq.s32.totalorder %s22, 0
    %p43 = por %p41, %p42
    %p44 = scmp.ne.s32.totalorder %s30, %s31
    %p45 = scmp.eq.s32.totalorder %s23, 1
    %p46 = por %p44, %p45
    %p48 = scmp.ne.s32.totalorder %s31, %s47
    %p49 = scmp.eq.s32.totalorder %s23, 0
    %p50 = por %p48, %p49
    %s51 = ssub.s32 %s17, %s24
    %p52 = scmp.eq.s32.totalorder %s51, 0
    %s54 = sadd.s32 %s53, 1
    %s55 = scalar_select %p52, %s53, %s54
    %p58 = pneg %p52
    %p59 = scmp.eq.s32.totalorder %s17, 1
    %p60 = por %p58, %p59
    %p61 = scmp.ne.s32.totalorder %s53, %s56
    %p62 = scmp.eq.s32.totalorder %s17, 0
    %p63 = por %p61, %p62
    %p64 = scmp.ne.s32.totalorder %s53, %s56
    %p65 = scmp.eq.s32.totalorder %s22, 1
    %p66 = por %p64, %p65
    %p67 = scmp.ne.s32.totalorder %s56, %s57
    %p68 = scmp.eq.s32.totalorder %s22, 0
    %p69 = por %p67, %p68
    %p70 = scmp.ne.s32.totalorder %s56, %s57
    %p71 = scmp.eq.s32.totalorder %s23, 1
    %p72 = por %p70, %p71
    %p74 = scmp.ne.s32.totalorder %s57, %s73
    %p75 = scmp.eq.s32.totalorder %s23, 0
    %p76 = por %p74, %p75
    %s77 = ssub.s32 %s17, %s24
    %p78 = scmp.eq.s32.totalorder %s77, 0
    %s80 = sadd.s32 %s79, 1
    %s81 = scalar_select %p78, %s79, %s80
    %p84 = pneg %p78
    %p85 = scmp.eq.s32.totalorder %s17, 1
    %p86 = por %p84, %p85
    %p87 = scmp.ne.s32.totalorder %s79, %s82
    %p88 = scmp.eq.s32.totalorder %s17, 0
    %p89 = por %p87, %p88
    %p90 = scmp.ne.s32.totalorder %s79, %s82
    %p91 = scmp.eq.s32.totalorder %s22, 1
    %p92 = por %p90, %p91
    %p93 = scmp.ne.s32.totalorder %s82, %s83
    %p94 = scmp.eq.s32.totalorder %s22, 0
    %p95 = por %p93, %p94
    %p96 = scmp.ne.s32.totalorder %s82, %s83
    %p97 = scmp.eq.s32.totalorder %s23, 1
    %p98 = por %p96, %p97
    %p100 = scmp.ne.s32.totalorder %s83, %s99
    %p101 = scmp.eq.s32.totalorder %s23, 0
    %p102 = por %p100, %p101
    %s104 = sadd.s32 %s103, 1
    %p107 = scmp.eq.s32.totalorder %s17, 1
    %p108 = scmp.ne.s32.totalorder %s103, %s105
    %p109 = scmp.eq.s32.totalorder %s17, 0
    %p110 = por %p108, %p109
    %p111 = scmp.ne.s32.totalorder %s103, %s105
    %p112 = scmp.eq.s32.totalorder %s22, 1
    %p113 = por %p111, %p112
    %p114 = scmp.ne.s32.totalorder %s105, %s106
    %p115 = scmp.eq.s32.totalorder %s22, 0
    %p116 = por %p114, %p115
    %p117 = scmp.ne.s32.totalorder %s105, %s106
    %p118 = scmp.eq.s32.totalorder %s23, 1
    %p119 = por %p117, %p118
    %p121 = scmp.ne.s32.totalorder %s106, %s120
    %p122 = scmp.eq.s32.totalorder %s23, 0
    %p123 = por %p121, %p122
    %s125 = sadd.s32 %s124, 1
    %p128 = scmp.eq.s32.totalorder %s17, 1
    %p129 = scmp.ne.s32.totalorder %s124, %s126
    %p130 = scmp.eq.s32.totalorder %s17, 0
    %p131 = por %p129, %p130
    %p132 = scmp.ne.s32.totalorder %s124, %s126
    %p133 = scmp.eq.s32.totalorder %s22, 1
    %p134 = por %p132, %p133
    %p135 = scmp.ne.s32.totalorder %s126, %s127
    %p136 = scmp.eq.s32.totalorder %s22, 0
    %p137 = por %p135, %p136
    %p138 = scmp.ne.s32.totalorder %s126, %s127
    %p139 = scmp.eq.s32.totalorder %s23, 1
    %p140 = por %p138, %p139
    %p142 = scmp.ne.s32.totalorder %s127, %s141
    %p143 = scmp.eq.s32.totalorder %s23, 0
    %p144 = por %p142, %p143
    %s146 = sadd.s32 %s145, 1
    %p149 = scmp.eq.s32.totalorder %s17, 1
    %p150 = scmp.ne.s32.totalorder %s145, %s147
    %p151 = scmp.eq.s32.totalorder %s17, 0
    %p152 = por %p150, %p151
    %p153 = scmp.ne.s32.totalorder %s145, %s147
    %p154 = scmp.eq.s32.totalorder %s22, 1
    %p155 = por %p153, %p154
    %p156 = scmp.ne.s32.totalorder %s147, %s148
    %p157 = scmp.eq.s32.totalorder %s22, 0
    %p158 = por %p156, %p157
    %p159 = scmp.ne.s32.totalorder %s147, %s148
    %p160 = scmp.eq.s32.totalorder %s23, 1
    %p161 = por %p159, %p160
    %p163 = scmp.ne.s32.totalorder %s148, %s162
    %p164 = scmp.eq.s32.totalorder %s23, 0
    %p165 = por %p163, %p164
    %s167 = sadd.s32 %s166, 1
    %p170 = scmp.eq.s32.totalorder %s17, 1
    %p171 = scmp.ne.s32.totalorder %s166, %s168
    %p172 = scmp.eq.s32.totalorder %s17, 0
    %p173 = por %p171, %p172
    %p174 = scmp.ne.s32.totalorder %s166, %s168
    %p175 = scmp.eq.s32.totalorder %s22, 1
    %p176 = por %p174, %p175
    %p177 = scmp.ne.s32.totalorder %s168, %s169
    %p178 = scmp.eq.s32.totalorder %s22, 0
    %p179 = por %p177, %p178
    %p180 = scmp.ne.s32.totalorder %s168, %s169
    %p181 = scmp.eq.s32.totalorder %s23, 1
    %p182 = por %p180, %p181
    %p184 = scmp.ne.s32.totalorder %s169, %s183
    %p185 = scmp.eq.s32.totalorder %s23, 0
    %p186 = por %p184, %p185
    %s188 = sadd.s32 %s187, 1
    %p191 = scmp.eq.s32.totalorder %s17, 1
    %p192 = scmp.ne.s32.totalorder %s187, %s189
    %p193 = scmp.eq.s32.totalorder %s17, 0
    %p194 = por %p192, %p193
    %p195 = scmp.ne.s32.totalorder %s187, %s189
    %p196 = scmp.eq.s32.totalorder %s22, 1
    %p197 = por %p195, %p196
    %p198 = scmp.ne.s32.totalorder %s189, %s190
    %p199 = scmp.eq.s32.totalorder %s22, 0
    %p200 = por %p198, %p199
    %p201 = scmp.ne.s32.totalorder %s189, %s190
    %p202 = scmp.eq.s32.totalorder %s23, 1
    %p203 = por %p201, %p202
    %p205 = scmp.ne.s32.totalorder %s190, %s204
    %p206 = scmp.eq.s32.totalorder %s23, 0
    %p207 = por %p205, %p206
    %s209 = sadd.s32 %s208, 1
    %p212 = scmp.eq.s32.totalorder %s17, 1
    %p213 = scmp.ne.s32.totalorder %s208, %s210
    %p214 = scmp.eq.s32.totalorder %s17, 0
    %p215 = por %p213, %p214
    %p216 = scmp.ne.s32.totalorder %s208, %s210
    %p217 = scmp.eq.s32.totalorder %s22, 1
    %p218 = por %p216, %p217
    %p219 = scmp.ne.s32.totalorder %s210, %s211
    %p220 = scmp.eq.s32.totalorder %s22, 0
    %p221 = por %p219, %p220
    %p222 = scmp.ne.s32.totalorder %s210, %s211
    %p223 = scmp.eq.s32.totalorder %s23, 1
    %p224 = por %p222, %p223
    %p226 = scmp.ne.s32.totalorder %s211, %s225
    %p227 = scmp.eq.s32.totalorder %s23, 0
    %p228 = por %p226, %p227
    %s230 = sadd.s32 %s229, 1
    %p233 = scmp.eq.s32.totalorder %s17, 1
    %p234 = scmp.ne.s32.totalorder %s229, %s231
    %p235 = scmp.eq.s32.totalorder %s17, 0
    %p236 = por %p234, %p235
    %p237 = scmp.ne.s32.totalorder %s229, %s231
    %p238 = scmp.eq.s32.totalorder %s22, 1
    %p239 = por %p237, %p238
    %p240 = scmp.ne.s32.totalorder %s231, %s232
    %p241 = scmp.eq.s32.totalorder %s22, 0
    %p242 = por %p240, %p241
    %p243 = scmp.ne.s32.totalorder %s231, %s232
    %p244 = scmp.eq.s32.totalorder %s23, 1
    %p245 = por %p243, %p244
    %p247 = scmp.ne.s32.totalorder %s232, %s246
    %p248 = scmp.eq.s32.totalorder %s23, 0
    %p249 = por %p247, %p248
    %s251 = sadd.s32 %s250, 1
    %p254 = scmp.eq.s32.totalorder %s17, 1
    %p255 = scmp.ne.s32.totalorder %s250, %s252
    %p256 = scmp.eq.s32.totalorder %s17, 0
    %p257 = por %p255, %p256
    %p258 = scmp.ne.s32.totalorder %s250, %s252
    %p259 = scmp.eq.s32.totalorder %s22, 1
    %p260 = por %p258, %p259
    %p261 = scmp.ne.s32.totalorder %s252, %s253
    %p262 = scmp.eq.s32.totalorder %s22, 0
    %p263 = por %p261, %p262
    %p264 = scmp.ne.s32.totalorder %s252, %s253
    %p265 = scmp.eq.s32.totalorder %s23, 1
    %p266 = por %p264, %p265
    %p268 = scmp.ne.s32.totalorder %s253, %s267
    %p269 = scmp.eq.s32.totalorder %s23, 0
    %p270 = por %p268, %p269
    %s271 = ssub.s32 %s17, %s24
    %p272 = scmp.eq.s32.totalorder %s271, 0
    %s274 = sadd.s32 %s273, 1
    %s275 = scalar_select %p272, %s273, %s274
    %p278 = pneg %p272
    %p279 = scmp.eq.s32.totalorder %s17, 1
    %p280 = por %p278, %p279
    %p281 = scmp.ne.s32.totalorder %s273, %s276
    %p282 = scmp.eq.s32.totalorder %s17, 0
    %p283 = por %p281, %p282
    %p284 = scmp.ne.s32.totalorder %s273, %s276
    %p285 = scmp.eq.s32.totalorder %s22, 1
    %p286 = por %p284, %p285
    %p287 = scmp.ne.s32.totalorder %s276, %s277
    %p288 = scmp.eq.s32.totalorder %s22, 0
    %p289 = por %p287, %p288
    %p290 = scmp.ne.s32.totalorder %s276, %s277
    %p291 = scmp.eq.s32.totalorder %s23, 1
    %p292 = por %p290, %p291
    %p294 = scmp.ne.s32.totalorder %s277, %s293
    %p295 = scmp.eq.s32.totalorder %s23, 0
    %p296 = por %p294, %p295
    %p297 = scmp.le.s32.totalorder 1, %s17
    %p298 = scmp.lt.s32.totalorder %s17, 3
    %p299 = pnand %p297, %p298
    %p300 = pneg %p299
    // Predicated region
    $region9: #{decoder_layer.4} parent=5 // pred_check
      _
    $region10: #{decoder_layer.4} parent=5 // pred_check_branch
      %302 = sbr.rel (%p299) target = $region12
    $region11: #{decoder_layer.4} parent=5 // pred_region
      %s303 = ssub.s32 %s17, 1
      // Predicated region
      $region13: #{decoder_layer.4} parent=11 // pred_check
        %p304 = pneg %p116
      $region14: #{decoder_layer.4} parent=11 // pred_check_branch
        %306 = sbr.rel (%p304) target = $region16
      $region15: #{decoder_layer.4} parent=11 // pred_region
        _
      $region16: #{decoder_layer.4} parent=11 // pred_fallthru
        _
      // Predicated region
      $region17: #{decoder_layer.4} parent=11 // pred_check
        %p307 = pneg %p137
      $region18: #{decoder_layer.4} parent=11 // pred_check_branch
        %309 = sbr.rel (%p307) target = $region20
      $region19: #{decoder_layer.4} parent=11 // pred_region
        _
      $region20: #{decoder_layer.4} parent=11 // pred_fallthru
        _
      // Predicated region
      $region21: #{decoder_layer.4} parent=11 // pred_check
        %p310 = pneg %p158
      $region22: #{decoder_layer.4} parent=11 // pred_check_branch
        %312 = sbr.rel (%p310) target = $region24
      $region23: #{decoder_layer.4} parent=11 // pred_region
        _
      $region24: #{decoder_layer.4} parent=11 // pred_fallthru
        _
      // Predicated region
      $region25: #{decoder_layer.4} parent=11 // pred_check
        %p313 = pneg %p179
      $region26: #{decoder_layer.4} parent=11 // pred_check_branch
        %315 = sbr.rel (%p313) target = $region28
      $region27: #{decoder_layer.4} parent=11 // pred_region
        _
      $region28: #{decoder_layer.4} parent=11 // pred_fallthru
        _
      // Predicated region
      $region29: #{decoder_layer.4} parent=11 // pred_check
        %p316 = pneg %p200
      $region30: #{decoder_layer.4} parent=11 // pred_check_branch
        %318 = sbr.rel (%p316) target = $region32
      $region31: #{decoder_layer.4} parent=11 // pred_region
        _
      $region32: #{decoder_layer.4} parent=11 // pred_fallthru
        _
      // Predicated region
      $region33: #{decoder_layer.4} parent=11 // pred_check
        %p319 = pneg %p221
      $region34: #{decoder_layer.4} parent=11 // pred_check_branch
        %321 = sbr.rel (%p319) target = $region36
      $region35: #{decoder_layer.4} parent=11 // pred_region
        _
      $region36: #{decoder_layer.4} parent=11 // pred_fallthru
        _
      // Predicated region
      $region37: #{decoder_layer.4} parent=11 // pred_check
        %p322 = pneg %p242
      $region38: #{decoder_layer.4} parent=11 // pred_check_branch
        %324 = sbr.rel (%p322) target = $region40
      $region39: #{decoder_layer.4} parent=11 // pred_region
        _
      $region40: #{decoder_layer.4} parent=11 // pred_fallthru
        _
      // Predicated region
      $region41: #{decoder_layer.4} parent=11 // pred_check
        %p325 = pneg %p263
      $region42: #{decoder_layer.4} parent=11 // pred_check_branch
        %327 = sbr.rel (%p325) target = $region44
      $region43: #{decoder_layer.4} parent=11 // pred_region
        _
      $region44: #{decoder_layer.4} parent=11 // pred_fallthru
        _
    $region12: #{decoder_layer.4} parent=5 // pred_fallthru
      _
    %p328 = scmp.lt.s32.totalorder %s17, 2
    // Predicated region
    $region45: #{decoder_layer.4} parent=5 // pred_check
      %p329 = pneg %p328
    $region46: #{decoder_layer.4} parent=5 // pred_check_branch
      %331 = sbr.rel (%p329) target = $region48
    $region47: #{decoder_layer.4} parent=5 // pred_region
      // Predicated region
      $region49: #{decoder_layer.4} parent=47 // pred_check
        %p332 = pneg %p37
      $region50: #{decoder_layer.4} parent=47 // pred_check_branch
        %334 = sbr.rel (%p332) target = $region52
      $region51: #{decoder_layer.4} parent=47 // pred_region
        %p335 = scmp.lt.s32.totalorder %s17, 1
        %s336 = scalar_select %p335, %s17, 1
        %s337 = smul.addr %s336, 8
        %s338 = scalar_lea.vmem %s0, %s337
      $region52: #{decoder_layer.4} parent=47 // pred_fallthru
        _
      // Predicated region
      $region53: #{decoder_layer.4} parent=47 // pred_check
        %p339 = pneg %p63
      $region54: #{decoder_layer.4} parent=47 // pred_check_branch
        %341 = sbr.rel (%p339) target = $region56
      $region55: #{decoder_layer.4} parent=47 // pred_region
        %p342 = scmp.lt.s32.totalorder %s17, 1
        %s343 = scalar_select %p342, %s17, 1
        %s344 = smul.addr %s343, 2
        %s345 = smul.addr %s344, 8
        %s346 = scalar_lea.vmem %s1, %s345
      $region56: #{decoder_layer.4} parent=47 // pred_fallthru
        _
      // Predicated region
      $region57: #{decoder_layer.4} parent=47 // pred_check
        %p347 = pneg %p89
      $region58: #{decoder_layer.4} parent=47 // pred_check_branch
        %349 = sbr.rel (%p347) target = $region60
      $region59: #{decoder_layer.4} parent=47 // pred_region
        %p350 = scmp.lt.s32.totalorder %s17, 1
        %s351 = scalar_select %p350, %s17, 1
        %s352 = scalar_lea.vmem %s2, %s351
      $region60: #{decoder_layer.4} parent=47 // pred_fallthru
        _
    $region48: #{decoder_layer.4} parent=5 // pred_fallthru
      _
    %p353 = scmp.le.s32.totalorder 1, %s17
    %p354 = scmp.lt.s32.totalorder %s17, 3
    %p355 = pnand %p353, %p354
    %p356 = pneg %p355
    // Predicated region
    $region61: #{decoder_layer.4} parent=5 // pred_check
      _
    $region62: #{decoder_layer.4} parent=5 // pred_check_branch
      %358 = sbr.rel (%p355) target = $region64
    $region63: #{decoder_layer.4} parent=5 // pred_region
      %s359 = ssub.s32 %s17, 1
      %p360 = scmp.lt.s32.totalorder %s22, 1
      %s361 = scalar_select %p360, %s22, 1
      %s362 = smul.addr %s361, 8
      %s363 = scalar_lea.vmem %s0, %s362
      %p364 = pneg %p43
      %p365 = pneg %p40
      %p366 = scmp.lt.s32.totalorder %s22, 1
      %s367 = scalar_select %p366, %s22, 1
      %s368 = smul.addr %s367, 2
      %s369 = smul.addr %s368, 8
      %s370 = scalar_lea.vmem %s1, %s369
      %p371 = pneg %p69
      %p372 = pneg %p66
      %p373 = scmp.lt.s32.totalorder %s22, 1
      %s374 = scalar_select %p373, %s22, 1
      %s375 = scalar_lea.vmem %s2, %s374
      %p376 = pneg %p95
      %p377 = pneg %p92
      %p378 = pneg %p116
      %p379 = pneg %p113
      %p380 = pneg %p137
      %p381 = pneg %p134
      %p382 = pneg %p158
      %p383 = pneg %p155
      %p384 = pneg %p179
      %p385 = pneg %p176
      %p386 = pneg %p200
      %p387 = pneg %p197
      %p388 = pneg %p221
      %p389 = pneg %p218
      %p390 = pneg %p242
      %p391 = pneg %p239
      %p392 = pneg %p263
      %p393 = pneg %p260
      %p394 = pneg %p289
      %p395 = pneg %p286
      %p396 = scmp.lt.s32.totalorder %s22, 1
      %s397 = scalar_select %p396, %s22, 1
      %s398 = smul.addr %s397, 8
      %s399 = scalar_lea.vmem %s11, %s398
      %p400 = scmp.lt.s32.totalorder %s22, 1
      %s401 = scalar_select %p400, %s22, 1
      %s402 = smul.addr %s401, 8
      %s403 = scalar_lea.vmem %s0, %s402
      %p404 = scmp.lt.s32.totalorder %s22, 1
      %s405 = scalar_select %p404, %s22, 1
      %s406 = smul.addr %s405, 2
      %s407 = smul.addr %s406, 8
      %s408 = scalar_lea.vmem %s1, %s407
      %p409 = scmp.lt.s32.totalorder %s22, 1
      %s410 = scalar_select %p409, %s22, 1
      %s411 = scalar_lea.vmem %s2, %s410
      %p412 = scmp.lt.s32.totalorder %s22, 1
      %s413 = scalar_select %p412, %s22, 1
      %s414 = smul.addr %s413, 8
      %s415 = scalar_lea.vmem %s11, %s414
      %v419 = vld [vmem:[%s403] sm:$0xff]
      %v420 = vld [vmem:[%s3] sm:$0x1]
      %v421 = vld [vmem:[%s4] sm:$0x1]
      %vm422 = vcmask 261120
      %v423 = vsel %vm422, %v419, 0.0
      %424 = vadd.xlane.f32.xlu0 %v423
      %v425 = vpop.xlane.xlu0 %424
      %v426 = vrcp.pop 32.0
      %v427 = vmul.f32 %v425, %v426
      %v428 = vsub.f32 %v419, %v427
      %v429 = vmul.f32 %v428, %v428
      %v430 = vsel %vm422, %v429, 0.0
      %431 = vadd.xlane.f32.xlu0 %v430
      %v432 = vpop.xlane.xlu0 %431
      %v433 = vmul.f32 %v432, %v426
      %v434 = vadd.f32 %v433, 1e-05
      %v435 = vrsqrt.pop %v434
      %v436 = vmul.f32 %v428, %v435
      %v438 = vlaneseq
      %v439 = vshrl.u32 %v438, 7
      %v440 = vsub.s32 0, %v439
      %v441 = vrot.slane %v420, %v440
      %v443 = vmul.f32 %v436, %v441
      %v445 = vlaneseq
      %v446 = vshrl.u32 %v445, 7
      %v447 = vsub.s32 0, %v446
      %v448 = vrot.slane %v421, %v447
      %v450 = vadd.f32 %v443, %v448
      %v451 = vpack.c.bf16 %v450, %v450
      %v452 = vld [vmem:[%s5] sm:$0xf]
      %v453 = vld [vmem:[%s5 + $0x4] sm:$0xf]
      %v454 = vld [vmem:[%s5 + $0x8] sm:$0xf]
      %v455 = vld [vmem:[%s5 + $0xc] sm:$0xf]
      %v456 = vld [vmem:[%s6] sm:$0x1]
      %v458 = vlaneseq
      %v459 = vshrl.u32 %v458, 7
      %v460 = vsub.s32 0, %v459
      %v461 = vrot.slane %v456, %v460
      %v467 = vunpack.c.l.b16 %v452
      %v468 = vunpack.c.l.b16 %v453
      %v469 = vunpack.c.l.b16 %v454
      %v470 = vunpack.c.l.b16 %v455
      %v471 = vpack.c.b16 %v468, %v467
      %v472 = vpack.c.b16 %v470, %v469
      %v476 = vsel %vm422, %v451, 0
      %478 = vmatprep.subr.bf16.mxu0 0
      %479 = vmatpush1.bf16.msra.mxu0 0
      %480 = vmatprep.subr.bf16.mxu0 0
      %481 = vmatpush1.bf16.msra.mxu0 0
      %482 = vmatprep.subr.bf16.mxu0 0
      %483 = vmatpush1.bf16.msra.mxu0 0
      %484 = vmatprep.subr.bf16.mxu0 0
      %485 = vmatpush1.bf16.msra.mxu0 0
      %486 = vmatprep.subr.bf16.mxu0 0
      %487 = vmatpush1.bf16.msra.mxu0 0
      %488 = vmatprep.subr.bf16.mxu0 0
      %489 = vmatpush1.bf16.msra.mxu0 0
      %490 = vmatprep.subr.bf16.mxu0 0
      %491 = vmatpush1.bf16.msra.mxu0 %v472
      %492 = vmatprep.subr.bf16.mxu0 0
      %493 = vmatpush1.bf16.msra.mxu0 %v471
      %494 = vmatprep.subr.bf16.mxu0 0
      %495 = vmatpush2.bf16.msra.mxu0 0
      %496 = vmatprep.subr.bf16.mxu0 0
      %497 = vmatpush2.bf16.msra.mxu0 0
      %498 = vmatprep.subr.bf16.mxu0 0
      %499 = vmatpush2.bf16.msra.mxu0 0
      %500 = vmatprep.subr.bf16.mxu0 0
      %501 = vmatpush2.bf16.msra.mxu0 0
      %502 = vmatprep.subr.bf16.mxu0 0
      %503 = vmatpush2.bf16.msra.mxu0 0
      %504 = vmatprep.subr.bf16.mxu0 0
      %505 = vmatpush2.bf16.msra.mxu0 0
      %506 = vmatprep.subr.bf16.mxu0 0
      %507 = vmatpush2.bf16.msra.mxu0 0
      %508 = vmatprep.subr.bf16.mxu0 0
      %509 = vmatpush2.bf16.msra.mxu0 0
      %510 = vmatprep.mubr.bf16.mxu0 0
      %511 = vmatmul.mubr.bf16.gmra.mxu0 %v476
      %v512 = vpop.f32.mrf.mxu0
      %v513 = vadd.f32 %v461, %v512
      %v514 = vpop.f32.mrf.mxu0
      %v515 = vpop.f32.mrf.mxu0
      %v516 = vpop.f32.mrf.mxu0
      %517 = vdwg.mxu0
      %v518 = vld [vmem:[%s408] sm:$0xff]
      %v519 = vld [vmem:[%s408 + $0x8] sm:$0xf]
      %v520 = vpack.c.bf16 %v519, %v518
      %v521 = vld [vmem:[%s7] sm:$0xf]
      %v522 = vld [vmem:[%s7 + $0x4] sm:$0xf]
      %v523 = vld [vmem:[%s7 + $0x8] sm:$0xf]
      %v524 = vld [vmem:[%s7 + $0xc] sm:$0xf]
      %v525 = vld [vmem:[%s8] sm:$0x1]
      %v527 = vlaneseq
      %v528 = vshrl.u32 %v527, 7
      %v529 = vsub.s32 0, %v528
      %v530 = vrot.slane %v525, %v529
      %v536 = vunpack.c.l.b16 %v521
      %v537 = vunpack.c.l.b16 %v522
      %v538 = vunpack.c.l.b16 %v523
      %v539 = vunpack.c.l.b16 %v524
      %v540 = vpack.c.b16 %v537, %v536
      %v541 = vpack.c.b16 %v539, %v538
      %v545 = vsel %vm422, %v520, 0
      %547 = vmatprep.subr.bf16.mxu0 0
      %548 = vmatpush1.bf16.msra.mxu0 0
      %549 = vmatprep.subr.bf16.mxu0 0
      %550 = vmatpush1.bf16.msra.mxu0 0
      %551 = vmatprep.subr.bf16.mxu0 0
      %552 = vmatpush1.bf16.msra.mxu0 0
      %553 = vmatprep.subr.bf16.mxu0 0
      %554 = vmatpush1.bf16.msra.mxu0 0
      %555 = vmatprep.subr.bf16.mxu0 0
      %556 = vmatpush1.bf16.msra.mxu0 0
      %557 = vmatprep.subr.bf16.mxu0 0
      %558 = vmatpush1.bf16.msra.mxu0 0
      %559 = vmatprep.subr.bf16.mxu0 0
      %560 = vmatpush1.bf16.msra.mxu0 %v541
      %561 = vmatprep.subr.bf16.mxu0 0
      %562 = vmatpush1.bf16.msra.mxu0 %v540
      %563 = vmatprep.subr.bf16.mxu0 0
      %564 = vmatpush2.bf16.msra.mxu0 0
      %565 = vmatprep.subr.bf16.mxu0 0
      %566 = vmatpush2.bf16.msra.mxu0 0
      %567 = vmatprep.subr.bf16.mxu0 0
      %568 = vmatpush2.bf16.msra.mxu0 0
      %569 = vmatprep.subr.bf16.mxu0 0
      %570 = vmatpush2.bf16.msra.mxu0 0
      %571 = vmatprep.subr.bf16.mxu0 0
      %572 = vmatpush2.bf16.msra.mxu0 0
      %573 = vmatprep.subr.bf16.mxu0 0
      %574 = vmatpush2.bf16.msra.mxu0 0
      %575 = vmatprep.subr.bf16.mxu0 0
      %576 = vmatpush2.bf16.msra.mxu0 0
      %577 = vmatprep.subr.bf16.mxu0 0
      %578 = vmatpush2.bf16.msra.mxu0 0
      %579 = vmatprep.mubr.bf16.mxu0 0
      %580 = vmatmul.mubr.bf16.gmra.mxu0 %v545
      %v581 = vpop.f32.mrf.mxu0
      %v582 = vadd.f32 %v530, %v581
      %v583 = vpop.f32.mrf.mxu0
      %v584 = vpop.f32.mrf.mxu0
      %v585 = vadd.f32 %v530, %v584
      %v586 = vpop.f32.mrf.mxu0
      %587 = vdwg.mxu0
      %v588 = vld [vmem:[%s411] sm:$0x1]
      %vm589 = vcmp.ne.bf16.partialorder %v588, 0
      %v590 = vpack.c.bf16 %v513, %v513
      %v591 = vpack.c.bf16 %v585, %v582
      %593 = vrot.lane.b32.xlu0 %v590, 120
      %v594 = vpop.permute.xlu0 %593
      %595 = vrot.lane.b32.xlu0 %v590, 112
      %v596 = vpop.permute.xlu0 %595
      %597 = vrot.lane.b32.xlu0 %v590, 104
      %v598 = vpop.permute.xlu0 %597
      %600 = vrot.lane.b32.xlu0 %v591, 120
      %v601 = vpop.permute.xlu0 %600
      %602 = vrot.lane.b32.xlu0 %v591, 112
      %v603 = vpop.permute.xlu0 %602
      %604 = vrot.lane.b32.xlu0 %v591, 104
      %v605 = vpop.permute.xlu0 %604
      %vm606 = vcmask 64512
      %v608 = vsel %vm606, %v590, 0
      %v611 = vsel %vm606, %v591, 0
      %613 = vmatprep.subr.bf16.mxu0 0
      %614 = vmatpush1.bf16.xpose.msra.mxu0 0
      %615 = vmatprep.subr.bf16.mxu0 0
      %616 = vmatpush1.bf16.xpose.msra.mxu0 0
      %617 = vmatprep.subr.bf16.mxu0 0
      %618 = vmatpush1.bf16.xpose.msra.mxu0 0
      %619 = vmatprep.subr.bf16.mxu0 0
      %620 = vmatpush1.bf16.xpose.msra.mxu0 0
      %621 = vmatprep.subr.bf16.mxu0 0
      %622 = vmatpush1.bf16.xpose.msra.mxu0 0
      %623 = vmatprep.subr.bf16.mxu0 0
      %624 = vmatpush1.bf16.xpose.msra.mxu0 0
      %625 = vmatprep.subr.bf16.mxu0 0
      %626 = vmatpush1.bf16.xpose.msra.mxu0 0
      %627 = vmatprep.subr.bf16.mxu0 0
      %628 = vmatpush1.bf16.xpose.msra.mxu0 %v611
      %629 = vmatprep.subr.bf16.mxu0 0
      %630 = vmatpush2.bf16.xpose.msra.mxu0 0
      %631 = vmatprep.subr.bf16.mxu0 0
      %632 = vmatpush2.bf16.xpose.msra.mxu0 0
      %633 = vmatprep.subr.bf16.mxu0 0
      %634 = vmatpush2.bf16.xpose.msra.mxu0 0
      %635 = vmatprep.subr.bf16.mxu0 0
      %636 = vmatpush2.bf16.xpose.msra.mxu0 0
      %637 = vmatprep.subr.bf16.mxu0 0
      %638 = vmatpush2.bf16.xpose.msra.mxu0 0
      %639 = vmatprep.subr.bf16.mxu0 0
      %640 = vmatpush2.bf16.xpose.msra.mxu0 0
      %641 = vmatprep.subr.bf16.mxu0 0
      %642 = vmatpush2.bf16.xpose.msra.mxu0 0
      %643 = vmatprep.subr.bf16.mxu0 0
      %644 = vmatpush2.bf16.xpose.msra.mxu0 0
      %645 = vmatprep.mubr.bf16.mxu0 0
      %646 = vmatmul.mubr.bf16.gmra.mxu0 %v608
      %v647 = vpop.f32.mrf.mxu0
      %v648 = vadd.f32 0.0, %v647
      %v649 = vpop.f32.mrf.mxu0
      %v650 = vpop.f32.mrf.mxu0
      %v651 = vpop.f32.mrf.mxu0
      %652 = vdwg.mxu0
      %v654 = vsel %vm606, %v594, 0
      %v657 = vsel %vm606, %v601, 0
      %659 = vmatprep.subr.bf16.mxu0 0
      %660 = vmatpush1.bf16.xpose.msra.mxu0 0
      %661 = vmatprep.subr.bf16.mxu0 0
      %662 = vmatpush1.bf16.xpose.msra.mxu0 0
      %663 = vmatprep.subr.bf16.mxu0 0
      %664 = vmatpush1.bf16.xpose.msra.mxu0 0
      %665 = vmatprep.subr.bf16.mxu0 0
      %666 = vmatpush1.bf16.xpose.msra.mxu0 0
      %667 = vmatprep.subr.bf16.mxu0 0
      %668 = vmatpush1.bf16.xpose.msra.mxu0 0
      %669 = vmatprep.subr.bf16.mxu0 0
      %670 = vmatpush1.bf16.xpose.msra.mxu0 0
      %671 = vmatprep.subr.bf16.mxu0 0
      %672 = vmatpush1.bf16.xpose.msra.mxu0 0
      %673 = vmatprep.subr.bf16.mxu0 0
      %674 = vmatpush1.bf16.xpose.msra.mxu0 %v657
      %675 = vmatprep.subr.bf16.mxu0 0
      %676 = vmatpush2.bf16.xpose.msra.mxu0 0
      %677 = vmatprep.subr.bf16.mxu0 0
      %678 = vmatpush2.bf16.xpose.msra.mxu0 0
      %679 = vmatprep.subr.bf16.mxu0 0
      %680 = vmatpush2.bf16.xpose.msra.mxu0 0
      %681 = vmatprep.subr.bf16.mxu0 0
      %682 = vmatpush2.bf16.xpose.msra.mxu0 0
      %683 = vmatprep.subr.bf16.mxu0 0
      %684 = vmatpush2.bf16.xpose.msra.mxu0 0
      %685 = vmatprep.subr.bf16.mxu0 0
      %686 = vmatpush2.bf16.xpose.msra.mxu0 0
      %687 = vmatprep.subr.bf16.mxu0 0
      %688 = vmatpush2.bf16.xpose.msra.mxu0 0
      %689 = vmatprep.subr.bf16.mxu0 0
      %690 = vmatpush2.bf16.xpose.msra.mxu0 0
      %691 = vmatprep.mubr.bf16.mxu0 0
      %692 = vmatmul.mubr.bf16.gmra.mxu0 %v654
      %v693 = vpop.f32.mrf.mxu0
      %v694 = vadd.f32 0.0, %v693
      %v695 = vpop.f32.mrf.mxu0
      %v696 = vpop.f32.mrf.mxu0
      %v697 = vpop.f32.mrf.mxu0
      %698 = vdwg.mxu0
      %v700 = vsel %vm606, %v596, 0
      %v703 = vsel %vm606, %v603, 0
      %705 = vmatprep.subr.bf16.mxu0 0
      %706 = vmatpush1.bf16.xpose.msra.mxu0 0
      %707 = vmatprep.subr.bf16.mxu0 0
      %708 = vmatpush1.bf16.xpose.msra.mxu0 0
      %709 = vmatprep.subr.bf16.mxu0 0
      %710 = vmatpush1.bf16.xpose.msra.mxu0 0
      %711 = vmatprep.subr.bf16.mxu0 0
      %712 = vmatpush1.bf16.xpose.msra.mxu0 0
      %713 = vmatprep.subr.bf16.mxu0 0
      %714 = vmatpush1.bf16.xpose.msra.mxu0 0
      %715 = vmatprep.subr.bf16.mxu0 0
      %716 = vmatpush1.bf16.xpose.msra.mxu0 0
      %717 = vmatprep.subr.bf16.mxu0 0
      %718 = vmatpush1.bf16.xpose.msra.mxu0 0
      %719 = vmatprep.subr.bf16.mxu0 0
      %720 = vmatpush1.bf16.xpose.msra.mxu0 %v703
      %721 = vmatprep.subr.bf16.mxu0 0
      %722 = vmatpush2.bf16.xpose.msra.mxu0 0
      %723 = vmatprep.subr.bf16.mxu0 0
      %724 = vmatpush2.bf16.xpose.msra.mxu0 0
      %725 = vmatprep.subr.bf16.mxu0 0
      %726 = vmatpush2.bf16.xpose.msra.mxu0 0
      %727 = vmatprep.subr.bf16.mxu0 0
      %728 = vmatpush2.bf16.xpose.msra.mxu0 0
      %729 = vmatprep.subr.bf16.mxu0 0
      %730 = vmatpush2.bf16.xpose.msra.mxu0 0
      %731 = vmatprep.subr.bf16.mxu0 0
      %732 = vmatpush2.bf16.xpose.msra.mxu0 0
      %733 = vmatprep.subr.bf16.mxu0 0
      %734 = vmatpush2.bf16.xpose.msra.mxu0 0
      %735 = vmatprep.subr.bf16.mxu0 0
      %736 = vmatpush2.bf16.xpose.msra.mxu0 0
      %737 = vmatprep.mubr.bf16.mxu0 0
      %738 = vmatmul.mubr.bf16.gmra.mxu0 %v700
      %v739 = vpop.f32.mrf.mxu0
      %v740 = vadd.f32 0.0, %v739
      %v741 = vpop.f32.mrf.mxu0
      %v742 = vpop.f32.mrf.mxu0
      %v743 = vpop.f32.mrf.mxu0
      %744 = vdwg.mxu0
      %v746 = vsel %vm606, %v598, 0
      %v749 = vsel %vm606, %v605, 0
      %751 = vmatprep.subr.bf16.mxu0 0
      %752 = vmatpush1.bf16.xpose.msra.mxu0 0
      %753 = vmatprep.subr.bf16.mxu0 0
      %754 = vmatpush1.bf16.xpose.msra.mxu0 0
      %755 = vmatprep.subr.bf16.mxu0 0
      %756 = vmatpush1.bf16.xpose.msra.mxu0 0
      %757 = vmatprep.subr.bf16.mxu0 0
      %758 = vmatpush1.bf16.xpose.msra.mxu0 0
      %759 = vmatprep.subr.bf16.mxu0 0
      %760 = vmatpush1.bf16.xpose.msra.mxu0 0
      %761 = vmatprep.subr.bf16.mxu0 0
      %762 = vmatpush1.bf16.xpose.msra.mxu0 0
      %763 = vmatprep.subr.bf16.mxu0 0
      %764 = vmatpush1.bf16.xpose.msra.mxu0 0
      %765 = vmatprep.subr.bf16.mxu0 0
      %766 = vmatpush1.bf16.xpose.msra.mxu0 %v749
      %767 = vmatprep.subr.bf16.mxu0 0
      %768 = vmatpush2.bf16.xpose.msra.mxu0 0
      %769 = vmatprep.subr.bf16.mxu0 0
      %770 = vmatpush2.bf16.xpose.msra.mxu0 0
      %771 = vmatprep.subr.bf16.mxu0 0
      %772 = vmatpush2.bf16.xpose.msra.mxu0 0
      %773 = vmatprep.subr.bf16.mxu0 0
      %774 = vmatpush2.bf16.xpose.msra.mxu0 0
      %775 = vmatprep.subr.bf16.mxu0 0
      %776 = vmatpush2.bf16.xpose.msra.mxu0 0
      %777 = vmatprep.subr.bf16.mxu0 0
      %778 = vmatpush2.bf16.xpose.msra.mxu0 0
      %779 = vmatprep.subr.bf16.mxu0 0
      %780 = vmatpush2.bf16.xpose.msra.mxu0 0
      %781 = vmatprep.subr.bf16.mxu0 0
      %782 = vmatpush2.bf16.xpose.msra.mxu0 0
      %783 = vmatprep.mubr.bf16.mxu0 0
      %784 = vmatmul.mubr.bf16.gmra.mxu0 %v746
      %v785 = vpop.f32.mrf.mxu0
      %v786 = vadd.f32 0.0, %v785
      %v787 = vpop.f32.mrf.mxu0
      %v788 = vpop.f32.mrf.mxu0
      %v789 = vpop.f32.mrf.mxu0
      %790 = vdwg.mxu0
      %v791 = vsel %vm589, 65537, 0
      %v792 = vunpack.c.l.b16 %v791
      %vm793 = vcmp.ne.s32.totalorder %v792, 0
      %v794 = vsel %vm793, 1, 0
      %v795 = vlaneseq
      %v796 = vshrl.u32 %v795, 7
      %v797 = vsub.s32 0, %v796
      %v798 = vrot.slane %v794, %v797
      %vm799 = vcmp.eq.s32.totalorder %v798, 1
      %v800 = vsel %vm799, %v648, -65500.0
      %v801 = vsel %vm799, %v694, -65500.0
      %v802 = vsel %vm799, %v740, -65500.0
      %v803 = vsel %vm799, %v786, -65500.0
      %vm804 = vcmask 97280
      %v805 = vsel %vm804, %v800, -inf
      %806 = vmax.xlane.f32.xlu0 %v805
      %v807 = vpop.xlane.xlu0 %806
      %v808 = vsel %vm804, %v801, -inf
      %809 = vmax.xlane.f32.xlu0 %v808
      %v810 = vpop.xlane.xlu0 %809
      %v811 = vsel %vm804, %v802, -inf
      %812 = vmax.xlane.f32.xlu0 %v811
      %v813 = vpop.xlane.xlu0 %812
      %v814 = vsel %vm804, %v803, -inf
      %815 = vmax.xlane.f32.xlu0 %v814
      %v816 = vpop.xlane.xlu0 %815
      %v817 = vsub.f32 %v800, %v807
      %v818 = vsub.f32 %v801, %v810
      %v819 = vsub.f32 %v802, %v813
      %v820 = vsub.f32 %v803, %v816
      %v821 = vmul.f32 %v817, 1.442695
      %v822 = vpow.pop %v821
      %v823 = vmul.f32 %v818, 1.442695
      %v824 = vpow.pop %v823
      %v825 = vmul.f32 %v819, 1.442695
      %v826 = vpow.pop %v825
      %v827 = vmul.f32 %v820, 1.442695
      %v828 = vpow.pop %v827
      %v829 = vsel %vm804, %v822, 0.0
      %830 = vadd.xlane.f32.xlu0 %v829
      %v831 = vpop.xlane.xlu0 %830
      %v832 = vsel %vm804, %v824, 0.0
      %833 = vadd.xlane.f32.xlu0 %v832
      %v834 = vpop.xlane.xlu0 %833
      %v835 = vsel %vm804, %v826, 0.0
      %836 = vadd.xlane.f32.xlu0 %v835
      %v837 = vpop.xlane.xlu0 %836
      %v838 = vsel %vm804, %v828, 0.0
      %839 = vadd.xlane.f32.xlu0 %v838
      %v840 = vpop.xlane.xlu0 %839
      %v841 = vrcp.pop %v831
      %v842 = vrcp.pop %v834
      %v843 = vrcp.pop %v837
      %v844 = vrcp.pop %v840
      %v845 = vmul.f32 %v822, %v841
      %v846 = vmul.f32 %v824, %v842
      %v847 = vmul.f32 %v826, %v843
      %v848 = vmul.f32 %v828, %v844
      %v849 = vpack.c.bf16 %v845, %v845
      %v850 = vpack.c.bf16 %v846, %v846
      %v851 = vpack.c.bf16 %v847, %v847
      %v852 = vpack.c.bf16 %v848, %v848
      %853 = vrot.lane.b32.xlu0 %v591, 96
      %v854 = vpop.permute.xlu0 %853
      %v856 = vsel %vm804, %v849, 0
      %vm858 = vcmask 1045504
      %v860 = vsel %vm858, %v854, 0
      %862 = vmatprep.subr.bf16.mxu0 0
      %863 = vmatpush1.bf16.msra.mxu0 0
      %864 = vmatprep.subr.bf16.mxu0 0
      %865 = vmatpush1.bf16.msra.mxu0 0
      %866 = vmatprep.subr.bf16.mxu0 0
      %867 = vmatpush1.bf16.msra.mxu0 0
      %868 = vmatprep.subr.bf16.mxu0 0
      %869 = vmatpush1.bf16.msra.mxu0 0
      %870 = vmatprep.subr.bf16.mxu0 0
      %871 = vmatpush1.bf16.msra.mxu0 0
      %872 = vmatprep.subr.bf16.mxu0 0
      %873 = vmatpush1.bf16.msra.mxu0 0
      %874 = vmatprep.subr.bf16.mxu0 0
      %875 = vmatpush1.bf16.msra.mxu0 0
      %876 = vmatprep.subr.bf16.mxu0 0
      %877 = vmatpush1.bf16.msra.mxu0 %v860
      %878 = vmatprep.subr.bf16.mxu0 0
      %879 = vmatpush2.bf16.msra.mxu0 0
      %880 = vmatprep.subr.bf16.mxu0 0
      %881 = vmatpush2.bf16.msra.mxu0 0
      %882 = vmatprep.subr.bf16.mxu0 0
      %883 = vmatpush2.bf16.msra.mxu0 0
      %884 = vmatprep.subr.bf16.mxu0 0
      %885 = vmatpush2.bf16.msra.mxu0 0
      %886 = vmatprep.subr.bf16.mxu0 0
      %887 = vmatpush2.bf16.msra.mxu0 0
      %888 = vmatprep.subr.bf16.mxu0 0
      %889 = vmatpush2.bf16.msra.mxu0 0
      %890 = vmatprep.subr.bf16.mxu0 0
      %891 = vmatpush2.bf16.msra.mxu0 0
      %892 = vmatprep.subr.bf16.mxu0 0
      %893 = vmatpush2.bf16.msra.mxu0 0
      %894 = vmatprep.mubr.bf16.mxu0 0
      %895 = vmatmul.mubr.bf16.gmra.mxu0 %v856
      %v896 = vpop.f32.mrf.mxu0
      %v897 = vadd.f32 0.0, %v896
      %v898 = vpop.f32.mrf.mxu0
      %v899 = vpop.f32.mrf.mxu0
      %v900 = vpop.f32.mrf.mxu0
      %901 = vdwg.mxu0
      %902 = vrot.lane.b32.xlu0 %v601, 96
      %v903 = vpop.permute.xlu0 %902
      %v905 = vsel %vm804, %v850, 0
      %v908 = vsel %vm858, %v903, 0
      %910 = vmatprep.subr.bf16.mxu0 0
      %911 = vmatpush1.bf16.msra.mxu0 0
      %912 = vmatprep.subr.bf16.mxu0 0
      %913 = vmatpush1.bf16.msra.mxu0 0
      %914 = vmatprep.subr.bf16.mxu0 0
      %915 = vmatpush1.bf16.msra.mxu0 0
      %916 = vmatprep.subr.bf16.mxu0 0
      %917 = vmatpush1.bf16.msra.mxu0 0
      %918 = vmatprep.subr.bf16.mxu0 0
      %919 = vmatpush1.bf16.msra.mxu0 0
      %920 = vmatprep.subr.bf16.mxu0 0
      %921 = vmatpush1.bf16.msra.mxu0 0
      %922 = vmatprep.subr.bf16.mxu0 0
      %923 = vmatpush1.bf16.msra.mxu0 0
      %924 = vmatprep.subr.bf16.mxu0 0
      %925 = vmatpush1.bf16.msra.mxu0 %v908
      %926 = vmatprep.subr.bf16.mxu0 0
      %927 = vmatpush2.bf16.msra.mxu0 0
      %928 = vmatprep.subr.bf16.mxu0 0
      %929 = vmatpush2.bf16.msra.mxu0 0
      %930 = vmatprep.subr.bf16.mxu0 0
      %931 = vmatpush2.bf16.msra.mxu0 0
      %932 = vmatprep.subr.bf16.mxu0 0
      %933 = vmatpush2.bf16.msra.mxu0 0
      %934 = vmatprep.subr.bf16.mxu0 0
      %935 = vmatpush2.bf16.msra.mxu0 0
      %936 = vmatprep.subr.bf16.mxu0 0
      %937 = vmatpush2.bf16.msra.mxu0 0
      %938 = vmatprep.subr.bf16.mxu0 0
      %939 = vmatpush2.bf16.msra.mxu0 0
      %940 = vmatprep.subr.bf16.mxu0 0
      %941 = vmatpush2.bf16.msra.mxu0 0
      %942 = vmatprep.mubr.bf16.mxu0 0
      %943 = vmatmul.mubr.bf16.gmra.mxu0 %v905
      %v944 = vpop.f32.mrf.mxu0
      %v945 = vadd.f32 0.0, %v944
      %v946 = vpop.f32.mrf.mxu0
      %v947 = vpop.f32.mrf.mxu0
      %v948 = vpop.f32.mrf.mxu0
      %949 = vdwg.mxu0
      %950 = vrot.lane.b32.xlu0 %v603, 96
      %v951 = vpop.permute.xlu0 %950
      %v953 = vsel %vm804, %v851, 0
      %v956 = vsel %vm858, %v951, 0
      %958 = vmatprep.subr.bf16.mxu0 0
      %959 = vmatpush1.bf16.msra.mxu0 0
      %960 = vmatprep.subr.bf16.mxu0 0
      %961 = vmatpush1.bf16.msra.mxu0 0
      %962 = vmatprep.subr.bf16.mxu0 0
      %963 = vmatpush1.bf16.msra.mxu0 0
      %964 = vmatprep.subr.bf16.mxu0 0
      %965 = vmatpush1.bf16.msra.mxu0 0
      %966 = vmatprep.subr.bf16.mxu0 0
      %967 = vmatpush1.bf16.msra.mxu0 0
      %968 = vmatprep.subr.bf16.mxu0 0
      %969 = vmatpush1.bf16.msra.mxu0 0
      %970 = vmatprep.subr.bf16.mxu0 0
      %971 = vmatpush1.bf16.msra.mxu0 0
      %972 = vmatprep.subr.bf16.mxu0 0
      %973 = vmatpush1.bf16.msra.mxu0 %v956
      %974 = vmatprep.subr.bf16.mxu0 0
      %975 = vmatpush2.bf16.msra.mxu0 0
      %976 = vmatprep.subr.bf16.mxu0 0
      %977 = vmatpush2.bf16.msra.mxu0 0
      %978 = vmatprep.subr.bf16.mxu0 0
      %979 = vmatpush2.bf16.msra.mxu0 0
      %980 = vmatprep.subr.bf16.mxu0 0
      %981 = vmatpush2.bf16.msra.mxu0 0
      %982 = vmatprep.subr.bf16.mxu0 0
      %983 = vmatpush2.bf16.msra.mxu0 0
      %984 = vmatprep.subr.bf16.mxu0 0
      %985 = vmatpush2.bf16.msra.mxu0 0
      %986 = vmatprep.subr.bf16.mxu0 0
      %987 = vmatpush2.bf16.msra.mxu0 0
      %988 = vmatprep.subr.bf16.mxu0 0
      %989 = vmatpush2.bf16.msra.mxu0 0
      %990 = vmatprep.mubr.bf16.mxu0 0
      %991 = vmatmul.mubr.bf16.gmra.mxu0 %v953
      %v992 = vpop.f32.mrf.mxu0
      %v993 = vadd.f32 0.0, %v992
      %v994 = vpop.f32.mrf.mxu0
      %v995 = vpop.f32.mrf.mxu0
      %v996 = vpop.f32.mrf.mxu0
      %997 = vdwg.mxu0
      %998 = vrot.lane.b32.xlu0 %v605, 96
      %v999 = vpop.permute.xlu0 %998
      %v1001 = vsel %vm804, %v852, 0
      %v1004 = vsel %vm858, %v999, 0
      %1006 = vmatprep.subr.bf16.mxu0 0
      %1007 = vmatpush1.bf16.msra.mxu0 0
      %1008 = vmatprep.subr.bf16.mxu0 0
      %1009 = vmatpush1.bf16.msra.mxu0 0
      %1010 = vmatprep.subr.bf16.mxu0 0
      %1011 = vmatpush1.bf16.msra.mxu0 0
      %1012 = vmatprep.subr.bf16.mxu0 0
      %1013 = vmatpush1.bf16.msra.mxu0 0
      %1014 = vmatprep.subr.bf16.mxu0 0
      %1015 = vmatpush1.bf16.msra.mxu0 0
      %1016 = vmatprep.subr.bf16.mxu0 0
      %1017 = vmatpush1.bf16.msra.mxu0 0
      %1018 = vmatprep.subr.bf16.mxu0 0
      %1019 = vmatpush1.bf16.msra.mxu0 0
      %1020 = vmatprep.subr.bf16.mxu0 0
      %1021 = vmatpush1.bf16.msra.mxu0 %v1004
      %1022 = vmatprep.subr.bf16.mxu0 0
      %1023 = vmatpush2.bf16.msra.mxu0 0
      %1024 = vmatprep.subr.bf16.mxu0 0
      %1025 = vmatpush2.bf16.msra.mxu0 0
      %1026 = vmatprep.subr.bf16.mxu0 0
      %1027 = vmatpush2.bf16.msra.mxu0 0
      %1028 = vmatprep.subr.bf16.mxu0 0
      %1029 = vmatpush2.bf16.msra.mxu0 0
      %1030 = vmatprep.subr.bf16.mxu0 0
      %1031 = vmatpush2.bf16.msra.mxu0 0
      %1032 = vmatprep.subr.bf16.mxu0 0
      %1033 = vmatpush2.bf16.msra.mxu0 0
      %1034 = vmatprep.subr.bf16.mxu0 0
      %1035 = vmatpush2.bf16.msra.mxu0 0
      %1036 = vmatprep.subr.bf16.mxu0 0
      %1037 = vmatpush2.bf16.msra.mxu0 0
      %1038 = vmatprep.mubr.bf16.mxu0 0
      %1039 = vmatmul.mubr.bf16.gmra.mxu0 %v1001
      %v1040 = vpop.f32.mrf.mxu0
      %v1041 = vadd.f32 0.0, %v1040
      %v1042 = vpop.f32.mrf.mxu0
      %v1043 = vpop.f32.mrf.mxu0
      %v1044 = vpop.f32.mrf.mxu0
      %1045 = vdwg.mxu0
      %v1046 = vld [vmem:[%s10] sm:$0x1]
      %v1047 = vpack.c.bf16 %v897, %v897
      %v1048 = vld [vmem:[%s9] sm:$0xf]
      %v1050 = vsel %vm606, %v1047, 0
      %vm1052 = vcmask 1043456
      %v1054 = vsel %vm1052, %v1048, 0
      %1056 = vmatprep.subr.bf16.mxu0 0
      %1057 = vmatpush1.bf16.msra.mxu0 0
      %1058 = vmatprep.subr.bf16.mxu0 0
      %1059 = vmatpush1.bf16.msra.mxu0 0
      %1060 = vmatprep.subr.bf16.mxu0 0
      %1061 = vmatpush1.bf16.msra.mxu0 0
      %1062 = vmatprep.subr.bf16.mxu0 0
      %1063 = vmatpush1.bf16.msra.mxu0 0
      %1064 = vmatprep.subr.bf16.mxu0 0
      %1065 = vmatpush1.bf16.msra.mxu0 0
      %1066 = vmatprep.subr.bf16.mxu0 0
      %1067 = vmatpush1.bf16.msra.mxu0 0
      %1068 = vmatprep.subr.bf16.mxu0 0
      %1069 = vmatpush1.bf16.msra.mxu0 0
      %1070 = vmatprep.subr.bf16.mxu0 0
      %1071 = vmatpush1.bf16.msra.mxu0 %v1054
      %1072 = vmatprep.subr.bf16.mxu0 0
      %1073 = vmatpush2.bf16.msra.mxu0 0
      %1074 = vmatprep.subr.bf16.mxu0 0
      %1075 = vmatpush2.bf16.msra.mxu0 0
      %1076 = vmatprep.subr.bf16.mxu0 0
      %1077 = vmatpush2.bf16.msra.mxu0 0
      %1078 = vmatprep.subr.bf16.mxu0 0
      %1079 = vmatpush2.bf16.msra.mxu0 0
      %1080 = vmatprep.subr.bf16.mxu0 0
      %1081 = vmatpush2.bf16.msra.mxu0 0
      %1082 = vmatprep.subr.bf16.mxu0 0
      %1083 = vmatpush2.bf16.msra.mxu0 0
      %1084 = vmatprep.subr.bf16.mxu0 0
      %1085 = vmatpush2.bf16.msra.mxu0 0
      %1086 = vmatprep.subr.bf16.mxu0 0
      %1087 = vmatpush2.bf16.msra.mxu0 0
      %1088 = vmatprep.mubr.bf16.mxu0 0
      %1089 = vmatmul.mubr.bf16.gmra.mxu0 %v1050
      %v1090 = vpop.f32.mrf.mxu0
      %v1091 = vadd.f32 0.0, %v1090
      %v1092 = vpop.f32.mrf.mxu0
      %v1093 = vpop.f32.mrf.mxu0
      %v1094 = vpop.f32.mrf.mxu0
      %1095 = vdwg.mxu0
      %v1097 = vlaneseq
      %v1098 = vshrl.u32 %v1097, 7
      %v1099 = vsub.s32 0, %v1098
      %v1100 = vrot.slane %v1046, %v1099
      %v1102 = vadd.f32 %v1100, %v1091
      %v1103 = vpack.c.bf16 %v945, %v945
      %s1104 = scalar_lea.vmem %s9, 4
      %v1105 = vld [vmem:[%s1104] sm:$0xf]
      %v1107 = vsel %vm606, %v1103, 0
      %v1110 = vsel %vm1052, %v1105, 0
      %1112 = vmatprep.subr.bf16.mxu0 0
      %1113 = vmatpush1.bf16.msra.mxu0 0
      %1114 = vmatprep.subr.bf16.mxu0 0
      %1115 = vmatpush1.bf16.msra.mxu0 0
      %1116 = vmatprep.subr.bf16.mxu0 0
      %1117 = vmatpush1.bf16.msra.mxu0 0
      %1118 = vmatprep.subr.bf16.mxu0 0
      %1119 = vmatpush1.bf16.msra.mxu0 0
      %1120 = vmatprep.subr.bf16.mxu0 0
      %1121 = vmatpush1.bf16.msra.mxu0 0
      %1122 = vmatprep.subr.bf16.mxu0 0
      %1123 = vmatpush1.bf16.msra.mxu0 0
      %1124 = vmatprep.subr.bf16.mxu0 0
      %1125 = vmatpush1.bf16.msra.mxu0 0
      %1126 = vmatprep.subr.bf16.mxu0 0
      %1127 = vmatpush1.bf16.msra.mxu0 %v1110
      %1128 = vmatprep.subr.bf16.mxu0 0
      %1129 = vmatpush2.bf16.msra.mxu0 0
      %1130 = vmatprep.subr.bf16.mxu0 0
      %1131 = vmatpush2.bf16.msra.mxu0 0
      %1132 = vmatprep.subr.bf16.mxu0 0
      %1133 = vmatpush2.bf16.msra.mxu0 0
      %1134 = vmatprep.subr.bf16.mxu0 0
      %1135 = vmatpush2.bf16.msra.mxu0 0
      %1136 = vmatprep.subr.bf16.mxu0 0
      %1137 = vmatpush2.bf16.msra.mxu0 0
      %1138 = vmatprep.subr.bf16.mxu0 0
      %1139 = vmatpush2.bf16.msra.mxu0 0
      %1140 = vmatprep.subr.bf16.mxu0 0
      %1141 = vmatpush2.bf16.msra.mxu0 0
      %1142 = vmatprep.subr.bf16.mxu0 0
      %1143 = vmatpush2.bf16.msra.mxu0 0
      %1144 = vmatprep.mubr.bf16.mxu0 0
      %1145 = vmatmul.mubr.bf16.gmra.mxu0 %v1107
      %v1146 = vpop.f32.mrf.mxu0
      %v1147 = vadd.f32 0.0, %v1146
      %v1148 = vpop.f32.mrf.mxu0
      %v1149 = vpop.f32.mrf.mxu0
      %v1150 = vpop.f32.mrf.mxu0
      %1151 = vdwg.mxu0
      %v1152 = vadd.f32 %v1102, %v1147
      %v1153 = vpack.c.bf16 %v993, %v993
      %s1154 = scalar_lea.vmem %s9, 8
      %v1155 = vld [vmem:[%s1154] sm:$0xf]
      %v1157 = vsel %vm606, %v1153, 0
      %v1160 = vsel %vm1052, %v1155, 0
      %1162 = vmatprep.subr.bf16.mxu0 0
      %1163 = vmatpush1.bf16.msra.mxu0 0
      %1164 = vmatprep.subr.bf16.mxu0 0
      %1165 = vmatpush1.bf16.msra.mxu0 0
      %1166 = vmatprep.subr.bf16.mxu0 0
      %1167 = vmatpush1.bf16.msra.mxu0 0
      %1168 = vmatprep.subr.bf16.mxu0 0
      %1169 = vmatpush1.bf16.msra.mxu0 0
      %1170 = vmatprep.subr.bf16.mxu0 0
      %1171 = vmatpush1.bf16.msra.mxu0 0
      %1172 = vmatprep.subr.bf16.mxu0 0
      %1173 = vmatpush1.bf16.msra.mxu0 0
      %1174 = vmatprep.subr.bf16.mxu0 0
      %1175 = vmatpush1.bf16.msra.mxu0 0
      %1176 = vmatprep.subr.bf16.mxu0 0
      %1177 = vmatpush1.bf16.msra.mxu0 %v1160
      %1178 = vmatprep.subr.bf16.mxu0 0
      %1179 = vmatpush2.bf16.msra.mxu0 0
      %1180 = vmatprep.subr.bf16.mxu0 0
      %1181 = vmatpush2.bf16.msra.mxu0 0
      %1182 = vmatprep.subr.bf16.mxu0 0
      %1183 = vmatpush2.bf16.msra.mxu0 0
      %1184 = vmatprep.subr.bf16.mxu0 0
      %1185 = vmatpush2.bf16.msra.mxu0 0
      %1186 = vmatprep.subr.bf16.mxu0 0
      %1187 = vmatpush2.bf16.msra.mxu0 0
      %1188 = vmatprep.subr.bf16.mxu0 0
      %1189 = vmatpush2.bf16.msra.mxu0 0
      %1190 = vmatprep.subr.bf16.mxu0 0
      %1191 = vmatpush2.bf16.msra.mxu0 0
      %1192 = vmatprep.subr.bf16.mxu0 0
      %1193 = vmatpush2.bf16.msra.mxu0 0
      %1194 = vmatprep.mubr.bf16.mxu0 0
      %1195 = vmatmul.mubr.bf16.gmra.mxu0 %v1157
      %v1196 = vpop.f32.mrf.mxu0
      %v1197 = vadd.f32 0.0, %v1196
      %v1198 = vpop.f32.mrf.mxu0
      %v1199 = vpop.f32.mrf.mxu0
      %v1200 = vpop.f32.mrf.mxu0
      %1201 = vdwg.mxu0
      %v1202 = vadd.f32 %v1152, %v1197
      %v1203 = vpack.c.bf16 %v1041, %v1041
      %s1204 = scalar_lea.vmem %s9, 12
      %v1205 = vld [vmem:[%s1204] sm:$0xf]
      %v1207 = vsel %vm606, %v1203, 0
      %v1210 = vsel %vm1052, %v1205, 0
      %1212 = vmatprep.subr.bf16.mxu0 0
      %1213 = vmatpush1.bf16.msra.mxu0 0
      %1214 = vmatprep.subr.bf16.mxu0 0
      %1215 = vmatpush1.bf16.msra.mxu0 0
      %1216 = vmatprep.subr.bf16.mxu0 0
      %1217 = vmatpush1.bf16.msra.mxu0 0
      %1218 = vmatprep.subr.bf16.mxu0 0
      %1219 = vmatpush1.bf16.msra.mxu0 0
      %1220 = vmatprep.subr.bf16.mxu0 0
      %1221 = vmatpush1.bf16.msra.mxu0 0
      %1222 = vmatprep.subr.bf16.mxu0 0
      %1223 = vmatpush1.bf16.msra.mxu0 0
      %1224 = vmatprep.subr.bf16.mxu0 0
      %1225 = vmatpush1.bf16.msra.mxu0 0
      %1226 = vmatprep.subr.bf16.mxu0 0
      %1227 = vmatpush1.bf16.msra.mxu0 %v1210
      %1228 = vmatprep.subr.bf16.mxu0 0
      %1229 = vmatpush2.bf16.msra.mxu0 0
      %1230 = vmatprep.subr.bf16.mxu0 0
      %1231 = vmatpush2.bf16.msra.mxu0 0
      %1232 = vmatprep.subr.bf16.mxu0 0
      %1233 = vmatpush2.bf16.msra.mxu0 0
      %1234 = vmatprep.subr.bf16.mxu0 0
      %1235 = vmatpush2.bf16.msra.mxu0 0
      %1236 = vmatprep.subr.bf16.mxu0 0
      %1237 = vmatpush2.bf16.msra.mxu0 0
      %1238 = vmatprep.subr.bf16.mxu0 0
      %1239 = vmatpush2.bf16.msra.mxu0 0
      %1240 = vmatprep.subr.bf16.mxu0 0
      %1241 = vmatpush2.bf16.msra.mxu0 0
      %1242 = vmatprep.subr.bf16.mxu0 0
      %1243 = vmatpush2.bf16.msra.mxu0 0
      %1244 = vmatprep.mubr.bf16.mxu0 0
      %1245 = vmatmul.mubr.bf16.gmra.mxu0 %v1207
      %v1246 = vpop.f32.mrf.mxu0
      %v1247 = vadd.f32 0.0, %v1246
      %v1248 = vpop.f32.mrf.mxu0
      %v1249 = vpop.f32.mrf.mxu0
      %v1250 = vpop.f32.mrf.mxu0
      %1251 = vdwg.mxu0
      %v1252 = vadd.f32 %v1202, %v1247
      %v1253 = vadd.f32 %v419, %v1252
      %1254 = vst.msk [vmem:[%s415] sm:$0xff] %vm422, %v1253
      %p1255 = scmp.lt.s32.totalorder %s22, 1
      %s1256 = scalar_select %p1255, %s22, 1
      %s1257 = smul.addr %s1256, 8
      %s1258 = scalar_lea.vmem %s11, %s1257
      // Predicated region
      $region65: #{decoder_layer.4} parent=63 // pred_check
        %p1259 = pneg %p286
      $region66: #{decoder_layer.4} parent=63 // pred_check_branch
        %1261 = sbr.rel (%p1259) target = $region68
      $region67: #{decoder_layer.4} parent=63 // pred_region
        _
      $region68: #{decoder_layer.4} parent=63 // pred_fallthru
        _
    $region64: #{decoder_layer.4} parent=5 // pred_fallthru
      _
    %p1262 = scmp.le.s32.totalorder 2, %s17
    // Predicated region
    $region69: #{decoder_layer.4} parent=5 // pred_check
      %p1263 = pneg %p1262
    $region70: #{decoder_layer.4} parent=5 // pred_check_branch
      %1265 = sbr.rel (%p1263) target = $region72
    $region71: #{decoder_layer.4} parent=5 // pred_region
      %s1266 = ssub.s32 %s17, 2
      // Predicated region
      $region73: #{decoder_layer.4} parent=71 // pred_check
        %p1267 = pneg %p292
      $region74: #{decoder_layer.4} parent=71 // pred_check_branch
        %1269 = sbr.rel (%p1267) target = $region76
      $region75: #{decoder_layer.4} parent=71 // pred_region
        %p1270 = scmp.lt.s32.totalorder %s23, 1
        %s1271 = scalar_select %p1270, %s23, 1
        %s1272 = smul.addr %s1271, 8
        %s1273 = scalar_lea.vmem %s11, %s1272
      $region76: #{decoder_layer.4} parent=71 // pred_fallthru
        _
    $region72: #{decoder_layer.4} parent=5 // pred_fallthru
      _
  $region6: #{decoder_layer.4} parent=0 // loop_footer
    %s21 = sadd.s32 1, %s17
  $region7: #{decoder_layer.4} parent=0 // loop_footer_branch
    %16 = sbr.rel target = $region3
  $region8: #{decoder_layer.4} parent=0 // loop_exit
    _

</llo_original>
